<compile_context>
chip_gen: v7x
topology: tpu7x:2x2x1
jax: 0.10.0
libtpu: 0.0.40
codegen_flags: <defaults>
</compile_context>

<pallas_src>
import functools

import jax
import jax.numpy as jnp
from jax.experimental import pallas as pl
from jax.experimental.pallas import tpu as pltpu

LANE = 128  # lane tile over the flattened N*V axis


def _conv_stats_kernel(x_ref, w_ref, b_ref, y_ref, st_ref, *,
                       K, stride, T_out, NV, need_mask):
    """One (nv_tile, co_tile) grid step.

    x_ref : (1, stride, C_in, T_chunks*LANE)  phase-major, lane-flattened input
    w_ref : (K, TCO, C_in)                    temporal-conv weights
    b_ref : (TCO, 1)                          conv bias
    y_ref : (1, TCO, T_out*LANE)              un-normalized conv output block
    st_ref: (1, 1, TCO, 2)                    per-tile (sum, sum_sq) partials
    """
    TCO = y_ref.shape[1]
    S_out = T_out * LANE

    # Temporal conv: K lane-aligned ref windows -> K MXU matmuls, f32 accum.
    acc = jnp.zeros((TCO, S_out), jnp.float32)
    for p in range(stride):              # static, tiny
        for k in range(p, K, stride):    # static, K taps total
            b = k // stride
            xk = x_ref[0, p, :, b * LANE:(b + T_out) * LANE]   # (C_in, S_out)
            acc = acc + jnp.dot(w_ref[k], xk,
                                preferred_element_type=jnp.float32)
    acc = acc + b_ref[...]               # (TCO, 1) broadcasts over lanes

    # Single-pass BN partials (sum, sum of squares) over the valid lanes of
    # this tile; padded lanes (zero input -> output == bias) are masked out.
    if need_mask:
        nv0 = pl.program_id(0) * LANE
        col = jax.lax.broadcasted_iota(jnp.int32, (1, S_out), 1)
        masked = jnp.where((col % LANE) + nv0 < NV, acc, 0.0)
    else:
        masked = acc
    s1 = jnp.sum(masked, axis=1, keepdims=True)            # (TCO, 1)
    s2 = jnp.sum(masked * masked, axis=1, keepdims=True)   # (TCO, 1)
    st_ref[0, 0] = jnp.concatenate([s1, s2], axis=1)       # (TCO, 2)

    y_ref[0] = acc.astype(y_ref.dtype)


def _bn_apply_kernel(y_ref, sc_ref, sh_ref, o_ref):
    """Elementwise y*scale + shift on lane-dense blocks (in-place aliased)."""
    o_ref[0] = y_ref[0] * sc_ref[...] + sh_ref[...]


@functools.partial(jax.jit, static_argnames=("stride",))
def unit_tcn_forward(x, weight, bias, gamma, beta, *, stride=1, eps=1e-5):
    """x: (N, C_in, T, V) NCHW.  weight: (C_out, C_in, K, 1).  Returns NCHW."""
    N, C_in, T, V = x.shape
    C_out, _, K, _ = weight.shape
    pad = (K - 1) // 2
    T_out = (T + 2 * pad - K) // stride + 1
    NV = N * V

    # ---- tiling ---------------------------------------------------------
    nv_tiles = pl.cdiv(NV, LANE)
    NV_pad = nv_tiles * LANE
    TCO = C_out if C_out <= 128 else 128          # C_out (sublane) tile
    co_tiles = pl.cdiv(C_out, TCO)
    C_out_pad = co_tiles * TCO

    T_conv = T + 2 * pad                          # conv-padded temporal length
    T_chunks = pl.cdiv(T_conv, stride)            # per-phase temporal length
    assert (K - 1) // stride + T_out <= T_chunks
    S_in = T_chunks * LANE
    S_out = T_out * LANE
    f32 = jnp.float32

    # ---- input re-layout (one fused XLA copy pass): (N,C,T,V) ->
    #      (nv_tiles, stride, C_in, T_chunks*LANE); zero pad along T and NV;
    #      phase-major so stride>1 never needs strided slicing in the kernel.
    xk = jnp.transpose(x, (1, 2, 0, 3)).reshape(C_in, T, NV).astype(f32)
    xk = jnp.pad(xk, ((0, 0),
                      (pad, T_chunks * stride - T - pad),
                      (0, NV_pad - NV)))
    xk = xk.reshape(C_in, T_chunks, stride, nv_tiles, LANE)
    xk = jnp.transpose(xk, (3, 2, 0, 1, 4)).reshape(nv_tiles, stride, C_in, S_in)

    # ---- parameters ------------------------------------------------------
    w_k = jnp.transpose(weight[..., 0], (2, 0, 1)).astype(f32)   # (K, C_out, C_in)
    b_k = bias.astype(f32)
    g_k = gamma.astype(f32)
    be_k = beta.astype(f32)
    if C_out_pad != C_out:
        w_k = jnp.pad(w_k, ((0, 0), (0, C_out_pad - C_out), (0, 0)))
        b_k = jnp.pad(b_k, (0, C_out_pad - C_out))
        g_k = jnp.pad(g_k, (0, C_out_pad - C_out), constant_values=1.0)
        be_k = jnp.pad(be_k, (0, C_out_pad - C_out))
    b_k = b_k.reshape(C_out_pad, 1)

    # ---- pass 1: conv + bias + per-tile BN partials ----------------------
    kernel1 = functools.partial(
        _conv_stats_kernel, K=K, stride=stride, T_out=T_out, NV=NV,
        need_mask=(NV_pad != NV))
    y_conv, stats = pl.pallas_call(
        kernel1,
        out_shape=(
            jax.ShapeDtypeStruct((nv_tiles, C_out_pad, S_out), f32),
            jax.ShapeDtypeStruct((nv_tiles, co_tiles, TCO, 2), f32),
        ),
        grid=(nv_tiles, co_tiles),   # co fastest -> x block stays resident
        in_specs=[
            pl.BlockSpec((1, stride, C_in, S_in), lambda nv, co: (nv, 0, 0, 0)),
            pl.BlockSpec((K, TCO, C_in), lambda nv, co: (0, co, 0)),
            pl.BlockSpec((TCO, 1), lambda nv, co: (co, 0)),
        ],
        out_specs=(
            pl.BlockSpec((1, TCO, S_out), lambda nv, co: (nv, co, 0)),
            pl.BlockSpec((1, 1, TCO, 2), lambda nv, co: (nv, co, 0, 0)),
        ),
        compiler_params=pltpu.CompilerParams(
            dimension_semantics=("parallel", "parallel")),
    )(xk, w_k, b_k)

    # ---- tiny combine: batch stats -> per-channel scale/shift ------------
    count = f32(T_out * NV)                       # BN reduces over (N, T_out, V)
    tot = jnp.sum(stats.reshape(nv_tiles, C_out_pad, 2), axis=0)
    mean = tot[:, 0] / count
    var = jnp.maximum(tot[:, 1] / count - mean * mean, 0.0)
    inv = jax.lax.rsqrt(var + eps)
    scale = (g_k * inv).reshape(C_out_pad, 1)
    shift = (be_k - mean * g_k * inv).reshape(C_out_pad, 1)

    # ---- pass 2: normalize (lane-dense, aliased in/out) -------------------
    y_norm = pl.pallas_call(
        _bn_apply_kernel,
        out_shape=jax.ShapeDtypeStruct((nv_tiles, C_out_pad, S_out), f32),
        grid=(nv_tiles, co_tiles),
        in_specs=[
            pl.BlockSpec((1, TCO, S_out), lambda nv, co: (nv, co, 0)),
            pl.BlockSpec((TCO, 1), lambda nv, co: (co, 0)),
            pl.BlockSpec((TCO, 1), lambda nv, co: (co, 0)),
        ],
        out_specs=pl.BlockSpec((1, TCO, S_out), lambda nv, co: (nv, co, 0)),
        input_output_aliases={0: 0},
        compiler_params=pltpu.CompilerParams(
            dimension_semantics=("parallel", "parallel")),
    )(y_conv, scale, shift)

    # ---- back to PyTorch NCHW: (N, C_out, T_out, V) -----------------------
    y = y_norm.reshape(nv_tiles, C_out_pad, T_out, LANE)
    y = jnp.transpose(y, (1, 2, 0, 3)).reshape(C_out_pad, T_out, NV_pad)
    y = y[:C_out, :, :NV].reshape(C_out, T_out, N, V)
    return jnp.transpose(y, (2, 0, 1, 3))


def _reference(x, weight, bias, gamma, beta, *, stride=1, eps=1e-5):
    pad = (weight.shape[2] - 1) // 2
    y = jax.lax.conv_general_dilated(
        x, weight, window_strides=(stride, 1),
        padding=((pad, pad), (0, 0)),
        dimension_numbers=("NCHW", "OIHW", "NCHW"))
    y = y + bias.reshape(1, -1, 1, 1)
    mean = jnp.mean(y, axis=(0, 2, 3), keepdims=True)
    var = jnp.mean((y - mean) ** 2, axis=(0, 2, 3), keepdims=True)
    y = (y - mean) / jnp.sqrt(var + eps)
    return y * gamma.reshape(1, -1, 1, 1) + beta.reshape(1, -1, 1, 1)


if __name__ == "__main__":
    # Small shapes consistent with unit_tcn: x is (N, C_in, T, V).
    N, C_in, C_out, T, V, K, stride = 2, 4, 8, 16, 16, 9, 1

    key = jax.random.PRNGKey(0)
    kx, kw = jax.random.split(key)

    x = jax.random.normal(kx, (N, C_in, T, V), dtype=jnp.float32)

    # conv_init: kaiming_normal(mode='fan_out') -> std = sqrt(2/(C_out*K*1)); bias = 0.
    fan_out = C_out * K * 1
    weight = jax.random.normal(kw, (C_out, C_in, K, 1), dtype=jnp.float32) * jnp.sqrt(
        2.0 / fan_out)
    bias = jnp.zeros((C_out,), dtype=jnp.float32)
    # bn_init(bn, 1): gamma = 1, beta = 0.
    gamma = jnp.ones((C_out,), dtype=jnp.float32)
    beta = jnp.zeros((C_out,), dtype=jnp.float32)

    out = unit_tcn_forward(x, weight, bias, gamma, beta, stride=stride, eps=1e-5)
    out = jax.block_until_ready(out)

    ref = _reference(x, weight, bias, gamma, beta, stride=stride, eps=1e-5)
    assert out.shape == (N, C_out, T, V), out.shape
    err = float(jnp.max(jnp.abs(out - ref)))
    assert jnp.allclose(out, ref, atol=1e-4, rtol=1e-4), err

    print("KERNEL_OK")
</pallas_src>

<mosaic_0001>
module attributes {stable_mosaic.version = 11 : i64} {
  func.func @_conv_stats_kernel(%arg0: i32, %arg1: i32, %arg2: memref<1x1x4x3072xf32, #tpu.memory_space<vmem>>, %arg3: memref<9x8x4xf32, #tpu.memory_space<vmem>>, %arg4: memref<8x1xf32, #tpu.memory_space<vmem>>, %arg5: memref<1x8x2048xf32, #tpu.memory_space<vmem>>, %arg6: memref<1x1x8x2xf32, #tpu.memory_space<vmem>>) attributes {dimension_semantics = [#tpu.dimension_semantics<parallel>, #tpu.dimension_semantics<parallel>], iteration_bounds = array<i64: 1, 1>, scalar_prefetch = 0 : i64, scratch_operands = 0 : i64, tpu.core_type = #tpu.core_type<tc>, window_params = [{transform_indices = @transform_0, window_bounds = array<i64: 1, 1, 4, 3072>}, {transform_indices = @transform_1, window_bounds = array<i64: 9, 8, 4>}, {transform_indices = @transform_2, window_bounds = array<i64: 8, 1>}, {transform_indices = @transform_3, window_bounds = array<i64: 1, 8, 2048>}, {transform_indices = @transform_4, window_bounds = array<i64: 1, 1, 8, 2>}]} {
    %cst = arith.constant 0.000000e+00 : f32
    %0 = vector.broadcast %cst : f32 to vector<8x2048xf32>
    %c0 = arith.constant 0 : index
    %c0_0 = arith.constant 0 : index
    %c0_1 = arith.constant 0 : index
    %c0_2 = arith.constant 0 : index
    %1 = vector.load %arg2[%c0, %c0_0, %c0_1, %c0_2] : memref<1x1x4x3072xf32, #tpu.memory_space<vmem>>, vector<1x1x4x2048xf32>
    %2 = vector.shape_cast %1 : vector<1x1x4x2048xf32> to vector<4x2048xf32>
    %c0_3 = arith.constant 0 : index
    %c0_4 = arith.constant 0 : index
    %c0_5 = arith.constant 0 : index
    %3 = vector.load %arg3[%c0_3, %c0_4, %c0_5] : memref<9x8x4xf32, #tpu.memory_space<vmem>>, vector<1x8x4xf32>
    %4 = vector.shape_cast %3 : vector<1x8x4xf32> to vector<8x4xf32>
    %cst_6 = arith.constant dense<0.000000e+00> : vector<8x2048xf32>
    %5 = tpu.matmul %4, %2, %cst_6 {dimension_numbers = #tpu.dot_dimension_numbers<[1], [0], [0], [1], [0, 0, 1, 1], [], []>} : vector<8x4xf32>, vector<4x2048xf32>, vector<8x2048xf32> -> vector<8x2048xf32>
    %6 = arith.addf %0, %5 : vector<8x2048xf32>
    %c0_7 = arith.constant 0 : index
    %c0_8 = arith.constant 0 : index
    %c0_9 = arith.constant 0 : index
    %c128 = arith.constant 128 : index
    %7 = vector.load %arg2[%c0_7, %c0_8, %c0_9, %c128] : memref<1x1x4x3072xf32, #tpu.memory_space<vmem>>, vector<1x1x4x2048xf32>
    %8 = vector.shape_cast %7 : vector<1x1x4x2048xf32> to vector<4x2048xf32>
    %c1 = arith.constant 1 : index
    %c0_10 = arith.constant 0 : index
    %c0_11 = arith.constant 0 : index
    %9 = vector.load %arg3[%c1, %c0_10, %c0_11] : memref<9x8x4xf32, #tpu.memory_space<vmem>>, vector<1x8x4xf32>
    %10 = vector.shape_cast %9 : vector<1x8x4xf32> to vector<8x4xf32>
    %cst_12 = arith.constant dense<0.000000e+00> : vector<8x2048xf32>
    %11 = tpu.matmul %10, %8, %cst_12 {dimension_numbers = #tpu.dot_dimension_numbers<[1], [0], [0], [1], [0, 0, 1, 1], [], []>} : vector<8x4xf32>, vector<4x2048xf32>, vector<8x2048xf32> -> vector<8x2048xf32>
    %12 = arith.addf %6, %11 : vector<8x2048xf32>
    %c0_13 = arith.constant 0 : index
    %c0_14 = arith.constant 0 : index
    %c0_15 = arith.constant 0 : index
    %c256 = arith.constant 256 : index
    %13 = vector.load %arg2[%c0_13, %c0_14, %c0_15, %c256] : memref<1x1x4x3072xf32, #tpu.memory_space<vmem>>, vector<1x1x4x2048xf32>
    %14 = vector.shape_cast %13 : vector<1x1x4x2048xf32> to vector<4x2048xf32>
    %c2 = arith.constant 2 : index
    %c0_16 = arith.constant 0 : index
    %c0_17 = arith.constant 0 : index
    %15 = vector.load %arg3[%c2, %c0_16, %c0_17] : memref<9x8x4xf32, #tpu.memory_space<vmem>>, vector<1x8x4xf32>
    %16 = vector.shape_cast %15 : vector<1x8x4xf32> to vector<8x4xf32>
    %cst_18 = arith.constant dense<0.000000e+00> : vector<8x2048xf32>
    %17 = tpu.matmul %16, %14, %cst_18 {dimension_numbers = #tpu.dot_dimension_numbers<[1], [0], [0], [1], [0, 0, 1, 1], [], []>} : vector<8x4xf32>, vector<4x2048xf32>, vector<8x2048xf32> -> vector<8x2048xf32>
    %18 = arith.addf %12, %17 : vector<8x2048xf32>
    %c0_19 = arith.constant 0 : index
    %c0_20 = arith.constant 0 : index
    %c0_21 = arith.constant 0 : index
    %c384 = arith.constant 384 : index
    %19 = vector.load %arg2[%c0_19, %c0_20, %c0_21, %c384] : memref<1x1x4x3072xf32, #tpu.memory_space<vmem>>, vector<1x1x4x2048xf32>
    %20 = vector.shape_cast %19 : vector<1x1x4x2048xf32> to vector<4x2048xf32>
    %c3 = arith.constant 3 : index
    %c0_22 = arith.constant 0 : index
    %c0_23 = arith.constant 0 : index
    %21 = vector.load %arg3[%c3, %c0_22, %c0_23] : memref<9x8x4xf32, #tpu.memory_space<vmem>>, vector<1x8x4xf32>
    %22 = vector.shape_cast %21 : vector<1x8x4xf32> to vector<8x4xf32>
    %cst_24 = arith.constant dense<0.000000e+00> : vector<8x2048xf32>
    %23 = tpu.matmul %22, %20, %cst_24 {dimension_numbers = #tpu.dot_dimension_numbers<[1], [0], [0], [1], [0, 0, 1, 1], [], []>} : vector<8x4xf32>, vector<4x2048xf32>, vector<8x2048xf32> -> vector<8x2048xf32>
    %24 = arith.addf %18, %23 : vector<8x2048xf32>
    %c0_25 = arith.constant 0 : index
    %c0_26 = arith.constant 0 : index
    %c0_27 = arith.constant 0 : index
    %c512 = arith.constant 512 : index
    %25 = vector.load %arg2[%c0_25, %c0_26, %c0_27, %c512] : memref<1x1x4x3072xf32, #tpu.memory_space<vmem>>, vector<1x1x4x2048xf32>
    %26 = vector.shape_cast %25 : vector<1x1x4x2048xf32> to vector<4x2048xf32>
    %c4 = arith.constant 4 : index
    %c0_28 = arith.constant 0 : index
    %c0_29 = arith.constant 0 : index
    %27 = vector.load %arg3[%c4, %c0_28, %c0_29] : memref<9x8x4xf32, #tpu.memory_space<vmem>>, vector<1x8x4xf32>
    %28 = vector.shape_cast %27 : vector<1x8x4xf32> to vector<8x4xf32>
    %cst_30 = arith.constant dense<0.000000e+00> : vector<8x2048xf32>
    %29 = tpu.matmul %28, %26, %cst_30 {dimension_numbers = #tpu.dot_dimension_numbers<[1], [0], [0], [1], [0, 0, 1, 1], [], []>} : vector<8x4xf32>, vector<4x2048xf32>, vector<8x2048xf32> -> vector<8x2048xf32>
    %30 = arith.addf %24, %29 : vector<8x2048xf32>
    %c0_31 = arith.constant 0 : index
    %c0_32 = arith.constant 0 : index
    %c0_33 = arith.constant 0 : index
    %c640 = arith.constant 640 : index
    %31 = vector.load %arg2[%c0_31, %c0_32, %c0_33, %c640] : memref<1x1x4x3072xf32, #tpu.memory_space<vmem>>, vector<1x1x4x2048xf32>
    %32 = vector.shape_cast %31 : vector<1x1x4x2048xf32> to vector<4x2048xf32>
    %c5 = arith.constant 5 : index
    %c0_34 = arith.constant 0 : index
    %c0_35 = arith.constant 0 : index
    %33 = vector.load %arg3[%c5, %c0_34, %c0_35] : memref<9x8x4xf32, #tpu.memory_space<vmem>>, vector<1x8x4xf32>
    %34 = vector.shape_cast %33 : vector<1x8x4xf32> to vector<8x4xf32>
    %cst_36 = arith.constant dense<0.000000e+00> : vector<8x2048xf32>
    %35 = tpu.matmul %34, %32, %cst_36 {dimension_numbers = #tpu.dot_dimension_numbers<[1], [0], [0], [1], [0, 0, 1, 1], [], []>} : vector<8x4xf32>, vector<4x2048xf32>, vector<8x2048xf32> -> vector<8x2048xf32>
    %36 = arith.addf %30, %35 : vector<8x2048xf32>
    %c0_37 = arith.constant 0 : index
    %c0_38 = arith.constant 0 : index
    %c0_39 = arith.constant 0 : index
    %c768 = arith.constant 768 : index
    %37 = vector.load %arg2[%c0_37, %c0_38, %c0_39, %c768] : memref<1x1x4x3072xf32, #tpu.memory_space<vmem>>, vector<1x1x4x2048xf32>
    %38 = vector.shape_cast %37 : vector<1x1x4x2048xf32> to vector<4x2048xf32>
    %c6 = arith.constant 6 : index
    %c0_40 = arith.constant 0 : index
    %c0_41 = arith.constant 0 : index
    %39 = vector.load %arg3[%c6, %c0_40, %c0_41] : memref<9x8x4xf32, #tpu.memory_space<vmem>>, vector<1x8x4xf32>
    %40 = vector.shape_cast %39 : vector<1x8x4xf32> to vector<8x4xf32>
    %cst_42 = arith.constant dense<0.000000e+00> : vector<8x2048xf32>
    %41 = tpu.matmul %40, %38, %cst_42 {dimension_numbers = #tpu.dot_dimension_numbers<[1], [0], [0], [1], [0, 0, 1, 1], [], []>} : vector<8x4xf32>, vector<4x2048xf32>, vector<8x2048xf32> -> vector<8x2048xf32>
    %42 = arith.addf %36, %41 : vector<8x2048xf32>
    %c0_43 = arith.constant 0 : index
    %c0_44 = arith.constant 0 : index
    %c0_45 = arith.constant 0 : index
    %c896 = arith.constant 896 : index
    %43 = vector.load %arg2[%c0_43, %c0_44, %c0_45, %c896] : memref<1x1x4x3072xf32, #tpu.memory_space<vmem>>, vector<1x1x4x2048xf32>
    %44 = vector.shape_cast %43 : vector<1x1x4x2048xf32> to vector<4x2048xf32>
    %c7 = arith.constant 7 : index
    %c0_46 = arith.constant 0 : index
    %c0_47 = arith.constant 0 : index
    %45 = vector.load %arg3[%c7, %c0_46, %c0_47] : memref<9x8x4xf32, #tpu.memory_space<vmem>>, vector<1x8x4xf32>
    %46 = vector.shape_cast %45 : vector<1x8x4xf32> to vector<8x4xf32>
    %cst_48 = arith.constant dense<0.000000e+00> : vector<8x2048xf32>
    %47 = tpu.matmul %46, %44, %cst_48 {dimension_numbers = #tpu.dot_dimension_numbers<[1], [0], [0], [1], [0, 0, 1, 1], [], []>} : vector<8x4xf32>, vector<4x2048xf32>, vector<8x2048xf32> -> vector<8x2048xf32>
    %48 = arith.addf %42, %47 : vector<8x2048xf32>
    %c0_49 = arith.constant 0 : index
    %c0_50 = arith.constant 0 : index
    %c0_51 = arith.constant 0 : index
    %c1024 = arith.constant 1024 : index
    %49 = vector.load %arg2[%c0_49, %c0_50, %c0_51, %c1024] : memref<1x1x4x3072xf32, #tpu.memory_space<vmem>>, vector<1x1x4x2048xf32>
    %50 = vector.shape_cast %49 : vector<1x1x4x2048xf32> to vector<4x2048xf32>
    %c8 = arith.constant 8 : index
    %c0_52 = arith.constant 0 : index
    %c0_53 = arith.constant 0 : index
    %51 = vector.load %arg3[%c8, %c0_52, %c0_53] : memref<9x8x4xf32, #tpu.memory_space<vmem>>, vector<1x8x4xf32>
    %52 = vector.shape_cast %51 : vector<1x8x4xf32> to vector<8x4xf32>
    %cst_54 = arith.constant dense<0.000000e+00> : vector<8x2048xf32>
    %53 = tpu.matmul %52, %50, %cst_54 {dimension_numbers = #tpu.dot_dimension_numbers<[1], [0], [0], [1], [0, 0, 1, 1], [], []>} : vector<8x4xf32>, vector<4x2048xf32>, vector<8x2048xf32> -> vector<8x2048xf32>
    %54 = arith.addf %48, %53 : vector<8x2048xf32>
    %c0_55 = arith.constant 0 : index
    %c0_56 = arith.constant 0 : index
    %55 = vector.load %arg4[%c0_55, %c0_56] : memref<8x1xf32, #tpu.memory_space<vmem>>, vector<8x1xf32>
    %56 = vector.broadcast %55 : vector<8x1xf32> to vector<8x2048xf32>
    %57 = arith.addf %54, %56 : vector<8x2048xf32>
    %c128_i32 = arith.constant 128 : i32
    %58 = arith.muli %arg0, %c128_i32 : i32
    %59 = tpu.iota {dimensions = array<i32: 1>} : vector<1x2048xi32>
    %c128_i32_57 = arith.constant 128 : i32
    %c0_i32 = arith.constant 0 : i32
    %60 = arith.cmpi eq, %c128_i32_57, %c0_i32 : i32
    %c1_i32 = arith.constant 1 : i32
    %61 = arith.select %60, %c1_i32, %c128_i32_57 : i32
    %62 = vector.broadcast %61 : i32 to vector<1x2048xi32>
    %63 = arith.remsi %59, %62 : vector<1x2048xi32>
    %c0_i32_58 = arith.constant 0 : i32
    %64 = vector.broadcast %c0_i32_58 : i32 to vector<1x2048xi32>
    %65 = arith.cmpi ne, %63, %64 : vector<1x2048xi32>
    %c0_i32_59 = arith.constant 0 : i32
    %66 = vector.broadcast %c0_i32_59 : i32 to vector<1x2048xi32>
    %67 = arith.cmpi slt, %63, %66 : vector<1x2048xi32>
    %c0_i32_60 = arith.constant 0 : i32
    %68 = arith.cmpi slt, %61, %c0_i32_60 : i32
    %69 = vector.broadcast %68 : i1 to vector<1x2048xi1>
    %70 = vector.broadcast %69 : vector<1x2048xi1> to vector<1x2048xi1>
    %71 = arith.xori %67, %70 : vector<1x2048xi1>
    %72 = arith.andi %71, %65 : vector<1x2048xi1>
    %73 = vector.broadcast %61 : i32 to vector<1x2048xi32>
    %74 = arith.addi %63, %73 : vector<1x2048xi32>
    %75 = arith.select %72, %74, %63 : vector<1x2048xi1>, vector<1x2048xi32>
    %76 = vector.broadcast %58 : i32 to vector<1x2048xi32>
    %77 = arith.addi %75, %76 : vector<1x2048xi32>
    %c32_i32 = arith.constant 32 : i32
    %78 = vector.broadcast %c32_i32 : i32 to vector<1x2048xi32>
    %79 = arith.cmpi slt, %77, %78 : vector<1x2048xi32>
    %cst_61 = arith.constant 0.000000e+00 : f32
    %80 = vector.shape_cast %79 : vector<1x2048xi1> to vector<1x2048xi1>
    %81 = vector.broadcast %80 : vector<1x2048xi1> to vector<8x2048xi1>
    %82 = vector.broadcast %cst_61 : f32 to vector<8x2048xf32>
    %83 = arith.select %81, %57, %82 : vector<8x2048xi1>, vector<8x2048xf32>
    %cst_62 = arith.constant dense<0.000000e+00> : vector<8xf32>
    %84 = vector.multi_reduction <add>, %83, %cst_62 [1] : vector<8x2048xf32> to vector<8xf32>
    %85 = vector.shape_cast %84 : vector<8xf32> to vector<8x1xf32>
    %86 = arith.mulf %83, %83 : vector<8x2048xf32>
    %cst_63 = arith.constant dense<0.000000e+00> : vector<8xf32>
    %87 = vector.multi_reduction <add>, %86, %cst_63 [1] : vector<8x2048xf32> to vector<8xf32>
    %88 = vector.shape_cast %87 : vector<8xf32> to vector<8x1xf32>
    %89 = tpu.concatenate %85, %88 in 1 : vector<8x1xf32>, vector<8x1xf32> -> vector<8x2xf32>
    %c0_64 = arith.constant 0 : index
    %c0_65 = arith.constant 0 : index
    %c0_66 = arith.constant 0 : index
    %c0_67 = arith.constant 0 : index
    %90 = vector.load %arg6[%c0_64, %c0_65, %c0_66, %c0_67] : memref<1x1x8x2xf32, #tpu.memory_space<vmem>>, vector<1x1x8x2xf32>
    %91 = vector.shape_cast %90 : vector<1x1x8x2xf32> to vector<8x2xf32>
    %92 = vector.shape_cast %89 : vector<8x2xf32> to vector<1x1x8x2xf32>
    tpu.vector_store %arg6[%c0_64, %c0_65, %c0_66, %c0_67], %92 {strides = array<i32>} : memref<1x1x8x2xf32, #tpu.memory_space<vmem>>, vector<1x1x8x2xf32>,
    %c0_68 = arith.constant 0 : index
    %c0_69 = arith.constant 0 : index
    %c0_70 = arith.constant 0 : index
    %93 = vector.load %arg5[%c0_68, %c0_69, %c0_70] : memref<1x8x2048xf32, #tpu.memory_space<vmem>>, vector<1x8x2048xf32>
    %94 = vector.shape_cast %93 : vector<1x8x2048xf32> to vector<8x2048xf32>
    %95 = vector.shape_cast %57 : vector<8x2048xf32> to vector<1x8x2048xf32>
    tpu.vector_store %arg5[%c0_68, %c0_69, %c0_70], %95 {strides = array<i32>} : memref<1x8x2048xf32, #tpu.memory_space<vmem>>, vector<1x8x2048xf32>,
    return
  }
  func.func @transform_0(%arg0: i32, %arg1: i32) -> (i32, i32, i32, i32) {
    %c0_i32 = arith.constant 0 : i32
    %c0_i32_0 = arith.constant 0 : i32
    %c0_i32_1 = arith.constant 0 : i32
    %c0_i32_2 = arith.constant 0 : i32
    return %arg0, %c0_i32, %c0_i32_0, %c0_i32_1 : i32, i32, i32, i32
  }
  func.func @transform_1(%arg0: i32, %arg1: i32) -> (i32, i32, i32) {
    %c0_i32 = arith.constant 0 : i32
    %c0_i32_0 = arith.constant 0 : i32
    %c0_i32_1 = arith.constant 0 : i32
    return %c0_i32, %arg1, %c0_i32_0 : i32, i32, i32
  }
  func.func @transform_2(%arg0: i32, %arg1: i32) -> (i32, i32) {
    %c0_i32 = arith.constant 0 : i32
    %c0_i32_0 = arith.constant 0 : i32
    return %arg1, %c0_i32 : i32, i32
  }
  func.func @transform_3(%arg0: i32, %arg1: i32) -> (i32, i32, i32) {
    %c0_i32 = arith.constant 0 : i32
    %c0_i32_0 = arith.constant 0 : i32
    return %arg0, %arg1, %c0_i32 : i32, i32, i32
  }
  func.func @transform_4(%arg0: i32, %arg1: i32) -> (i32, i32, i32, i32) {
    %c0_i32 = arith.constant 0 : i32
    %c0_i32_0 = arith.constant 0 : i32
    %c0_i32_1 = arith.constant 0 : i32
    return %arg0, %arg1, %c0_i32, %c0_i32_0 : i32, i32, i32, i32
  }
}

module attributes {stable_mosaic.version = 11 : i64} {
  func.func @_bn_apply_kernel(%arg0: i32, %arg1: i32, %arg2: memref<1x8x2048xf32, #tpu.memory_space<vmem>>, %arg3: memref<8x1xf32, #tpu.memory_space<vmem>>, %arg4: memref<8x1xf32, #tpu.memory_space<vmem>>, %arg5: memref<1x8x2048xf32, #tpu.memory_space<vmem>>) attributes {dimension_semantics = [#tpu.dimension_semantics<parallel>, #tpu.dimension_semantics<parallel>], iteration_bounds = array<i64: 1, 1>, scalar_prefetch = 0 : i64, scratch_operands = 0 : i64, tpu.core_type = #tpu.core_type<tc>, window_params = [{transform_indices = @transform_0, window_bounds = array<i64: 1, 8, 2048>}, {transform_indices = @transform_1, window_bounds = array<i64: 8, 1>}, {transform_indices = @transform_2, window_bounds = array<i64: 8, 1>}, {transform_indices = @transform_3, window_bounds = array<i64: 1, 8, 2048>}]} {
    %c0 = arith.constant 0 : index
    %c0_0 = arith.constant 0 : index
    %c0_1 = arith.constant 0 : index
    %0 = vector.load %arg2[%c0, %c0_0, %c0_1] : memref<1x8x2048xf32, #tpu.memory_space<vmem>>, vector<1x8x2048xf32>
    %1 = vector.shape_cast %0 : vector<1x8x2048xf32> to vector<8x2048xf32>
    %c0_2 = arith.constant 0 : index
    %c0_3 = arith.constant 0 : index
    %2 = vector.load %arg3[%c0_2, %c0_3] : memref<8x1xf32, #tpu.memory_space<vmem>>, vector<8x1xf32>
    %3 = vector.broadcast %2 : vector<8x1xf32> to vector<8x2048xf32>
    %4 = arith.mulf %1, %3 : vector<8x2048xf32>
    %c0_4 = arith.constant 0 : index
    %c0_5 = arith.constant 0 : index
    %5 = vector.load %arg4[%c0_4, %c0_5] : memref<8x1xf32, #tpu.memory_space<vmem>>, vector<8x1xf32>
    %6 = vector.broadcast %5 : vector<8x1xf32> to vector<8x2048xf32>
    %7 = arith.addf %4, %6 : vector<8x2048xf32>
    %c0_6 = arith.constant 0 : index
    %c0_7 = arith.constant 0 : index
    %c0_8 = arith.constant 0 : index
    %8 = vector.load %arg5[%c0_6, %c0_7, %c0_8] : memref<1x8x2048xf32, #tpu.memory_space<vmem>>, vector<1x8x2048xf32>
    %9 = vector.shape_cast %8 : vector<1x8x2048xf32> to vector<8x2048xf32>
    %10 = vector.shape_cast %7 : vector<8x2048xf32> to vector<1x8x2048xf32>
    tpu.vector_store %arg5[%c0_6, %c0_7, %c0_8], %10 {strides = array<i32>} : memref<1x8x2048xf32, #tpu.memory_space<vmem>>, vector<1x8x2048xf32>,
    return
  }
  func.func @transform_0(%arg0: i32, %arg1: i32) -> (i32, i32, i32) {
    %c0_i32 = arith.constant 0 : i32
    %c0_i32_0 = arith.constant 0 : i32
    return %arg0, %arg1, %c0_i32 : i32, i32, i32
  }
  func.func @transform_1(%arg0: i32, %arg1: i32) -> (i32, i32) {
    %c0_i32 = arith.constant 0 : i32
    %c0_i32_0 = arith.constant 0 : i32
    return %arg1, %c0_i32 : i32, i32
  }
  func.func @transform_2(%arg0: i32, %arg1: i32) -> (i32, i32) {
    %c0_i32 = arith.constant 0 : i32
    %c0_i32_0 = arith.constant 0 : i32
    return %arg1, %c0_i32 : i32, i32
  }
  func.func @transform_3(%arg0: i32, %arg1: i32) -> (i32, i32, i32) {
    %c0_i32 = arith.constant 0 : i32
    %c0_i32_0 = arith.constant 0 : i32
    return %arg0, %arg1, %c0_i32 : i32, i32, i32
  }
}

</mosaic_0001>

<llo_original>
// kernel: unit_tcn_forward.3
$region0: #{unit_tcn_forward.3}
  #allocation0 [shape = 'u32[]', space=smem, size = 0x4, offset = 0x4, fixed_abs, tag = 'smem constant byte address 0x4 - core index']
  #allocation1 [shape = 'u32[144,128]{1,0:T(1,128)}', space=vmem, size = 0x12000, scoped, tag = 'internal scratch']
  %s0 = inlined_call_operand.vmem [shape: f32[1,8,2048], index: 0, kind: input, shape index: {}, may-alias: {0,3}]
  %s1 = inlined_call_operand.vmem [shape: f32[8,1], index: 1, kind: input, shape index: {}]
  %s2 = inlined_call_operand.vmem [shape: f32[8,1], index: 2, kind: input, shape index: {}]
  %s3 = inlined_call_operand.vmem [shape: f32[1,8,2048], index: 3, kind: output, shape index: {}, may-alias: {0,3}]
  %s4 = sld [smem:[#allocation0]]
  $region22: #{unit_tcn_forward.3} parent=0
    _
  %s6 = ssub.s32 1, %s4
  %s7 = scalar_select 0, %s6, %s4
  // Predicated region
  $region2: #{unit_tcn_forward.3} parent=0 // pred_check
    _
  $region3: #{unit_tcn_forward.3} parent=0 // pred_check_branch
    %9 = sbr.rel (0) target = $region5
  $region4: #{unit_tcn_forward.3} parent=0 // pred_region
    _
  $region5: #{unit_tcn_forward.3} parent=0 // pred_fallthru
    _
  // Predicated region
  $region6: #{unit_tcn_forward.3} parent=0 // pred_check
    _
  $region7: #{unit_tcn_forward.3} parent=0 // pred_check_branch
    %11 = sbr.rel (0) target = $region9
  $region8: #{unit_tcn_forward.3} parent=0 // pred_region
    _
  $region9: #{unit_tcn_forward.3} parent=0 // pred_fallthru
    _
  // Predicated region
  $region10: #{unit_tcn_forward.3} parent=0 // pred_check
    _
  $region11: #{unit_tcn_forward.3} parent=0 // pred_check_branch
    %13 = sbr.rel (0) target = $region13
  $region12: #{unit_tcn_forward.3} parent=0 // pred_region
    _
  $region13: #{unit_tcn_forward.3} parent=0 // pred_fallthru
    _
  %v14 = vld [vmem:[%s0] sm:$0xff]
  %v15 = vld [vmem:[%s0 + $0x8] sm:$0xff]
  %v16 = vld [vmem:[%s0 + $0x10] sm:$0xff]
  %v17 = vld [vmem:[%s0 + $0x18] sm:$0xff]
  %v18 = vld [vmem:[%s0 + $0x20] sm:$0xff]
  %v19 = vld [vmem:[%s0 + $0x28] sm:$0xff]
  %v20 = vld [vmem:[%s0 + $0x30] sm:$0xff]
  %v21 = vld [vmem:[%s0 + $0x38] sm:$0xff]
  %v22 = vld [vmem:[%s0 + $0x40] sm:$0xff]
  %v23 = vld [vmem:[%s0 + $0x48] sm:$0xff]
  %v24 = vld [vmem:[%s0 + $0x50] sm:$0xff]
  %v25 = vld [vmem:[%s0 + $0x58] sm:$0xff]
  %v26 = vld [vmem:[%s0 + $0x60] sm:$0xff]
  %v27 = vld [vmem:[%s0 + $0x68] sm:$0xff]
  %v28 = vld [vmem:[%s0 + $0x70] sm:$0xff]
  %v29 = vld [vmem:[%s0 + $0x78] sm:$0xff]
  %v30 = vld [vmem:[%s1] sm:$0xff]
  %32 = vset.pattern.permute.xlu0 0
  %33 = vperm.xlu0 %32, %v30
  %v34 = vpop.permute.xlu0 %33
  %v36 = vmul.f32 %v14, %v34
  %v37 = vmul.f32 %v15, %v34
  %v38 = vmul.f32 %v16, %v34
  %v39 = vmul.f32 %v17, %v34
  %v40 = vmul.f32 %v18, %v34
  %v41 = vmul.f32 %v19, %v34
  %v42 = vmul.f32 %v20, %v34
  %v43 = vmul.f32 %v21, %v34
  %v44 = vmul.f32 %v22, %v34
  %v45 = vmul.f32 %v23, %v34
  %v46 = vmul.f32 %v24, %v34
  %v47 = vmul.f32 %v25, %v34
  %v48 = vmul.f32 %v26, %v34
  %v49 = vmul.f32 %v27, %v34
  %v50 = vmul.f32 %v28, %v34
  %v51 = vmul.f32 %v29, %v34
  %v52 = vld [vmem:[%s2] sm:$0xff]
  %54 = vset.pattern.permute.xlu0 0
  %55 = vperm.xlu0 %54, %v52
  %v56 = vpop.permute.xlu0 %55
  %v58 = vadd.f32 %v36, %v56
  %v59 = vadd.f32 %v37, %v56
  %v60 = vadd.f32 %v38, %v56
  %v61 = vadd.f32 %v39, %v56
  %v62 = vadd.f32 %v40, %v56
  %v63 = vadd.f32 %v41, %v56
  %v64 = vadd.f32 %v42, %v56
  %v65 = vadd.f32 %v43, %v56
  %v66 = vadd.f32 %v44, %v56
  %v67 = vadd.f32 %v45, %v56
  %v68 = vadd.f32 %v46, %v56
  %v69 = vadd.f32 %v47, %v56
  %v70 = vadd.f32 %v48, %v56
  %v71 = vadd.f32 %v49, %v56
  %v72 = vadd.f32 %v50, %v56
  %v73 = vadd.f32 %v51, %v56
  %74 = vst [vmem:[%s3] sm:$0xff] %v58
  %75 = vst [vmem:[%s3 + $0x8] sm:$0xff] %v59
  %76 = vst [vmem:[%s3 + $0x10] sm:$0xff] %v60
  %77 = vst [vmem:[%s3 + $0x18] sm:$0xff] %v61
  %78 = vst [vmem:[%s3 + $0x20] sm:$0xff] %v62
  %79 = vst [vmem:[%s3 + $0x28] sm:$0xff] %v63
  %80 = vst [vmem:[%s3 + $0x30] sm:$0xff] %v64
  %81 = vst [vmem:[%s3 + $0x38] sm:$0xff] %v65
  %82 = vst [vmem:[%s3 + $0x40] sm:$0xff] %v66
  %83 = vst [vmem:[%s3 + $0x48] sm:$0xff] %v67
  %84 = vst [vmem:[%s3 + $0x50] sm:$0xff] %v68
  %85 = vst [vmem:[%s3 + $0x58] sm:$0xff] %v69
  %86 = vst [vmem:[%s3 + $0x60] sm:$0xff] %v70
  %87 = vst [vmem:[%s3 + $0x68] sm:$0xff] %v71
  %88 = vst [vmem:[%s3 + $0x70] sm:$0xff] %v72
  %89 = vst [vmem:[%s3 + $0x78] sm:$0xff] %v73
  // Predicated region
  $region14: #{unit_tcn_forward.3} parent=0 // pred_check
    _
  $region15: #{unit_tcn_forward.3} parent=0 // pred_check_branch
    %91 = sbr.rel (0) target = $region17
  $region16: #{unit_tcn_forward.3} parent=0 // pred_region
    _
  $region17: #{unit_tcn_forward.3} parent=0 // pred_fallthru
    _
  // Predicated region
  $region18: #{unit_tcn_forward.3} parent=0 // pred_check
    _
  $region19: #{unit_tcn_forward.3} parent=0 // pred_check_branch
    %93 = sbr.rel (0) target = $region21
  $region20: #{unit_tcn_forward.3} parent=0 // pred_region
    _
  $region21: #{unit_tcn_forward.3} parent=0 // pred_fallthru
    _

// kernel: unit_tcn_forward.2
$region0: #{unit_tcn_forward.2}
  #allocation0 [shape = 'u32[]', space=smem, size = 0x4, offset = 0x4, fixed_abs, tag = 'smem constant byte address 0x4 - core index']
  #allocation1 [shape = 'u32[144,128]{1,0:T(1,128)}', space=vmem, size = 0x12000, scoped, tag = 'internal scratch']
  %s0 = inlined_call_operand.vmem [shape: f32[1,1,4,3072], index: 0, kind: input, shape index: {}]
  %s1 = inlined_call_operand.vmem [shape: f32[9,8,4], index: 1, kind: input, shape index: {}]
  %s2 = inlined_call_operand.vmem [shape: f32[8,1], index: 2, kind: input, shape index: {}]
  %s3 = inlined_call_operand.vmem [shape: f32[1,8,2048], index: 3, kind: output, shape index: {0}]
  %s4 = inlined_call_operand.vmem [shape: f32[1,1,8,2], index: 4, kind: output, shape index: {1}]
  %5 = xla_tuple %s3, %s4
  %s6 = sld [smem:[#allocation0]]
  $region30: #{unit_tcn_forward.2} parent=0
    _
  %s8 = ssub.s32 1, %s6
  %s9 = scalar_select 0, %s8, %s6
  // Predicated region
  $region2: #{unit_tcn_forward.2} parent=0 // pred_check
    _
  $region3: #{unit_tcn_forward.2} parent=0 // pred_check_branch
    %11 = sbr.rel (0) target = $region5
  $region4: #{unit_tcn_forward.2} parent=0 // pred_region
    _
  $region5: #{unit_tcn_forward.2} parent=0 // pred_fallthru
    _
  // Predicated region
  $region6: #{unit_tcn_forward.2} parent=0 // pred_check
    _
  $region7: #{unit_tcn_forward.2} parent=0 // pred_check_branch
    %13 = sbr.rel (0) target = $region9
  $region8: #{unit_tcn_forward.2} parent=0 // pred_region
    _
  $region9: #{unit_tcn_forward.2} parent=0 // pred_fallthru
    _
  // Predicated region
  $region10: #{unit_tcn_forward.2} parent=0 // pred_check
    _
  $region11: #{unit_tcn_forward.2} parent=0 // pred_check_branch
    %15 = sbr.rel (0) target = $region13
  $region12: #{unit_tcn_forward.2} parent=0 // pred_region
    _
  $region13: #{unit_tcn_forward.2} parent=0 // pred_fallthru
    _
  %v16 = vld [vmem:[%s0] sm:$0xff]
  %v17 = vld [vmem:[%s0 + $0x8] sm:$0xff]
  %v18 = vld [vmem:[%s0 + $0x10] sm:$0xff]
  %v19 = vld [vmem:[%s0 + $0x18] sm:$0xff]
  %v20 = vld [vmem:[%s0 + $0x20] sm:$0xff]
  %v21 = vld [vmem:[%s0 + $0x28] sm:$0xff]
  %v22 = vld [vmem:[%s0 + $0x30] sm:$0xff]
  %v23 = vld [vmem:[%s0 + $0x38] sm:$0xff]
  %v24 = vld [vmem:[%s1] sm:$0xff]
  %v25 = vld [vmem:[%s0 + $0x4] sm:$0xff]
  %v26 = vld [vmem:[%s0 + $0xc] sm:$0xff]
  %v27 = vld [vmem:[%s0 + $0x14] sm:$0xff]
  %v28 = vld [vmem:[%s0 + $0x1c] sm:$0xff]
  %v29 = vld [vmem:[%s0 + $0x24] sm:$0xff]
  %v30 = vld [vmem:[%s0 + $0x2c] sm:$0xff]
  %v31 = vld [vmem:[%s0 + $0x34] sm:$0xff]
  %v32 = vld [vmem:[%s0 + $0x3c] sm:$0xff]
  %s33 = scalar_lea.vmem %s1, 8
  %v34 = vld [vmem:[%s33] sm:$0xff]
  %v43 = vcombine.high %v25, %v25
  %v44 = vcombine.high %v26, %v26
  %v45 = vcombine.high %v27, %v27
  %v46 = vcombine.high %v28, %v28
  %v47 = vcombine.high %v29, %v29
  %v48 = vcombine.high %v30, %v30
  %v49 = vcombine.high %v31, %v31
  %v50 = vcombine.high %v32, %v32
  %vm51 = vcmask 31744
  %v53 = vsel %vm51, %v34, 0
  %vm55 = vcmask 1043456
  %v56 = vsel %vm55, %v25, 0
  %v58 = vsel %vm55, %v43, 0
  %v60 = vsel %vm55, %v26, 0
  %v62 = vsel %vm55, %v44, 0
  %v64 = vsel %vm55, %v27, 0
  %v66 = vsel %vm55, %v45, 0
  %v68 = vsel %vm55, %v28, 0
  %v70 = vsel %vm55, %v46, 0
  %v72 = vsel %vm55, %v29, 0
  %v74 = vsel %vm55, %v47, 0
  %v76 = vsel %vm55, %v30, 0
  %v78 = vsel %vm55, %v48, 0
  %v80 = vsel %vm55, %v31, 0
  %v82 = vsel %vm55, %v49, 0
  %v84 = vsel %vm55, %v32, 0
  %v86 = vsel %vm55, %v50, 0
  %88 = vmatprep.subr.mxu0 %v58
  %89 = vmatpush1.msra.mxu0 %v56
  %90 = vmatprep.subr.mxu0 0.0
  %91 = vmatpush1.msra.mxu0 0.0
  %92 = vmatprep.subr.mxu0 0.0
  %93 = vmatpush1.msra.mxu0 0.0
  %94 = vmatprep.subr.mxu0 0.0
  %95 = vmatpush1.msra.mxu0 0.0
  %96 = vmatprep.subr.mxu0 0.0
  %97 = vmatpush1.msra.mxu0 0.0
  %98 = vmatprep.subr.mxu0 0.0
  %99 = vmatpush1.msra.mxu0 0.0
  %100 = vmatprep.subr.mxu0 0.0
  %101 = vmatpush1.msra.mxu0 0.0
  %102 = vmatprep.subr.mxu0 0.0
  %103 = vmatpush1.msra.mxu0 0.0
  %104 = vmatprep.subr.mxu0 0.0
  %105 = vmatpush1.msra.mxu0 0.0
  %106 = vmatprep.subr.mxu0 0.0
  %107 = vmatpush1.msra.mxu0 0.0
  %108 = vmatprep.subr.mxu0 0.0
  %109 = vmatpush1.msra.mxu0 0.0
  %110 = vmatprep.subr.mxu0 0.0
  %111 = vmatpush1.msra.mxu0 0.0
  %112 = vmatprep.subr.mxu0 0.0
  %113 = vmatpush1.msra.mxu0 0.0
  %114 = vmatprep.subr.mxu0 0.0
  %115 = vmatpush1.msra.mxu0 0.0
  %116 = vmatprep.subr.mxu0 0.0
  %117 = vmatpush1.msra.mxu0 0.0
  %118 = vmatprep.subr.mxu0 0.0
  %119 = vmatpush1.msra.mxu0 0.0
  %120 = vmatprep.subr.mxu0 0.0
  %121 = vmatpush1.msra.mxu0 0.0
  %122 = vmatprep.subr.mxu0 0.0
  %123 = vmatpush1.msra.mxu0 0.0
  %124 = vmatprep.subr.mxu0 0.0
  %125 = vmatpush1.msra.mxu0 0.0
  %126 = vmatprep.subr.mxu0 0.0
  %127 = vmatpush1.msra.mxu0 0.0
  %128 = vmatprep.subr.mxu0 0.0
  %129 = vmatpush1.msra.mxu0 0.0
  %130 = vmatprep.subr.mxu0 0.0
  %131 = vmatpush1.msra.mxu0 0.0
  %132 = vmatprep.subr.mxu0 0.0
  %133 = vmatpush1.msra.mxu0 0.0
  %134 = vmatprep.subr.mxu0 0.0
  %135 = vmatpush1.msra.mxu0 0.0
  %136 = vmatprep.subr.mxu0 0.0
  %137 = vmatpush1.msra.mxu0 0.0
  %138 = vmatprep.subr.mxu0 0.0
  %139 = vmatpush1.msra.mxu0 0.0
  %140 = vmatprep.subr.mxu0 0.0
  %141 = vmatpush1.msra.mxu0 0.0
  %142 = vmatprep.subr.mxu0 0.0
  %143 = vmatpush1.msra.mxu0 0.0
  %144 = vmatprep.subr.mxu0 0.0
  %145 = vmatpush1.msra.mxu0 0.0
  %146 = vmatprep.subr.mxu0 0.0
  %147 = vmatpush1.msra.mxu0 0.0
  %148 = vmatprep.subr.mxu0 0.0
  %149 = vmatpush1.msra.mxu0 0.0
  %150 = vmatprep.subr.mxu0 0.0
  %151 = vmatpush1.msra.mxu0 0.0
  %152 = vmatprep.mubr.f32.mxu0 0.0
  %153 = vmatmul.mubr.f32.gmra.mrb[0].mxu0 %v53
  %v154 = vpop.f32.mrb[0].mxu0
  %v155 = vadd.f32 0.0, %v154
  %v156 = vpop.f32.mrb[0].mxu0
  %v157 = vadd.f32 0.0, %v156
  %158 = vdwg.mxu0
  %159 = vmatprep.subr.mxu0 %v62
  %160 = vmatpush1.msra.mxu0 %v60
  %161 = vmatprep.subr.mxu0 0.0
  %162 = vmatpush1.msra.mxu0 0.0
  %163 = vmatprep.subr.mxu0 0.0
  %164 = vmatpush1.msra.mxu0 0.0
  %165 = vmatprep.subr.mxu0 0.0
  %166 = vmatpush1.msra.mxu0 0.0
  %167 = vmatprep.subr.mxu0 0.0
  %168 = vmatpush1.msra.mxu0 0.0
  %169 = vmatprep.subr.mxu0 0.0
  %170 = vmatpush1.msra.mxu0 0.0
  %171 = vmatprep.subr.mxu0 0.0
  %172 = vmatpush1.msra.mxu0 0.0
  %173 = vmatprep.subr.mxu0 0.0
  %174 = vmatpush1.msra.mxu0 0.0
  %175 = vmatprep.subr.mxu0 0.0
  %176 = vmatpush1.msra.mxu0 0.0
  %177 = vmatprep.subr.mxu0 0.0
  %178 = vmatpush1.msra.mxu0 0.0
  %179 = vmatprep.subr.mxu0 0.0
  %180 = vmatpush1.msra.mxu0 0.0
  %181 = vmatprep.subr.mxu0 0.0
  %182 = vmatpush1.msra.mxu0 0.0
  %183 = vmatprep.subr.mxu0 0.0
  %184 = vmatpush1.msra.mxu0 0.0
  %185 = vmatprep.subr.mxu0 0.0
  %186 = vmatpush1.msra.mxu0 0.0
  %187 = vmatprep.subr.mxu0 0.0
  %188 = vmatpush1.msra.mxu0 0.0
  %189 = vmatprep.subr.mxu0 0.0
  %190 = vmatpush1.msra.mxu0 0.0
  %191 = vmatprep.subr.mxu0 0.0
  %192 = vmatpush1.msra.mxu0 0.0
  %193 = vmatprep.subr.mxu0 0.0
  %194 = vmatpush1.msra.mxu0 0.0
  %195 = vmatprep.subr.mxu0 0.0
  %196 = vmatpush1.msra.mxu0 0.0
  %197 = vmatprep.subr.mxu0 0.0
  %198 = vmatpush1.msra.mxu0 0.0
  %199 = vmatprep.subr.mxu0 0.0
  %200 = vmatpush1.msra.mxu0 0.0
  %201 = vmatprep.subr.mxu0 0.0
  %202 = vmatpush1.msra.mxu0 0.0
  %203 = vmatprep.subr.mxu0 0.0
  %204 = vmatpush1.msra.mxu0 0.0
  %205 = vmatprep.subr.mxu0 0.0
  %206 = vmatpush1.msra.mxu0 0.0
  %207 = vmatprep.subr.mxu0 0.0
  %208 = vmatpush1.msra.mxu0 0.0
  %209 = vmatprep.subr.mxu0 0.0
  %210 = vmatpush1.msra.mxu0 0.0
  %211 = vmatprep.subr.mxu0 0.0
  %212 = vmatpush1.msra.mxu0 0.0
  %213 = vmatprep.subr.mxu0 0.0
  %214 = vmatpush1.msra.mxu0 0.0
  %215 = vmatprep.subr.mxu0 0.0
  %216 = vmatpush1.msra.mxu0 0.0
  %217 = vmatprep.subr.mxu0 0.0
  %218 = vmatpush1.msra.mxu0 0.0
  %219 = vmatprep.subr.mxu0 0.0
  %220 = vmatpush1.msra.mxu0 0.0
  %221 = vmatprep.subr.mxu0 0.0
  %222 = vmatpush1.msra.mxu0 0.0
  %223 = vmatprep.mubr.f32.mxu0 0.0
  %224 = vmatmul.mubr.f32.gmra.mrb[0].mxu0 %v53
  %v225 = vpop.f32.mrb[0].mxu0
  %v226 = vadd.f32 0.0, %v225
  %v227 = vpop.f32.mrb[0].mxu0
  %v228 = vadd.f32 0.0, %v227
  %229 = vdwg.mxu0
  %230 = vmatprep.subr.mxu0 %v66
  %231 = vmatpush1.msra.mxu0 %v64
  %232 = vmatprep.subr.mxu0 0.0
  %233 = vmatpush1.msra.mxu0 0.0
  %234 = vmatprep.subr.mxu0 0.0
  %235 = vmatpush1.msra.mxu0 0.0
  %236 = vmatprep.subr.mxu0 0.0
  %237 = vmatpush1.msra.mxu0 0.0
  %238 = vmatprep.subr.mxu0 0.0
  %239 = vmatpush1.msra.mxu0 0.0
  %240 = vmatprep.subr.mxu0 0.0
  %241 = vmatpush1.msra.mxu0 0.0
  %242 = vmatprep.subr.mxu0 0.0
  %243 = vmatpush1.msra.mxu0 0.0
  %244 = vmatprep.subr.mxu0 0.0
  %245 = vmatpush1.msra.mxu0 0.0
  %246 = vmatprep.subr.mxu0 0.0
  %247 = vmatpush1.msra.mxu0 0.0
  %248 = vmatprep.subr.mxu0 0.0
  %249 = vmatpush1.msra.mxu0 0.0
  %250 = vmatprep.subr.mxu0 0.0
  %251 = vmatpush1.msra.mxu0 0.0
  %252 = vmatprep.subr.mxu0 0.0
  %253 = vmatpush1.msra.mxu0 0.0
  %254 = vmatprep.subr.mxu0 0.0
  %255 = vmatpush1.msra.mxu0 0.0
  %256 = vmatprep.subr.mxu0 0.0
  %257 = vmatpush1.msra.mxu0 0.0
  %258 = vmatprep.subr.mxu0 0.0
  %259 = vmatpush1.msra.mxu0 0.0
  %260 = vmatprep.subr.mxu0 0.0
  %261 = vmatpush1.msra.mxu0 0.0
  %262 = vmatprep.subr.mxu0 0.0
  %263 = vmatpush1.msra.mxu0 0.0
  %264 = vmatprep.subr.mxu0 0.0
  %265 = vmatpush1.msra.mxu0 0.0
  %266 = vmatprep.subr.mxu0 0.0
  %267 = vmatpush1.msra.mxu0 0.0
  %268 = vmatprep.subr.mxu0 0.0
  %269 = vmatpush1.msra.mxu0 0.0
  %270 = vmatprep.subr.mxu0 0.0
  %271 = vmatpush1.msra.mxu0 0.0
  %272 = vmatprep.subr.mxu0 0.0
  %273 = vmatpush1.msra.mxu0 0.0
  %274 = vmatprep.subr.mxu0 0.0
  %275 = vmatpush1.msra.mxu0 0.0
  %276 = vmatprep.subr.mxu0 0.0
  %277 = vmatpush1.msra.mxu0 0.0
  %278 = vmatprep.subr.mxu0 0.0
  %279 = vmatpush1.msra.mxu0 0.0
  %280 = vmatprep.subr.mxu0 0.0
  %281 = vmatpush1.msra.mxu0 0.0
  %282 = vmatprep.subr.mxu0 0.0
  %283 = vmatpush1.msra.mxu0 0.0
  %284 = vmatprep.subr.mxu0 0.0
  %285 = vmatpush1.msra.mxu0 0.0
  %286 = vmatprep.subr.mxu0 0.0
  %287 = vmatpush1.msra.mxu0 0.0
  %288 = vmatprep.subr.mxu0 0.0
  %289 = vmatpush1.msra.mxu0 0.0
  %290 = vmatprep.subr.mxu0 0.0
  %291 = vmatpush1.msra.mxu0 0.0
  %292 = vmatprep.subr.mxu0 0.0
  %293 = vmatpush1.msra.mxu0 0.0
  %294 = vmatprep.mubr.f32.mxu0 0.0
  %295 = vmatmul.mubr.f32.gmra.mrb[0].mxu0 %v53
  %v296 = vpop.f32.mrb[0].mxu0
  %v297 = vadd.f32 0.0, %v296
  %v298 = vpop.f32.mrb[0].mxu0
  %v299 = vadd.f32 0.0, %v298
  %300 = vdwg.mxu0
  %301 = vmatprep.subr.mxu0 %v70
  %302 = vmatpush1.msra.mxu0 %v68
  %303 = vmatprep.subr.mxu0 0.0
  %304 = vmatpush1.msra.mxu0 0.0
  %305 = vmatprep.subr.mxu0 0.0
  %306 = vmatpush1.msra.mxu0 0.0
  %307 = vmatprep.subr.mxu0 0.0
  %308 = vmatpush1.msra.mxu0 0.0
  %309 = vmatprep.subr.mxu0 0.0
  %310 = vmatpush1.msra.mxu0 0.0
  %311 = vmatprep.subr.mxu0 0.0
  %312 = vmatpush1.msra.mxu0 0.0
  %313 = vmatprep.subr.mxu0 0.0
  %314 = vmatpush1.msra.mxu0 0.0
  %315 = vmatprep.subr.mxu0 0.0
  %316 = vmatpush1.msra.mxu0 0.0
  %317 = vmatprep.subr.mxu0 0.0
  %318 = vmatpush1.msra.mxu0 0.0
  %319 = vmatprep.subr.mxu0 0.0
  %320 = vmatpush1.msra.mxu0 0.0
  %321 = vmatprep.subr.mxu0 0.0
  %322 = vmatpush1.msra.mxu0 0.0
  %323 = vmatprep.subr.mxu0 0.0
  %324 = vmatpush1.msra.mxu0 0.0
  %325 = vmatprep.subr.mxu0 0.0
  %326 = vmatpush1.msra.mxu0 0.0
  %327 = vmatprep.subr.mxu0 0.0
  %328 = vmatpush1.msra.mxu0 0.0
  %329 = vmatprep.subr.mxu0 0.0
  %330 = vmatpush1.msra.mxu0 0.0
  %331 = vmatprep.subr.mxu0 0.0
  %332 = vmatpush1.msra.mxu0 0.0
  %333 = vmatprep.subr.mxu0 0.0
  %334 = vmatpush1.msra.mxu0 0.0
  %335 = vmatprep.subr.mxu0 0.0
  %336 = vmatpush1.msra.mxu0 0.0
  %337 = vmatprep.subr.mxu0 0.0
  %338 = vmatpush1.msra.mxu0 0.0
  %339 = vmatprep.subr.mxu0 0.0
  %340 = vmatpush1.msra.mxu0 0.0
  %341 = vmatprep.subr.mxu0 0.0
  %342 = vmatpush1.msra.mxu0 0.0
  %343 = vmatprep.subr.mxu0 0.0
  %344 = vmatpush1.msra.mxu0 0.0
  %345 = vmatprep.subr.mxu0 0.0
  %346 = vmatpush1.msra.mxu0 0.0
  %347 = vmatprep.subr.mxu0 0.0
  %348 = vmatpush1.msra.mxu0 0.0
  %349 = vmatprep.subr.mxu0 0.0
  %350 = vmatpush1.msra.mxu0 0.0
  %351 = vmatprep.subr.mxu0 0.0
  %352 = vmatpush1.msra.mxu0 0.0
  %353 = vmatprep.subr.mxu0 0.0
  %354 = vmatpush1.msra.mxu0 0.0
  %355 = vmatprep.subr.mxu0 0.0
  %356 = vmatpush1.msra.mxu0 0.0
  %357 = vmatprep.subr.mxu0 0.0
  %358 = vmatpush1.msra.mxu0 0.0
  %359 = vmatprep.subr.mxu0 0.0
  %360 = vmatpush1.msra.mxu0 0.0
  %361 = vmatprep.subr.mxu0 0.0
  %362 = vmatpush1.msra.mxu0 0.0
  %363 = vmatprep.subr.mxu0 0.0
  %364 = vmatpush1.msra.mxu0 0.0
  %365 = vmatprep.mubr.f32.mxu0 0.0
  %366 = vmatmul.mubr.f32.gmra.mrb[0].mxu0 %v53
  %v367 = vpop.f32.mrb[0].mxu0
  %v368 = vadd.f32 0.0, %v367
  %v369 = vpop.f32.mrb[0].mxu0
  %v370 = vadd.f32 0.0, %v369
  %371 = vdwg.mxu0
  %372 = vmatprep.subr.mxu0 %v74
  %373 = vmatpush1.msra.mxu0 %v72
  %374 = vmatprep.subr.mxu0 0.0
  %375 = vmatpush1.msra.mxu0 0.0
  %376 = vmatprep.subr.mxu0 0.0
  %377 = vmatpush1.msra.mxu0 0.0
  %378 = vmatprep.subr.mxu0 0.0
  %379 = vmatpush1.msra.mxu0 0.0
  %380 = vmatprep.subr.mxu0 0.0
  %381 = vmatpush1.msra.mxu0 0.0
  %382 = vmatprep.subr.mxu0 0.0
  %383 = vmatpush1.msra.mxu0 0.0
  %384 = vmatprep.subr.mxu0 0.0
  %385 = vmatpush1.msra.mxu0 0.0
  %386 = vmatprep.subr.mxu0 0.0
  %387 = vmatpush1.msra.mxu0 0.0
  %388 = vmatprep.subr.mxu0 0.0
  %389 = vmatpush1.msra.mxu0 0.0
  %390 = vmatprep.subr.mxu0 0.0
  %391 = vmatpush1.msra.mxu0 0.0
  %392 = vmatprep.subr.mxu0 0.0
  %393 = vmatpush1.msra.mxu0 0.0
  %394 = vmatprep.subr.mxu0 0.0
  %395 = vmatpush1.msra.mxu0 0.0
  %396 = vmatprep.subr.mxu0 0.0
  %397 = vmatpush1.msra.mxu0 0.0
  %398 = vmatprep.subr.mxu0 0.0
  %399 = vmatpush1.msra.mxu0 0.0
  %400 = vmatprep.subr.mxu0 0.0
  %401 = vmatpush1.msra.mxu0 0.0
  %402 = vmatprep.subr.mxu0 0.0
  %403 = vmatpush1.msra.mxu0 0.0
  %404 = vmatprep.subr.mxu0 0.0
  %405 = vmatpush1.msra.mxu0 0.0
  %406 = vmatprep.subr.mxu0 0.0
  %407 = vmatpush1.msra.mxu0 0.0
  %408 = vmatprep.subr.mxu0 0.0
  %409 = vmatpush1.msra.mxu0 0.0
  %410 = vmatprep.subr.mxu0 0.0
  %411 = vmatpush1.msra.mxu0 0.0
  %412 = vmatprep.subr.mxu0 0.0
  %413 = vmatpush1.msra.mxu0 0.0
  %414 = vmatprep.subr.mxu0 0.0
  %415 = vmatpush1.msra.mxu0 0.0
  %416 = vmatprep.subr.mxu0 0.0
  %417 = vmatpush1.msra.mxu0 0.0
  %418 = vmatprep.subr.mxu0 0.0
  %419 = vmatpush1.msra.mxu0 0.0
  %420 = vmatprep.subr.mxu0 0.0
  %421 = vmatpush1.msra.mxu0 0.0
  %422 = vmatprep.subr.mxu0 0.0
  %423 = vmatpush1.msra.mxu0 0.0
  %424 = vmatprep.subr.mxu0 0.0
  %425 = vmatpush1.msra.mxu0 0.0
  %426 = vmatprep.subr.mxu0 0.0
  %427 = vmatpush1.msra.mxu0 0.0
  %428 = vmatprep.subr.mxu0 0.0
  %429 = vmatpush1.msra.mxu0 0.0
  %430 = vmatprep.subr.mxu0 0.0
  %431 = vmatpush1.msra.mxu0 0.0
  %432 = vmatprep.subr.mxu0 0.0
  %433 = vmatpush1.msra.mxu0 0.0
  %434 = vmatprep.subr.mxu0 0.0
  %435 = vmatpush1.msra.mxu0 0.0
  %436 = vmatprep.mubr.f32.mxu0 0.0
  %437 = vmatmul.mubr.f32.gmra.mrb[0].mxu0 %v53
  %v438 = vpop.f32.mrb[0].mxu0
  %v439 = vadd.f32 0.0, %v438
  %v440 = vpop.f32.mrb[0].mxu0
  %v441 = vadd.f32 0.0, %v440
  %442 = vdwg.mxu0
  %443 = vmatprep.subr.mxu0 %v78
  %444 = vmatpush1.msra.mxu0 %v76
  %445 = vmatprep.subr.mxu0 0.0
  %446 = vmatpush1.msra.mxu0 0.0
  %447 = vmatprep.subr.mxu0 0.0
  %448 = vmatpush1.msra.mxu0 0.0
  %449 = vmatprep.subr.mxu0 0.0
  %450 = vmatpush1.msra.mxu0 0.0
  %451 = vmatprep.subr.mxu0 0.0
  %452 = vmatpush1.msra.mxu0 0.0
  %453 = vmatprep.subr.mxu0 0.0
  %454 = vmatpush1.msra.mxu0 0.0
  %455 = vmatprep.subr.mxu0 0.0
  %456 = vmatpush1.msra.mxu0 0.0
  %457 = vmatprep.subr.mxu0 0.0
  %458 = vmatpush1.msra.mxu0 0.0
  %459 = vmatprep.subr.mxu0 0.0
  %460 = vmatpush1.msra.mxu0 0.0
  %461 = vmatprep.subr.mxu0 0.0
  %462 = vmatpush1.msra.mxu0 0.0
  %463 = vmatprep.subr.mxu0 0.0
  %464 = vmatpush1.msra.mxu0 0.0
  %465 = vmatprep.subr.mxu0 0.0
  %466 = vmatpush1.msra.mxu0 0.0
  %467 = vmatprep.subr.mxu0 0.0
  %468 = vmatpush1.msra.mxu0 0.0
  %469 = vmatprep.subr.mxu0 0.0
  %470 = vmatpush1.msra.mxu0 0.0
  %471 = vmatprep.subr.mxu0 0.0
  %472 = vmatpush1.msra.mxu0 0.0
  %473 = vmatprep.subr.mxu0 0.0
  %474 = vmatpush1.msra.mxu0 0.0
  %475 = vmatprep.subr.mxu0 0.0
  %476 = vmatpush1.msra.mxu0 0.0
  %477 = vmatprep.subr.mxu0 0.0
  %478 = vmatpush1.msra.mxu0 0.0
  %479 = vmatprep.subr.mxu0 0.0
  %480 = vmatpush1.msra.mxu0 0.0
  %481 = vmatprep.subr.mxu0 0.0
  %482 = vmatpush1.msra.mxu0 0.0
  %483 = vmatprep.subr.mxu0 0.0
  %484 = vmatpush1.msra.mxu0 0.0
  %485 = vmatprep.subr.mxu0 0.0
  %486 = vmatpush1.msra.mxu0 0.0
  %487 = vmatprep.subr.mxu0 0.0
  %488 = vmatpush1.msra.mxu0 0.0
  %489 = vmatprep.subr.mxu0 0.0
  %490 = vmatpush1.msra.mxu0 0.0
  %491 = vmatprep.subr.mxu0 0.0
  %492 = vmatpush1.msra.mxu0 0.0
  %493 = vmatprep.subr.mxu0 0.0
  %494 = vmatpush1.msra.mxu0 0.0
  %495 = vmatprep.subr.mxu0 0.0
  %496 = vmatpush1.msra.mxu0 0.0
  %497 = vmatprep.subr.mxu0 0.0
  %498 = vmatpush1.msra.mxu0 0.0
  %499 = vmatprep.subr.mxu0 0.0
  %500 = vmatpush1.msra.mxu0 0.0
  %501 = vmatprep.subr.mxu0 0.0
  %502 = vmatpush1.msra.mxu0 0.0
  %503 = vmatprep.subr.mxu0 0.0
  %504 = vmatpush1.msra.mxu0 0.0
  %505 = vmatprep.subr.mxu0 0.0
  %506 = vmatpush1.msra.mxu0 0.0
  %507 = vmatprep.mubr.f32.mxu0 0.0
  %508 = vmatmul.mubr.f32.gmra.mrb[0].mxu0 %v53
  %v509 = vpop.f32.mrb[0].mxu0
  %v510 = vadd.f32 0.0, %v509
  %v511 = vpop.f32.mrb[0].mxu0
  %v512 = vadd.f32 0.0, %v511
  %513 = vdwg.mxu0
  %514 = vmatprep.subr.mxu0 %v82
  %515 = vmatpush1.msra.mxu0 %v80
  %516 = vmatprep.subr.mxu0 0.0
  %517 = vmatpush1.msra.mxu0 0.0
  %518 = vmatprep.subr.mxu0 0.0
  %519 = vmatpush1.msra.mxu0 0.0
  %520 = vmatprep.subr.mxu0 0.0
  %521 = vmatpush1.msra.mxu0 0.0
  %522 = vmatprep.subr.mxu0 0.0
  %523 = vmatpush1.msra.mxu0 0.0
  %524 = vmatprep.subr.mxu0 0.0
  %525 = vmatpush1.msra.mxu0 0.0
  %526 = vmatprep.subr.mxu0 0.0
  %527 = vmatpush1.msra.mxu0 0.0
  %528 = vmatprep.subr.mxu0 0.0
  %529 = vmatpush1.msra.mxu0 0.0
  %530 = vmatprep.subr.mxu0 0.0
  %531 = vmatpush1.msra.mxu0 0.0
  %532 = vmatprep.subr.mxu0 0.0
  %533 = vmatpush1.msra.mxu0 0.0
  %534 = vmatprep.subr.mxu0 0.0
  %535 = vmatpush1.msra.mxu0 0.0
  %536 = vmatprep.subr.mxu0 0.0
  %537 = vmatpush1.msra.mxu0 0.0
  %538 = vmatprep.subr.mxu0 0.0
  %539 = vmatpush1.msra.mxu0 0.0
  %540 = vmatprep.subr.mxu0 0.0
  %541 = vmatpush1.msra.mxu0 0.0
  %542 = vmatprep.subr.mxu0 0.0
  %543 = vmatpush1.msra.mxu0 0.0
  %544 = vmatprep.subr.mxu0 0.0
  %545 = vmatpush1.msra.mxu0 0.0
  %546 = vmatprep.subr.mxu0 0.0
  %547 = vmatpush1.msra.mxu0 0.0
  %548 = vmatprep.subr.mxu0 0.0
  %549 = vmatpush1.msra.mxu0 0.0
  %550 = vmatprep.subr.mxu0 0.0
  %551 = vmatpush1.msra.mxu0 0.0
  %552 = vmatprep.subr.mxu0 0.0
  %553 = vmatpush1.msra.mxu0 0.0
  %554 = vmatprep.subr.mxu0 0.0
  %555 = vmatpush1.msra.mxu0 0.0
  %556 = vmatprep.subr.mxu0 0.0
  %557 = vmatpush1.msra.mxu0 0.0
  %558 = vmatprep.subr.mxu0 0.0
  %559 = vmatpush1.msra.mxu0 0.0
  %560 = vmatprep.subr.mxu0 0.0
  %561 = vmatpush1.msra.mxu0 0.0
  %562 = vmatprep.subr.mxu0 0.0
  %563 = vmatpush1.msra.mxu0 0.0
  %564 = vmatprep.subr.mxu0 0.0
  %565 = vmatpush1.msra.mxu0 0.0
  %566 = vmatprep.subr.mxu0 0.0
  %567 = vmatpush1.msra.mxu0 0.0
  %568 = vmatprep.subr.mxu0 0.0
  %569 = vmatpush1.msra.mxu0 0.0
  %570 = vmatprep.subr.mxu0 0.0
  %571 = vmatpush1.msra.mxu0 0.0
  %572 = vmatprep.subr.mxu0 0.0
  %573 = vmatpush1.msra.mxu0 0.0
  %574 = vmatprep.subr.mxu0 0.0
  %575 = vmatpush1.msra.mxu0 0.0
  %576 = vmatprep.subr.mxu0 0.0
  %577 = vmatpush1.msra.mxu0 0.0
  %578 = vmatprep.mubr.f32.mxu0 0.0
  %579 = vmatmul.mubr.f32.gmra.mrb[0].mxu0 %v53
  %v580 = vpop.f32.mrb[0].mxu0
  %v581 = vadd.f32 0.0, %v580
  %v582 = vpop.f32.mrb[0].mxu0
  %v583 = vadd.f32 0.0, %v582
  %584 = vdwg.mxu0
  %585 = vmatprep.subr.mxu0 %v86
  %586 = vmatpush1.msra.mxu0 %v84
  %587 = vmatprep.subr.mxu0 0.0
  %588 = vmatpush1.msra.mxu0 0.0
  %589 = vmatprep.subr.mxu0 0.0
  %590 = vmatpush1.msra.mxu0 0.0
  %591 = vmatprep.subr.mxu0 0.0
  %592 = vmatpush1.msra.mxu0 0.0
  %593 = vmatprep.subr.mxu0 0.0
  %594 = vmatpush1.msra.mxu0 0.0
  %595 = vmatprep.subr.mxu0 0.0
  %596 = vmatpush1.msra.mxu0 0.0
  %597 = vmatprep.subr.mxu0 0.0
  %598 = vmatpush1.msra.mxu0 0.0
  %599 = vmatprep.subr.mxu0 0.0
  %600 = vmatpush1.msra.mxu0 0.0
  %601 = vmatprep.subr.mxu0 0.0
  %602 = vmatpush1.msra.mxu0 0.0
  %603 = vmatprep.subr.mxu0 0.0
  %604 = vmatpush1.msra.mxu0 0.0
  %605 = vmatprep.subr.mxu0 0.0
  %606 = vmatpush1.msra.mxu0 0.0
  %607 = vmatprep.subr.mxu0 0.0
  %608 = vmatpush1.msra.mxu0 0.0
  %609 = vmatprep.subr.mxu0 0.0
  %610 = vmatpush1.msra.mxu0 0.0
  %611 = vmatprep.subr.mxu0 0.0
  %612 = vmatpush1.msra.mxu0 0.0
  %613 = vmatprep.subr.mxu0 0.0
  %614 = vmatpush1.msra.mxu0 0.0
  %615 = vmatprep.subr.mxu0 0.0
  %616 = vmatpush1.msra.mxu0 0.0
  %617 = vmatprep.subr.mxu0 0.0
  %618 = vmatpush1.msra.mxu0 0.0
  %619 = vmatprep.subr.mxu0 0.0
  %620 = vmatpush1.msra.mxu0 0.0
  %621 = vmatprep.subr.mxu0 0.0
  %622 = vmatpush1.msra.mxu0 0.0
  %623 = vmatprep.subr.mxu0 0.0
  %624 = vmatpush1.msra.mxu0 0.0
  %625 = vmatprep.subr.mxu0 0.0
  %626 = vmatpush1.msra.mxu0 0.0
  %627 = vmatprep.subr.mxu0 0.0
  %628 = vmatpush1.msra.mxu0 0.0
  %629 = vmatprep.subr.mxu0 0.0
  %630 = vmatpush1.msra.mxu0 0.0
  %631 = vmatprep.subr.mxu0 0.0
  %632 = vmatpush1.msra.mxu0 0.0
  %633 = vmatprep.subr.mxu0 0.0
  %634 = vmatpush1.msra.mxu0 0.0
  %635 = vmatprep.subr.mxu0 0.0
  %636 = vmatpush1.msra.mxu0 0.0
  %637 = vmatprep.subr.mxu0 0.0
  %638 = vmatpush1.msra.mxu0 0.0
  %639 = vmatprep.subr.mxu0 0.0
  %640 = vmatpush1.msra.mxu0 0.0
  %641 = vmatprep.subr.mxu0 0.0
  %642 = vmatpush1.msra.mxu0 0.0
  %643 = vmatprep.subr.mxu0 0.0
  %644 = vmatpush1.msra.mxu0 0.0
  %645 = vmatprep.subr.mxu0 0.0
  %646 = vmatpush1.msra.mxu0 0.0
  %647 = vmatprep.subr.mxu0 0.0
  %648 = vmatpush1.msra.mxu0 0.0
  %649 = vmatprep.mubr.f32.mxu0 0.0
  %650 = vmatmul.mubr.f32.gmra.mrb[0].mxu0 %v53
  %v651 = vpop.f32.mrb[0].mxu0
  %v652 = vadd.f32 0.0, %v651
  %v653 = vpop.f32.mrb[0].mxu0
  %v654 = vadd.f32 0.0, %v653
  %655 = vdwg.mxu0
  %v664 = vcombine.high %v16, %v16
  %v665 = vcombine.high %v17, %v17
  %v666 = vcombine.high %v18, %v18
  %v667 = vcombine.high %v19, %v19
  %v668 = vcombine.high %v20, %v20
  %v669 = vcombine.high %v21, %v21
  %v670 = vcombine.high %v22, %v22
  %v671 = vcombine.high %v23, %v23
  %v673 = vsel %vm51, %v24, 0
  %v675 = vsel %vm55, %v16, 0
  %v677 = vsel %vm55, %v664, 0
  %v679 = vsel %vm55, %v17, 0
  %v681 = vsel %vm55, %v665, 0
  %v683 = vsel %vm55, %v18, 0
  %v685 = vsel %vm55, %v666, 0
  %v687 = vsel %vm55, %v19, 0
  %v689 = vsel %vm55, %v667, 0
  %v691 = vsel %vm55, %v20, 0
  %v693 = vsel %vm55, %v668, 0
  %v695 = vsel %vm55, %v21, 0
  %v697 = vsel %vm55, %v669, 0
  %v699 = vsel %vm55, %v22, 0
  %v701 = vsel %vm55, %v670, 0
  %v703 = vsel %vm55, %v23, 0
  %v705 = vsel %vm55, %v671, 0
  %707 = vmatprep.subr.mxu0 %v677
  %708 = vmatpush1.msra.mxu0 %v675
  %709 = vmatprep.subr.mxu0 0.0
  %710 = vmatpush1.msra.mxu0 0.0
  %711 = vmatprep.subr.mxu0 0.0
  %712 = vmatpush1.msra.mxu0 0.0
  %713 = vmatprep.subr.mxu0 0.0
  %714 = vmatpush1.msra.mxu0 0.0
  %715 = vmatprep.subr.mxu0 0.0
  %716 = vmatpush1.msra.mxu0 0.0
  %717 = vmatprep.subr.mxu0 0.0
  %718 = vmatpush1.msra.mxu0 0.0
  %719 = vmatprep.subr.mxu0 0.0
  %720 = vmatpush1.msra.mxu0 0.0
  %721 = vmatprep.subr.mxu0 0.0
  %722 = vmatpush1.msra.mxu0 0.0
  %723 = vmatprep.subr.mxu0 0.0
  %724 = vmatpush1.msra.mxu0 0.0
  %725 = vmatprep.subr.mxu0 0.0
  %726 = vmatpush1.msra.mxu0 0.0
  %727 = vmatprep.subr.mxu0 0.0
  %728 = vmatpush1.msra.mxu0 0.0
  %729 = vmatprep.subr.mxu0 0.0
  %730 = vmatpush1.msra.mxu0 0.0
  %731 = vmatprep.subr.mxu0 0.0
  %732 = vmatpush1.msra.mxu0 0.0
  %733 = vmatprep.subr.mxu0 0.0
  %734 = vmatpush1.msra.mxu0 0.0
  %735 = vmatprep.subr.mxu0 0.0
  %736 = vmatpush1.msra.mxu0 0.0
  %737 = vmatprep.subr.mxu0 0.0
  %738 = vmatpush1.msra.mxu0 0.0
  %739 = vmatprep.subr.mxu0 0.0
  %740 = vmatpush1.msra.mxu0 0.0
  %741 = vmatprep.subr.mxu0 0.0
  %742 = vmatpush1.msra.mxu0 0.0
  %743 = vmatprep.subr.mxu0 0.0
  %744 = vmatpush1.msra.mxu0 0.0
  %745 = vmatprep.subr.mxu0 0.0
  %746 = vmatpush1.msra.mxu0 0.0
  %747 = vmatprep.subr.mxu0 0.0
  %748 = vmatpush1.msra.mxu0 0.0
  %749 = vmatprep.subr.mxu0 0.0
  %750 = vmatpush1.msra.mxu0 0.0
  %751 = vmatprep.subr.mxu0 0.0
  %752 = vmatpush1.msra.mxu0 0.0
  %753 = vmatprep.subr.mxu0 0.0
  %754 = vmatpush1.msra.mxu0 0.0
  %755 = vmatprep.subr.mxu0 0.0
  %756 = vmatpush1.msra.mxu0 0.0
  %757 = vmatprep.subr.mxu0 0.0
  %758 = vmatpush1.msra.mxu0 0.0
  %759 = vmatprep.subr.mxu0 0.0
  %760 = vmatpush1.msra.mxu0 0.0
  %761 = vmatprep.subr.mxu0 0.0
  %762 = vmatpush1.msra.mxu0 0.0
  %763 = vmatprep.subr.mxu0 0.0
  %764 = vmatpush1.msra.mxu0 0.0
  %765 = vmatprep.subr.mxu0 0.0
  %766 = vmatpush1.msra.mxu0 0.0
  %767 = vmatprep.subr.mxu0 0.0
  %768 = vmatpush1.msra.mxu0 0.0
  %769 = vmatprep.subr.mxu0 0.0
  %770 = vmatpush1.msra.mxu0 0.0
  %771 = vmatprep.mubr.f32.mxu0 0.0
  %772 = vmatmul.mubr.f32.gmra.mrb[0].mxu0 %v673
  %v773 = vpop.f32.mrb[0].mxu0
  %v774 = vadd.f32 %v155, %v773
  %v775 = vpop.f32.mrb[0].mxu0
  %v776 = vadd.f32 %v157, %v775
  %777 = vdwg.mxu0
  %778 = vmatprep.subr.mxu0 %v681
  %779 = vmatpush1.msra.mxu0 %v679
  %780 = vmatprep.subr.mxu0 0.0
  %781 = vmatpush1.msra.mxu0 0.0
  %782 = vmatprep.subr.mxu0 0.0
  %783 = vmatpush1.msra.mxu0 0.0
  %784 = vmatprep.subr.mxu0 0.0
  %785 = vmatpush1.msra.mxu0 0.0
  %786 = vmatprep.subr.mxu0 0.0
  %787 = vmatpush1.msra.mxu0 0.0
  %788 = vmatprep.subr.mxu0 0.0
  %789 = vmatpush1.msra.mxu0 0.0
  %790 = vmatprep.subr.mxu0 0.0
  %791 = vmatpush1.msra.mxu0 0.0
  %792 = vmatprep.subr.mxu0 0.0
  %793 = vmatpush1.msra.mxu0 0.0
  %794 = vmatprep.subr.mxu0 0.0
  %795 = vmatpush1.msra.mxu0 0.0
  %796 = vmatprep.subr.mxu0 0.0
  %797 = vmatpush1.msra.mxu0 0.0
  %798 = vmatprep.subr.mxu0 0.0
  %799 = vmatpush1.msra.mxu0 0.0
  %800 = vmatprep.subr.mxu0 0.0
  %801 = vmatpush1.msra.mxu0 0.0
  %802 = vmatprep.subr.mxu0 0.0
  %803 = vmatpush1.msra.mxu0 0.0
  %804 = vmatprep.subr.mxu0 0.0
  %805 = vmatpush1.msra.mxu0 0.0
  %806 = vmatprep.subr.mxu0 0.0
  %807 = vmatpush1.msra.mxu0 0.0
  %808 = vmatprep.subr.mxu0 0.0
  %809 = vmatpush1.msra.mxu0 0.0
  %810 = vmatprep.subr.mxu0 0.0
  %811 = vmatpush1.msra.mxu0 0.0
  %812 = vmatprep.subr.mxu0 0.0
  %813 = vmatpush1.msra.mxu0 0.0
  %814 = vmatprep.subr.mxu0 0.0
  %815 = vmatpush1.msra.mxu0 0.0
  %816 = vmatprep.subr.mxu0 0.0
  %817 = vmatpush1.msra.mxu0 0.0
  %818 = vmatprep.subr.mxu0 0.0
  %819 = vmatpush1.msra.mxu0 0.0
  %820 = vmatprep.subr.mxu0 0.0
  %821 = vmatpush1.msra.mxu0 0.0
  %822 = vmatprep.subr.mxu0 0.0
  %823 = vmatpush1.msra.mxu0 0.0
  %824 = vmatprep.subr.mxu0 0.0
  %825 = vmatpush1.msra.mxu0 0.0
  %826 = vmatprep.subr.mxu0 0.0
  %827 = vmatpush1.msra.mxu0 0.0
  %828 = vmatprep.subr.mxu0 0.0
  %829 = vmatpush1.msra.mxu0 0.0
  %830 = vmatprep.subr.mxu0 0.0
  %831 = vmatpush1.msra.mxu0 0.0
  %832 = vmatprep.subr.mxu0 0.0
  %833 = vmatpush1.msra.mxu0 0.0
  %834 = vmatprep.subr.mxu0 0.0
  %835 = vmatpush1.msra.mxu0 0.0
  %836 = vmatprep.subr.mxu0 0.0
  %837 = vmatpush1.msra.mxu0 0.0
  %838 = vmatprep.subr.mxu0 0.0
  %839 = vmatpush1.msra.mxu0 0.0
  %840 = vmatprep.subr.mxu0 0.0
  %841 = vmatpush1.msra.mxu0 0.0
  %842 = vmatprep.mubr.f32.mxu0 0.0
  %843 = vmatmul.mubr.f32.gmra.mrb[0].mxu0 %v673
  %v844 = vpop.f32.mrb[0].mxu0
  %v845 = vadd.f32 %v226, %v844
  %v846 = vpop.f32.mrb[0].mxu0
  %v847 = vadd.f32 %v228, %v846
  %848 = vdwg.mxu0
  %849 = vmatprep.subr.mxu0 %v685
  %850 = vmatpush1.msra.mxu0 %v683
  %851 = vmatprep.subr.mxu0 0.0
  %852 = vmatpush1.msra.mxu0 0.0
  %853 = vmatprep.subr.mxu0 0.0
  %854 = vmatpush1.msra.mxu0 0.0
  %855 = vmatprep.subr.mxu0 0.0
  %856 = vmatpush1.msra.mxu0 0.0
  %857 = vmatprep.subr.mxu0 0.0
  %858 = vmatpush1.msra.mxu0 0.0
  %859 = vmatprep.subr.mxu0 0.0
  %860 = vmatpush1.msra.mxu0 0.0
  %861 = vmatprep.subr.mxu0 0.0
  %862 = vmatpush1.msra.mxu0 0.0
  %863 = vmatprep.subr.mxu0 0.0
  %864 = vmatpush1.msra.mxu0 0.0
  %865 = vmatprep.subr.mxu0 0.0
  %866 = vmatpush1.msra.mxu0 0.0
  %867 = vmatprep.subr.mxu0 0.0
  %868 = vmatpush1.msra.mxu0 0.0
  %869 = vmatprep.subr.mxu0 0.0
  %870 = vmatpush1.msra.mxu0 0.0
  %871 = vmatprep.subr.mxu0 0.0
  %872 = vmatpush1.msra.mxu0 0.0
  %873 = vmatprep.subr.mxu0 0.0
  %874 = vmatpush1.msra.mxu0 0.0
  %875 = vmatprep.subr.mxu0 0.0
  %876 = vmatpush1.msra.mxu0 0.0
  %877 = vmatprep.subr.mxu0 0.0
  %878 = vmatpush1.msra.mxu0 0.0
  %879 = vmatprep.subr.mxu0 0.0
  %880 = vmatpush1.msra.mxu0 0.0
  %881 = vmatprep.subr.mxu0 0.0
  %882 = vmatpush1.msra.mxu0 0.0
  %883 = vmatprep.subr.mxu0 0.0
  %884 = vmatpush1.msra.mxu0 0.0
  %885 = vmatprep.subr.mxu0 0.0
  %886 = vmatpush1.msra.mxu0 0.0
  %887 = vmatprep.subr.mxu0 0.0
  %888 = vmatpush1.msra.mxu0 0.0
  %889 = vmatprep.subr.mxu0 0.0
  %890 = vmatpush1.msra.mxu0 0.0
  %891 = vmatprep.subr.mxu0 0.0
  %892 = vmatpush1.msra.mxu0 0.0
  %893 = vmatprep.subr.mxu0 0.0
  %894 = vmatpush1.msra.mxu0 0.0
  %895 = vmatprep.subr.mxu0 0.0
  %896 = vmatpush1.msra.mxu0 0.0
  %897 = vmatprep.subr.mxu0 0.0
  %898 = vmatpush1.msra.mxu0 0.0
  %899 = vmatprep.subr.mxu0 0.0
  %900 = vmatpush1.msra.mxu0 0.0
  %901 = vmatprep.subr.mxu0 0.0
  %902 = vmatpush1.msra.mxu0 0.0
  %903 = vmatprep.subr.mxu0 0.0
  %904 = vmatpush1.msra.mxu0 0.0
  %905 = vmatprep.subr.mxu0 0.0
  %906 = vmatpush1.msra.mxu0 0.0
  %907 = vmatprep.subr.mxu0 0.0
  %908 = vmatpush1.msra.mxu0 0.0
  %909 = vmatprep.subr.mxu0 0.0
  %910 = vmatpush1.msra.mxu0 0.0
  %911 = vmatprep.subr.mxu0 0.0
  %912 = vmatpush1.msra.mxu0 0.0
  %913 = vmatprep.mubr.f32.mxu0 0.0
  %914 = vmatmul.mubr.f32.gmra.mrb[0].mxu0 %v673
  %v915 = vpop.f32.mrb[0].mxu0
  %v916 = vadd.f32 %v297, %v915
  %v917 = vpop.f32.mrb[0].mxu0
  %v918 = vadd.f32 %v299, %v917
  %919 = vdwg.mxu0
  %920 = vmatprep.subr.mxu0 %v689
  %921 = vmatpush1.msra.mxu0 %v687
  %922 = vmatprep.subr.mxu0 0.0
  %923 = vmatpush1.msra.mxu0 0.0
  %924 = vmatprep.subr.mxu0 0.0
  %925 = vmatpush1.msra.mxu0 0.0
  %926 = vmatprep.subr.mxu0 0.0
  %927 = vmatpush1.msra.mxu0 0.0
  %928 = vmatprep.subr.mxu0 0.0
  %929 = vmatpush1.msra.mxu0 0.0
  %930 = vmatprep.subr.mxu0 0.0
  %931 = vmatpush1.msra.mxu0 0.0
  %932 = vmatprep.subr.mxu0 0.0
  %933 = vmatpush1.msra.mxu0 0.0
  %934 = vmatprep.subr.mxu0 0.0
  %935 = vmatpush1.msra.mxu0 0.0
  %936 = vmatprep.subr.mxu0 0.0
  %937 = vmatpush1.msra.mxu0 0.0
  %938 = vmatprep.subr.mxu0 0.0
  %939 = vmatpush1.msra.mxu0 0.0
  %940 = vmatprep.subr.mxu0 0.0
  %941 = vmatpush1.msra.mxu0 0.0
  %942 = vmatprep.subr.mxu0 0.0
  %943 = vmatpush1.msra.mxu0 0.0
  %944 = vmatprep.subr.mxu0 0.0
  %945 = vmatpush1.msra.mxu0 0.0
  %946 = vmatprep.subr.mxu0 0.0
  %947 = vmatpush1.msra.mxu0 0.0
  %948 = vmatprep.subr.mxu0 0.0
  %949 = vmatpush1.msra.mxu0 0.0
  %950 = vmatprep.subr.mxu0 0.0
  %951 = vmatpush1.msra.mxu0 0.0
  %952 = vmatprep.subr.mxu0 0.0
  %953 = vmatpush1.msra.mxu0 0.0
  %954 = vmatprep.subr.mxu0 0.0
  %955 = vmatpush1.msra.mxu0 0.0
  %956 = vmatprep.subr.mxu0 0.0
  %957 = vmatpush1.msra.mxu0 0.0
  %958 = vmatprep.subr.mxu0 0.0
  %959 = vmatpush1.msra.mxu0 0.0
  %960 = vmatprep.subr.mxu0 0.0
  %961 = vmatpush1.msra.mxu0 0.0
  %962 = vmatprep.subr.mxu0 0.0
  %963 = vmatpush1.msra.mxu0 0.0
  %964 = vmatprep.subr.mxu0 0.0
  %965 = vmatpush1.msra.mxu0 0.0
  %966 = vmatprep.subr.mxu0 0.0
  %967 = vmatpush1.msra.mxu0 0.0
  %968 = vmatprep.subr.mxu0 0.0
  %969 = vmatpush1.msra.mxu0 0.0
  %970 = vmatprep.subr.mxu0 0.0
  %971 = vmatpush1.msra.mxu0 0.0
  %972 = vmatprep.subr.mxu0 0.0
  %973 = vmatpush1.msra.mxu0 0.0
  %974 = vmatprep.subr.mxu0 0.0
  %975 = vmatpush1.msra.mxu0 0.0
  %976 = vmatprep.subr.mxu0 0.0
  %977 = vmatpush1.msra.mxu0 0.0
  %978 = vmatprep.subr.mxu0 0.0
  %979 = vmatpush1.msra.mxu0 0.0
  %980 = vmatprep.subr.mxu0 0.0
  %981 = vmatpush1.msra.mxu0 0.0
  %982 = vmatprep.subr.mxu0 0.0
  %983 = vmatpush1.msra.mxu0 0.0
  %984 = vmatprep.mubr.f32.mxu0 0.0
  %985 = vmatmul.mubr.f32.gmra.mrb[0].mxu0 %v673
  %v986 = vpop.f32.mrb[0].mxu0
  %v987 = vadd.f32 %v368, %v986
  %v988 = vpop.f32.mrb[0].mxu0
  %v989 = vadd.f32 %v370, %v988
  %990 = vdwg.mxu0
  %991 = vmatprep.subr.mxu0 %v693
  %992 = vmatpush1.msra.mxu0 %v691
  %993 = vmatprep.subr.mxu0 0.0
  %994 = vmatpush1.msra.mxu0 0.0
  %995 = vmatprep.subr.mxu0 0.0
  %996 = vmatpush1.msra.mxu0 0.0
  %997 = vmatprep.subr.mxu0 0.0
  %998 = vmatpush1.msra.mxu0 0.0
  %999 = vmatprep.subr.mxu0 0.0
  %1000 = vmatpush1.msra.mxu0 0.0
  %1001 = vmatprep.subr.mxu0 0.0
  %1002 = vmatpush1.msra.mxu0 0.0
  %1003 = vmatprep.subr.mxu0 0.0
  %1004 = vmatpush1.msra.mxu0 0.0
  %1005 = vmatprep.subr.mxu0 0.0
  %1006 = vmatpush1.msra.mxu0 0.0
  %1007 = vmatprep.subr.mxu0 0.0
  %1008 = vmatpush1.msra.mxu0 0.0
  %1009 = vmatprep.subr.mxu0 0.0
  %1010 = vmatpush1.msra.mxu0 0.0
  %1011 = vmatprep.subr.mxu0 0.0
  %1012 = vmatpush1.msra.mxu0 0.0
  %1013 = vmatprep.subr.mxu0 0.0
  %1014 = vmatpush1.msra.mxu0 0.0
  %1015 = vmatprep.subr.mxu0 0.0
  %1016 = vmatpush1.msra.mxu0 0.0
  %1017 = vmatprep.subr.mxu0 0.0
  %1018 = vmatpush1.msra.mxu0 0.0
  %1019 = vmatprep.subr.mxu0 0.0
  %1020 = vmatpush1.msra.mxu0 0.0
  %1021 = vmatprep.subr.mxu0 0.0
  %1022 = vmatpush1.msra.mxu0 0.0
  %1023 = vmatprep.subr.mxu0 0.0
  %1024 = vmatpush1.msra.mxu0 0.0
  %1025 = vmatprep.subr.mxu0 0.0
  %1026 = vmatpush1.msra.mxu0 0.0
  %1027 = vmatprep.subr.mxu0 0.0
  %1028 = vmatpush1.msra.mxu0 0.0
  %1029 = vmatprep.subr.mxu0 0.0
  %1030 = vmatpush1.msra.mxu0 0.0
  %1031 = vmatprep.subr.mxu0 0.0
  %1032 = vmatpush1.msra.mxu0 0.0
  %1033 = vmatprep.subr.mxu0 0.0
  %1034 = vmatpush1.msra.mxu0 0.0
  %1035 = vmatprep.subr.mxu0 0.0
  %1036 = vmatpush1.msra.mxu0 0.0
  %1037 = vmatprep.subr.mxu0 0.0
  %1038 = vmatpush1.msra.mxu0 0.0
  %1039 = vmatprep.subr.mxu0 0.0
  %1040 = vmatpush1.msra.mxu0 0.0
  %1041 = vmatprep.subr.mxu0 0.0
  %1042 = vmatpush1.msra.mxu0 0.0
  %1043 = vmatprep.subr.mxu0 0.0
  %1044 = vmatpush1.msra.mxu0 0.0
  %1045 = vmatprep.subr.mxu0 0.0
  %1046 = vmatpush1.msra.mxu0 0.0
  %1047 = vmatprep.subr.mxu0 0.0
  %1048 = vmatpush1.msra.mxu0 0.0
  %1049 = vmatprep.subr.mxu0 0.0
  %1050 = vmatpush1.msra.mxu0 0.0
  %1051 = vmatprep.subr.mxu0 0.0
  %1052 = vmatpush1.msra.mxu0 0.0
  %1053 = vmatprep.subr.mxu0 0.0
  %1054 = vmatpush1.msra.mxu0 0.0
  %1055 = vmatprep.mubr.f32.mxu0 0.0
  %1056 = vmatmul.mubr.f32.gmra.mrb[0].mxu0 %v673
  %v1057 = vpop.f32.mrb[0].mxu0
  %v1058 = vadd.f32 %v439, %v1057
  %v1059 = vpop.f32.mrb[0].mxu0
  %v1060 = vadd.f32 %v441, %v1059
  %1061 = vdwg.mxu0
  %1062 = vmatprep.subr.mxu0 %v697
  %1063 = vmatpush1.msra.mxu0 %v695
  %1064 = vmatprep.subr.mxu0 0.0
  %1065 = vmatpush1.msra.mxu0 0.0
  %1066 = vmatprep.subr.mxu0 0.0
  %1067 = vmatpush1.msra.mxu0 0.0
  %1068 = vmatprep.subr.mxu0 0.0
  %1069 = vmatpush1.msra.mxu0 0.0
  %1070 = vmatprep.subr.mxu0 0.0
  %1071 = vmatpush1.msra.mxu0 0.0
  %1072 = vmatprep.subr.mxu0 0.0
  %1073 = vmatpush1.msra.mxu0 0.0
  %1074 = vmatprep.subr.mxu0 0.0
  %1075 = vmatpush1.msra.mxu0 0.0
  %1076 = vmatprep.subr.mxu0 0.0
  %1077 = vmatpush1.msra.mxu0 0.0
  %1078 = vmatprep.subr.mxu0 0.0
  %1079 = vmatpush1.msra.mxu0 0.0
  %1080 = vmatprep.subr.mxu0 0.0
  %1081 = vmatpush1.msra.mxu0 0.0
  %1082 = vmatprep.subr.mxu0 0.0
  %1083 = vmatpush1.msra.mxu0 0.0
  %1084 = vmatprep.subr.mxu0 0.0
  %1085 = vmatpush1.msra.mxu0 0.0
  %1086 = vmatprep.subr.mxu0 0.0
  %1087 = vmatpush1.msra.mxu0 0.0
  %1088 = vmatprep.subr.mxu0 0.0
  %1089 = vmatpush1.msra.mxu0 0.0
  %1090 = vmatprep.subr.mxu0 0.0
  %1091 = vmatpush1.msra.mxu0 0.0
  %1092 = vmatprep.subr.mxu0 0.0
  %1093 = vmatpush1.msra.mxu0 0.0
  %1094 = vmatprep.subr.mxu0 0.0
  %1095 = vmatpush1.msra.mxu0 0.0
  %1096 = vmatprep.subr.mxu0 0.0
  %1097 = vmatpush1.msra.mxu0 0.0
  %1098 = vmatprep.subr.mxu0 0.0
  %1099 = vmatpush1.msra.mxu0 0.0
  %1100 = vmatprep.subr.mxu0 0.0
  %1101 = vmatpush1.msra.mxu0 0.0
  %1102 = vmatprep.subr.mxu0 0.0
  %1103 = vmatpush1.msra.mxu0 0.0
  %1104 = vmatprep.subr.mxu0 0.0
  %1105 = vmatpush1.msra.mxu0 0.0
  %1106 = vmatprep.subr.mxu0 0.0
  %1107 = vmatpush1.msra.mxu0 0.0
  %1108 = vmatprep.subr.mxu0 0.0
  %1109 = vmatpush1.msra.mxu0 0.0
  %1110 = vmatprep.subr.mxu0 0.0
  %1111 = vmatpush1.msra.mxu0 0.0
  %1112 = vmatprep.subr.mxu0 0.0
  %1113 = vmatpush1.msra.mxu0 0.0
  %1114 = vmatprep.subr.mxu0 0.0
  %1115 = vmatpush1.msra.mxu0 0.0
  %1116 = vmatprep.subr.mxu0 0.0
  %1117 = vmatpush1.msra.mxu0 0.0
  %1118 = vmatprep.subr.mxu0 0.0
  %1119 = vmatpush1.msra.mxu0 0.0
  %1120 = vmatprep.subr.mxu0 0.0
  %1121 = vmatpush1.msra.mxu0 0.0
  %1122 = vmatprep.subr.mxu0 0.0
  %1123 = vmatpush1.msra.mxu0 0.0
  %1124 = vmatprep.subr.mxu0 0.0
  %1125 = vmatpush1.msra.mxu0 0.0
  %1126 = vmatprep.mubr.f32.mxu0 0.0
  %1127 = vmatmul.mubr.f32.gmra.mrb[0].mxu0 %v673
  %v1128 = vpop.f32.mrb[0].mxu0
  %v1129 = vadd.f32 %v510, %v1128
  %v1130 = vpop.f32.mrb[0].mxu0
  %v1131 = vadd.f32 %v512, %v1130
  %1132 = vdwg.mxu0
  %1133 = vmatprep.subr.mxu0 %v701
  %1134 = vmatpush1.msra.mxu0 %v699
  %1135 = vmatprep.subr.mxu0 0.0
  %1136 = vmatpush1.msra.mxu0 0.0
  %1137 = vmatprep.subr.mxu0 0.0
  %1138 = vmatpush1.msra.mxu0 0.0
  %1139 = vmatprep.subr.mxu0 0.0
  %1140 = vmatpush1.msra.mxu0 0.0
  %1141 = vmatprep.subr.mxu0 0.0
  %1142 = vmatpush1.msra.mxu0 0.0
  %1143 = vmatprep.subr.mxu0 0.0
  %1144 = vmatpush1.msra.mxu0 0.0
  %1145 = vmatprep.subr.mxu0 0.0
  %1146 = vmatpush1.msra.mxu0 0.0
  %1147 = vmatprep.subr.mxu0 0.0
  %1148 = vmatpush1.msra.mxu0 0.0
  %1149 = vmatprep.subr.mxu0 0.0
  %1150 = vmatpush1.msra.mxu0 0.0
  %1151 = vmatprep.subr.mxu0 0.0
  %1152 = vmatpush1.msra.mxu0 0.0
  %1153 = vmatprep.subr.mxu0 0.0
  %1154 = vmatpush1.msra.mxu0 0.0
  %1155 = vmatprep.subr.mxu0 0.0
  %1156 = vmatpush1.msra.mxu0 0.0
  %1157 = vmatprep.subr.mxu0 0.0
  %1158 = vmatpush1.msra.mxu0 0.0
  %1159 = vmatprep.subr.mxu0 0.0
  %1160 = vmatpush1.msra.mxu0 0.0
  %1161 = vmatprep.subr.mxu0 0.0
  %1162 = vmatpush1.msra.mxu0 0.0
  %1163 = vmatprep.subr.mxu0 0.0
  %1164 = vmatpush1.msra.mxu0 0.0
  %1165 = vmatprep.subr.mxu0 0.0
  %1166 = vmatpush1.msra.mxu0 0.0
  %1167 = vmatprep.subr.mxu0 0.0
  %1168 = vmatpush1.msra.mxu0 0.0
  %1169 = vmatprep.subr.mxu0 0.0
  %1170 = vmatpush1.msra.mxu0 0.0
  %1171 = vmatprep.subr.mxu0 0.0
  %1172 = vmatpush1.msra.mxu0 0.0
  %1173 = vmatprep.subr.mxu0 0.0
  %1174 = vmatpush1.msra.mxu0 0.0
  %1175 = vmatprep.subr.mxu0 0.0
  %1176 = vmatpush1.msra.mxu0 0.0
  %1177 = vmatprep.subr.mxu0 0.0
  %1178 = vmatpush1.msra.mxu0 0.0
  %1179 = vmatprep.subr.mxu0 0.0
  %1180 = vmatpush1.msra.mxu0 0.0
  %1181 = vmatprep.subr.mxu0 0.0
  %1182 = vmatpush1.msra.mxu0 0.0
  %1183 = vmatprep.subr.mxu0 0.0
  %1184 = vmatpush1.msra.mxu0 0.0
  %1185 = vmatprep.subr.mxu0 0.0
  %1186 = vmatpush1.msra.mxu0 0.0
  %1187 = vmatprep.subr.mxu0 0.0
  %1188 = vmatpush1.msra.mxu0 0.0
  %1189 = vmatprep.subr.mxu0 0.0
  %1190 = vmatpush1.msra.mxu0 0.0
  %1191 = vmatprep.subr.mxu0 0.0
  %1192 = vmatpush1.msra.mxu0 0.0
  %1193 = vmatprep.subr.mxu0 0.0
  %1194 = vmatpush1.msra.mxu0 0.0
  %1195 = vmatprep.subr.mxu0 0.0
  %1196 = vmatpush1.msra.mxu0 0.0
  %1197 = vmatprep.mubr.f32.mxu0 0.0
  %1198 = vmatmul.mubr.f32.gmra.mrb[0].mxu0 %v673
  %v1199 = vpop.f32.mrb[0].mxu0
  %v1200 = vadd.f32 %v581, %v1199
  %v1201 = vpop.f32.mrb[0].mxu0
  %v1202 = vadd.f32 %v583, %v1201
  %1203 = vdwg.mxu0
  %1204 = vmatprep.subr.mxu0 %v705
  %1205 = vmatpush1.msra.mxu0 %v703
  %1206 = vmatprep.subr.mxu0 0.0
  %1207 = vmatpush1.msra.mxu0 0.0
  %1208 = vmatprep.subr.mxu0 0.0
  %1209 = vmatpush1.msra.mxu0 0.0
  %1210 = vmatprep.subr.mxu0 0.0
  %1211 = vmatpush1.msra.mxu0 0.0
  %1212 = vmatprep.subr.mxu0 0.0
  %1213 = vmatpush1.msra.mxu0 0.0
  %1214 = vmatprep.subr.mxu0 0.0
  %1215 = vmatpush1.msra.mxu0 0.0
  %1216 = vmatprep.subr.mxu0 0.0
  %1217 = vmatpush1.msra.mxu0 0.0
  %1218 = vmatprep.subr.mxu0 0.0
  %1219 = vmatpush1.msra.mxu0 0.0
  %1220 = vmatprep.subr.mxu0 0.0
  %1221 = vmatpush1.msra.mxu0 0.0
  %1222 = vmatprep.subr.mxu0 0.0
  %1223 = vmatpush1.msra.mxu0 0.0
  %1224 = vmatprep.subr.mxu0 0.0
  %1225 = vmatpush1.msra.mxu0 0.0
  %1226 = vmatprep.subr.mxu0 0.0
  %1227 = vmatpush1.msra.mxu0 0.0
  %1228 = vmatprep.subr.mxu0 0.0
  %1229 = vmatpush1.msra.mxu0 0.0
  %1230 = vmatprep.subr.mxu0 0.0
  %1231 = vmatpush1.msra.mxu0 0.0
  %1232 = vmatprep.subr.mxu0 0.0
  %1233 = vmatpush1.msra.mxu0 0.0
  %1234 = vmatprep.subr.mxu0 0.0
  %1235 = vmatpush1.msra.mxu0 0.0
  %1236 = vmatprep.subr.mxu0 0.0
  %1237 = vmatpush1.msra.mxu0 0.0
  %1238 = vmatprep.subr.mxu0 0.0
  %1239 = vmatpush1.msra.mxu0 0.0
  %1240 = vmatprep.subr.mxu0 0.0
  %1241 = vmatpush1.msra.mxu0 0.0
  %1242 = vmatprep.subr.mxu0 0.0
  %1243 = vmatpush1.msra.mxu0 0.0
  %1244 = vmatprep.subr.mxu0 0.0
  %1245 = vmatpush1.msra.mxu0 0.0
  %1246 = vmatprep.subr.mxu0 0.0
  %1247 = vmatpush1.msra.mxu0 0.0
  %1248 = vmatprep.subr.mxu0 0.0
  %1249 = vmatpush1.msra.mxu0 0.0
  %1250 = vmatprep.subr.mxu0 0.0
  %1251 = vmatpush1.msra.mxu0 0.0
  %1252 = vmatprep.subr.mxu0 0.0
  %1253 = vmatpush1.msra.mxu0 0.0
  %1254 = vmatprep.subr.mxu0 0.0
  %1255 = vmatpush1.msra.mxu0 0.0
  %1256 = vmatprep.subr.mxu0 0.0
  %1257 = vmatpush1.msra.mxu0 0.0
  %1258 = vmatprep.subr.mxu0 0.0
  %1259 = vmatpush1.msra.mxu0 0.0
  %1260 = vmatprep.subr.mxu0 0.0
  %1261 = vmatpush1.msra.mxu0 0.0
  %1262 = vmatprep.subr.mxu0 0.0
  %1263 = vmatpush1.msra.mxu0 0.0
  %1264 = vmatprep.subr.mxu0 0.0
  %1265 = vmatpush1.msra.mxu0 0.0
  %1266 = vmatprep.subr.mxu0 0.0
  %1267 = vmatpush1.msra.mxu0 0.0
  %1268 = vmatprep.mubr.f32.mxu0 0.0
  %1269 = vmatmul.mubr.f32.gmra.mrb[0].mxu0 %v673
  %v1270 = vpop.f32.mrb[0].mxu0
  %v1271 = vadd.f32 %v652, %v1270
  %v1272 = vpop.f32.mrb[0].mxu0
  %v1273 = vadd.f32 %v654, %v1272
  %1274 = vdwg.mxu0
  %v1275 = vld [vmem:[%s0 + $0x8] sm:$0xff]
  %v1276 = vld [vmem:[%s0 + $0x10] sm:$0xff]
  %v1277 = vld [vmem:[%s0 + $0x18] sm:$0xff]
  %v1278 = vld [vmem:[%s0 + $0x20] sm:$0xff]
  %v1279 = vld [vmem:[%s0 + $0x28] sm:$0xff]
  %v1280 = vld [vmem:[%s0 + $0x30] sm:$0xff]
  %v1281 = vld [vmem:[%s0 + $0x38] sm:$0xff]
  %v1282 = vld [vmem:[%s0 + $0x40] sm:$0xff]
  %s1283 = scalar_lea.vmem %s1, 16
  %v1284 = vld [vmem:[%s1283] sm:$0xff]
  %v1293 = vcombine.high %v1275, %v1275
  %v1294 = vcombine.high %v1276, %v1276
  %v1295 = vcombine.high %v1277, %v1277
  %v1296 = vcombine.high %v1278, %v1278
  %v1297 = vcombine.high %v1279, %v1279
  %v1298 = vcombine.high %v1280, %v1280
  %v1299 = vcombine.high %v1281, %v1281
  %v1300 = vcombine.high %v1282, %v1282
  %v1302 = vsel %vm51, %v1284, 0
  %v1304 = vsel %vm55, %v1275, 0
  %v1306 = vsel %vm55, %v1293, 0
  %v1308 = vsel %vm55, %v1276, 0
  %v1310 = vsel %vm55, %v1294, 0
  %v1312 = vsel %vm55, %v1277, 0
  %v1314 = vsel %vm55, %v1295, 0
  %v1316 = vsel %vm55, %v1278, 0
  %v1318 = vsel %vm55, %v1296, 0
  %v1320 = vsel %vm55, %v1279, 0
  %v1322 = vsel %vm55, %v1297, 0
  %v1324 = vsel %vm55, %v1280, 0
  %v1326 = vsel %vm55, %v1298, 0
  %v1328 = vsel %vm55, %v1281, 0
  %v1330 = vsel %vm55, %v1299, 0
  %v1332 = vsel %vm55, %v1282, 0
  %v1334 = vsel %vm55, %v1300, 0
  %1336 = vmatprep.subr.mxu0 %v1306
  %1337 = vmatpush1.msra.mxu0 %v1304
  %1338 = vmatprep.subr.mxu0 0.0
  %1339 = vmatpush1.msra.mxu0 0.0
  %1340 = vmatprep.subr.mxu0 0.0
  %1341 = vmatpush1.msra.mxu0 0.0
  %1342 = vmatprep.subr.mxu0 0.0
  %1343 = vmatpush1.msra.mxu0 0.0
  %1344 = vmatprep.subr.mxu0 0.0
  %1345 = vmatpush1.msra.mxu0 0.0
  %1346 = vmatprep.subr.mxu0 0.0
  %1347 = vmatpush1.msra.mxu0 0.0
  %1348 = vmatprep.subr.mxu0 0.0
  %1349 = vmatpush1.msra.mxu0 0.0
  %1350 = vmatprep.subr.mxu0 0.0
  %1351 = vmatpush1.msra.mxu0 0.0
  %1352 = vmatprep.subr.mxu0 0.0
  %1353 = vmatpush1.msra.mxu0 0.0
  %1354 = vmatprep.subr.mxu0 0.0
  %1355 = vmatpush1.msra.mxu0 0.0
  %1356 = vmatprep.subr.mxu0 0.0
  %1357 = vmatpush1.msra.mxu0 0.0
  %1358 = vmatprep.subr.mxu0 0.0
  %1359 = vmatpush1.msra.mxu0 0.0
  %1360 = vmatprep.subr.mxu0 0.0
  %1361 = vmatpush1.msra.mxu0 0.0
  %1362 = vmatprep.subr.mxu0 0.0
  %1363 = vmatpush1.msra.mxu0 0.0
  %1364 = vmatprep.subr.mxu0 0.0
  %1365 = vmatpush1.msra.mxu0 0.0
  %1366 = vmatprep.subr.mxu0 0.0
  %1367 = vmatpush1.msra.mxu0 0.0
  %1368 = vmatprep.subr.mxu0 0.0
  %1369 = vmatpush1.msra.mxu0 0.0
  %1370 = vmatprep.subr.mxu0 0.0
  %1371 = vmatpush1.msra.mxu0 0.0
  %1372 = vmatprep.subr.mxu0 0.0
  %1373 = vmatpush1.msra.mxu0 0.0
  %1374 = vmatprep.subr.mxu0 0.0
  %1375 = vmatpush1.msra.mxu0 0.0
  %1376 = vmatprep.subr.mxu0 0.0
  %1377 = vmatpush1.msra.mxu0 0.0
  %1378 = vmatprep.subr.mxu0 0.0
  %1379 = vmatpush1.msra.mxu0 0.0
  %1380 = vmatprep.subr.mxu0 0.0
  %1381 = vmatpush1.msra.mxu0 0.0
  %1382 = vmatprep.subr.mxu0 0.0
  %1383 = vmatpush1.msra.mxu0 0.0
  %1384 = vmatprep.subr.mxu0 0.0
  %1385 = vmatpush1.msra.mxu0 0.0
  %1386 = vmatprep.subr.mxu0 0.0
  %1387 = vmatpush1.msra.mxu0 0.0
  %1388 = vmatprep.subr.mxu0 0.0
  %1389 = vmatpush1.msra.mxu0 0.0
  %1390 = vmatprep.subr.mxu0 0.0
  %1391 = vmatpush1.msra.mxu0 0.0
  %1392 = vmatprep.subr.mxu0 0.0
  %1393 = vmatpush1.msra.mxu0 0.0
  %1394 = vmatprep.subr.mxu0 0.0
  %1395 = vmatpush1.msra.mxu0 0.0
  %1396 = vmatprep.subr.mxu0 0.0
  %1397 = vmatpush1.msra.mxu0 0.0
  %1398 = vmatprep.subr.mxu0 0.0
  %1399 = vmatpush1.msra.mxu0 0.0
  %1400 = vmatprep.mubr.f32.mxu0 0.0
  %1401 = vmatmul.mubr.f32.gmra.mrb[0].mxu0 %v1302
  %v1402 = vpop.f32.mrb[0].mxu0
  %v1403 = vadd.f32 0.0, %v1402
  %v1404 = vpop.f32.mrb[0].mxu0
  %v1405 = vadd.f32 0.0, %v1404
  %1406 = vdwg.mxu0
  %1407 = vmatprep.subr.mxu0 %v1310
  %1408 = vmatpush1.msra.mxu0 %v1308
  %1409 = vmatprep.subr.mxu0 0.0
  %1410 = vmatpush1.msra.mxu0 0.0
  %1411 = vmatprep.subr.mxu0 0.0
  %1412 = vmatpush1.msra.mxu0 0.0
  %1413 = vmatprep.subr.mxu0 0.0
  %1414 = vmatpush1.msra.mxu0 0.0
  %1415 = vmatprep.subr.mxu0 0.0
  %1416 = vmatpush1.msra.mxu0 0.0
  %1417 = vmatprep.subr.mxu0 0.0
  %1418 = vmatpush1.msra.mxu0 0.0
  %1419 = vmatprep.subr.mxu0 0.0
  %1420 = vmatpush1.msra.mxu0 0.0
  %1421 = vmatprep.subr.mxu0 0.0
  %1422 = vmatpush1.msra.mxu0 0.0
  %1423 = vmatprep.subr.mxu0 0.0
  %1424 = vmatpush1.msra.mxu0 0.0
  %1425 = vmatprep.subr.mxu0 0.0
  %1426 = vmatpush1.msra.mxu0 0.0
  %1427 = vmatprep.subr.mxu0 0.0
  %1428 = vmatpush1.msra.mxu0 0.0
  %1429 = vmatprep.subr.mxu0 0.0
  %1430 = vmatpush1.msra.mxu0 0.0
  %1431 = vmatprep.subr.mxu0 0.0
  %1432 = vmatpush1.msra.mxu0 0.0
  %1433 = vmatprep.subr.mxu0 0.0
  %1434 = vmatpush1.msra.mxu0 0.0
  %1435 = vmatprep.subr.mxu0 0.0
  %1436 = vmatpush1.msra.mxu0 0.0
  %1437 = vmatprep.subr.mxu0 0.0
  %1438 = vmatpush1.msra.mxu0 0.0
  %1439 = vmatprep.subr.mxu0 0.0
  %1440 = vmatpush1.msra.mxu0 0.0
  %1441 = vmatprep.subr.mxu0 0.0
  %1442 = vmatpush1.msra.mxu0 0.0
  %1443 = vmatprep.subr.mxu0 0.0
  %1444 = vmatpush1.msra.mxu0 0.0
  %1445 = vmatprep.subr.mxu0 0.0
  %1446 = vmatpush1.msra.mxu0 0.0
  %1447 = vmatprep.subr.mxu0 0.0
  %1448 = vmatpush1.msra.mxu0 0.0
  %1449 = vmatprep.subr.mxu0 0.0
  %1450 = vmatpush1.msra.mxu0 0.0
  %1451 = vmatprep.subr.mxu0 0.0
  %1452 = vmatpush1.msra.mxu0 0.0
  %1453 = vmatprep.subr.mxu0 0.0
  %1454 = vmatpush1.msra.mxu0 0.0
  %1455 = vmatprep.subr.mxu0 0.0
  %1456 = vmatpush1.msra.mxu0 0.0
  %1457 = vmatprep.subr.mxu0 0.0
  %1458 = vmatpush1.msra.mxu0 0.0
  %1459 = vmatprep.subr.mxu0 0.0
  %1460 = vmatpush1.msra.mxu0 0.0
  %1461 = vmatprep.subr.mxu0 0.0
  %1462 = vmatpush1.msra.mxu0 0.0
  %1463 = vmatprep.subr.mxu0 0.0
  %1464 = vmatpush1.msra.mxu0 0.0
  %1465 = vmatprep.subr.mxu0 0.0
  %1466 = vmatpush1.msra.mxu0 0.0
  %1467 = vmatprep.subr.mxu0 0.0
  %1468 = vmatpush1.msra.mxu0 0.0
  %1469 = vmatprep.subr.mxu0 0.0
  %1470 = vmatpush1.msra.mxu0 0.0
  %1471 = vmatprep.mubr.f32.mxu0 0.0
  %1472 = vmatmul.mubr.f32.gmra.mrb[0].mxu0 %v1302
  %v1473 = vpop.f32.mrb[0].mxu0
  %v1474 = vadd.f32 0.0, %v1473
  %v1475 = vpop.f32.mrb[0].mxu0
  %v1476 = vadd.f32 0.0, %v1475
  %1477 = vdwg.mxu0
  %1478 = vmatprep.subr.mxu0 %v1314
  %1479 = vmatpush1.msra.mxu0 %v1312
  %1480 = vmatprep.subr.mxu0 0.0
  %1481 = vmatpush1.msra.mxu0 0.0
  %1482 = vmatprep.subr.mxu0 0.0
  %1483 = vmatpush1.msra.mxu0 0.0
  %1484 = vmatprep.subr.mxu0 0.0
  %1485 = vmatpush1.msra.mxu0 0.0
  %1486 = vmatprep.subr.mxu0 0.0
  %1487 = vmatpush1.msra.mxu0 0.0
  %1488 = vmatprep.subr.mxu0 0.0
  %1489 = vmatpush1.msra.mxu0 0.0
  %1490 = vmatprep.subr.mxu0 0.0
  %1491 = vmatpush1.msra.mxu0 0.0
  %1492 = vmatprep.subr.mxu0 0.0
  %1493 = vmatpush1.msra.mxu0 0.0
  %1494 = vmatprep.subr.mxu0 0.0
  %1495 = vmatpush1.msra.mxu0 0.0
  %1496 = vmatprep.subr.mxu0 0.0
  %1497 = vmatpush1.msra.mxu0 0.0
  %1498 = vmatprep.subr.mxu0 0.0
  %1499 = vmatpush1.msra.mxu0 0.0
  %1500 = vmatprep.subr.mxu0 0.0
  %1501 = vmatpush1.msra.mxu0 0.0
  %1502 = vmatprep.subr.mxu0 0.0
  %1503 = vmatpush1.msra.mxu0 0.0
  %1504 = vmatprep.subr.mxu0 0.0
  %1505 = vmatpush1.msra.mxu0 0.0
  %1506 = vmatprep.subr.mxu0 0.0
  %1507 = vmatpush1.msra.mxu0 0.0
  %1508 = vmatprep.subr.mxu0 0.0
  %1509 = vmatpush1.msra.mxu0 0.0
  %1510 = vmatprep.subr.mxu0 0.0
  %1511 = vmatpush1.msra.mxu0 0.0
  %1512 = vmatprep.subr.mxu0 0.0
  %1513 = vmatpush1.msra.mxu0 0.0
  %1514 = vmatprep.subr.mxu0 0.0
  %1515 = vmatpush1.msra.mxu0 0.0
  %1516 = vmatprep.subr.mxu0 0.0
  %1517 = vmatpush1.msra.mxu0 0.0
  %1518 = vmatprep.subr.mxu0 0.0
  %1519 = vmatpush1.msra.mxu0 0.0
  %1520 = vmatprep.subr.mxu0 0.0
  %1521 = vmatpush1.msra.mxu0 0.0
  %1522 = vmatprep.subr.mxu0 0.0
  %1523 = vmatpush1.msra.mxu0 0.0
  %1524 = vmatprep.subr.mxu0 0.0
  %1525 = vmatpush1.msra.mxu0 0.0
  %1526 = vmatprep.subr.mxu0 0.0
  %1527 = vmatpush1.msra.mxu0 0.0
  %1528 = vmatprep.subr.mxu0 0.0
  %1529 = vmatpush1.msra.mxu0 0.0
  %1530 = vmatprep.subr.mxu0 0.0
  %1531 = vmatpush1.msra.mxu0 0.0
  %1532 = vmatprep.subr.mxu0 0.0
  %1533 = vmatpush1.msra.mxu0 0.0
  %1534 = vmatprep.subr.mxu0 0.0
  %1535 = vmatpush1.msra.mxu0 0.0
  %1536 = vmatprep.subr.mxu0 0.0
  %1537 = vmatpush1.msra.mxu0 0.0
  %1538 = vmatprep.subr.mxu0 0.0
  %1539 = vmatpush1.msra.mxu0 0.0
  %1540 = vmatprep.subr.mxu0 0.0
  %1541 = vmatpush1.msra.mxu0 0.0
  %1542 = vmatprep.mubr.f32.mxu0 0.0
  %1543 = vmatmul.mubr.f32.gmra.mrb[0].mxu0 %v1302
  %v1544 = vpop.f32.mrb[0].mxu0
  %v1545 = vadd.f32 0.0, %v1544
  %v1546 = vpop.f32.mrb[0].mxu0
  %v1547 = vadd.f32 0.0, %v1546
  %1548 = vdwg.mxu0
  %1549 = vmatprep.subr.mxu0 %v1318
  %1550 = vmatpush1.msra.mxu0 %v1316
  %1551 = vmatprep.subr.mxu0 0.0
  %1552 = vmatpush1.msra.mxu0 0.0
  %1553 = vmatprep.subr.mxu0 0.0
  %1554 = vmatpush1.msra.mxu0 0.0
  %1555 = vmatprep.subr.mxu0 0.0
  %1556 = vmatpush1.msra.mxu0 0.0
  %1557 = vmatprep.subr.mxu0 0.0
  %1558 = vmatpush1.msra.mxu0 0.0
  %1559 = vmatprep.subr.mxu0 0.0
  %1560 = vmatpush1.msra.mxu0 0.0
  %1561 = vmatprep.subr.mxu0 0.0
  %1562 = vmatpush1.msra.mxu0 0.0
  %1563 = vmatprep.subr.mxu0 0.0
  %1564 = vmatpush1.msra.mxu0 0.0
  %1565 = vmatprep.subr.mxu0 0.0
  %1566 = vmatpush1.msra.mxu0 0.0
  %1567 = vmatprep.subr.mxu0 0.0
  %1568 = vmatpush1.msra.mxu0 0.0
  %1569 = vmatprep.subr.mxu0 0.0
  %1570 = vmatpush1.msra.mxu0 0.0
  %1571 = vmatprep.subr.mxu0 0.0
  %1572 = vmatpush1.msra.mxu0 0.0
  %1573 = vmatprep.subr.mxu0 0.0
  %1574 = vmatpush1.msra.mxu0 0.0
  %1575 = vmatprep.subr.mxu0 0.0
  %1576 = vmatpush1.msra.mxu0 0.0
  %1577 = vmatprep.subr.mxu0 0.0
  %1578 = vmatpush1.msra.mxu0 0.0
  %1579 = vmatprep.subr.mxu0 0.0
  %1580 = vmatpush1.msra.mxu0 0.0
  %1581 = vmatprep.subr.mxu0 0.0
  %1582 = vmatpush1.msra.mxu0 0.0
  %1583 = vmatprep.subr.mxu0 0.0
  %1584 = vmatpush1.msra.mxu0 0.0
  %1585 = vmatprep.subr.mxu0 0.0
  %1586 = vmatpush1.msra.mxu0 0.0
  %1587 = vmatprep.subr.mxu0 0.0
  %1588 = vmatpush1.msra.mxu0 0.0
  %1589 = vmatprep.subr.mxu0 0.0
  %1590 = vmatpush1.msra.mxu0 0.0
  %1591 = vmatprep.subr.mxu0 0.0
  %1592 = vmatpush1.msra.mxu0 0.0
  %1593 = vmatprep.subr.mxu0 0.0
  %1594 = vmatpush1.msra.mxu0 0.0
  %1595 = vmatprep.subr.mxu0 0.0
  %1596 = vmatpush1.msra.mxu0 0.0
  %1597 = vmatprep.subr.mxu0 0.0
  %1598 = vmatpush1.msra.mxu0 0.0
  %1599 = vmatprep.subr.mxu0 0.0
  %1600 = vmatpush1.msra.mxu0 0.0
  %1601 = vmatprep.subr.mxu0 0.0
  %1602 = vmatpush1.msra.mxu0 0.0
  %1603 = vmatprep.subr.mxu0 0.0
  %1604 = vmatpush1.msra.mxu0 0.0
  %1605 = vmatprep.subr.mxu0 0.0
  %1606 = vmatpush1.msra.mxu0 0.0
  %1607 = vmatprep.subr.mxu0 0.0
  %1608 = vmatpush1.msra.mxu0 0.0
  %1609 = vmatprep.subr.mxu0 0.0
  %1610 = vmatpush1.msra.mxu0 0.0
  %1611 = vmatprep.subr.mxu0 0.0
  %1612 = vmatpush1.msra.mxu0 0.0
  %1613 = vmatprep.mubr.f32.mxu0 0.0
  %1614 = vmatmul.mubr.f32.gmra.mrb[0].mxu0 %v1302
  %v1615 = vpop.f32.mrb[0].mxu0
  %v1616 = vadd.f32 0.0, %v1615
  %v1617 = vpop.f32.mrb[0].mxu0
  %v1618 = vadd.f32 0.0, %v1617
  %1619 = vdwg.mxu0
  %1620 = vmatprep.subr.mxu0 %v1322
  %1621 = vmatpush1.msra.mxu0 %v1320
  %1622 = vmatprep.subr.mxu0 0.0
  %1623 = vmatpush1.msra.mxu0 0.0
  %1624 = vmatprep.subr.mxu0 0.0
  %1625 = vmatpush1.msra.mxu0 0.0
  %1626 = vmatprep.subr.mxu0 0.0
  %1627 = vmatpush1.msra.mxu0 0.0
  %1628 = vmatprep.subr.mxu0 0.0
  %1629 = vmatpush1.msra.mxu0 0.0
  %1630 = vmatprep.subr.mxu0 0.0
  %1631 = vmatpush1.msra.mxu0 0.0
  %1632 = vmatprep.subr.mxu0 0.0
  %1633 = vmatpush1.msra.mxu0 0.0
  %1634 = vmatprep.subr.mxu0 0.0
  %1635 = vmatpush1.msra.mxu0 0.0
  %1636 = vmatprep.subr.mxu0 0.0
  %1637 = vmatpush1.msra.mxu0 0.0
  %1638 = vmatprep.subr.mxu0 0.0
  %1639 = vmatpush1.msra.mxu0 0.0
  %1640 = vmatprep.subr.mxu0 0.0
  %1641 = vmatpush1.msra.mxu0 0.0
  %1642 = vmatprep.subr.mxu0 0.0
  %1643 = vmatpush1.msra.mxu0 0.0
  %1644 = vmatprep.subr.mxu0 0.0
  %1645 = vmatpush1.msra.mxu0 0.0
  %1646 = vmatprep.subr.mxu0 0.0
  %1647 = vmatpush1.msra.mxu0 0.0
  %1648 = vmatprep.subr.mxu0 0.0
  %1649 = vmatpush1.msra.mxu0 0.0
  %1650 = vmatprep.subr.mxu0 0.0
  %1651 = vmatpush1.msra.mxu0 0.0
  %1652 = vmatprep.subr.mxu0 0.0
  %1653 = vmatpush1.msra.mxu0 0.0
  %1654 = vmatprep.subr.mxu0 0.0
  %1655 = vmatpush1.msra.mxu0 0.0
  %1656 = vmatprep.subr.mxu0 0.0
  %1657 = vmatpush1.msra.mxu0 0.0
  %1658 = vmatprep.subr.mxu0 0.0
  %1659 = vmatpush1.msra.mxu0 0.0
  %1660 = vmatprep.subr.mxu0 0.0
  %1661 = vmatpush1.msra.mxu0 0.0
  %1662 = vmatprep.subr.mxu0 0.0
  %1663 = vmatpush1.msra.mxu0 0.0
  %1664 = vmatprep.subr.mxu0 0.0
  %1665 = vmatpush1.msra.mxu0 0.0
  %1666 = vmatprep.subr.mxu0 0.0
  %1667 = vmatpush1.msra.mxu0 0.0
  %1668 = vmatprep.subr.mxu0 0.0
  %1669 = vmatpush1.msra.mxu0 0.0
  %1670 = vmatprep.subr.mxu0 0.0
  %1671 = vmatpush1.msra.mxu0 0.0
  %1672 = vmatprep.subr.mxu0 0.0
  %1673 = vmatpush1.msra.mxu0 0.0
  %1674 = vmatprep.subr.mxu0 0.0
  %1675 = vmatpush1.msra.mxu0 0.0
  %1676 = vmatprep.subr.mxu0 0.0
  %1677 = vmatpush1.msra.mxu0 0.0
  %1678 = vmatprep.subr.mxu0 0.0
  %1679 = vmatpush1.msra.mxu0 0.0
  %1680 = vmatprep.subr.mxu0 0.0
  %1681 = vmatpush1.msra.mxu0 0.0
  %1682 = vmatprep.subr.mxu0 0.0
  %1683 = vmatpush1.msra.mxu0 0.0
  %1684 = vmatprep.mubr.f32.mxu0 0.0
  %1685 = vmatmul.mubr.f32.gmra.mrb[0].mxu0 %v1302
  %v1686 = vpop.f32.mrb[0].mxu0
  %v1687 = vadd.f32 0.0, %v1686
  %v1688 = vpop.f32.mrb[0].mxu0
  %v1689 = vadd.f32 0.0, %v1688
  %1690 = vdwg.mxu0
  %1691 = vmatprep.subr.mxu0 %v1326
  %1692 = vmatpush1.msra.mxu0 %v1324
  %1693 = vmatprep.subr.mxu0 0.0
  %1694 = vmatpush1.msra.mxu0 0.0
  %1695 = vmatprep.subr.mxu0 0.0
  %1696 = vmatpush1.msra.mxu0 0.0
  %1697 = vmatprep.subr.mxu0 0.0
  %1698 = vmatpush1.msra.mxu0 0.0
  %1699 = vmatprep.subr.mxu0 0.0
  %1700 = vmatpush1.msra.mxu0 0.0
  %1701 = vmatprep.subr.mxu0 0.0
  %1702 = vmatpush1.msra.mxu0 0.0
  %1703 = vmatprep.subr.mxu0 0.0
  %1704 = vmatpush1.msra.mxu0 0.0
  %1705 = vmatprep.subr.mxu0 0.0
  %1706 = vmatpush1.msra.mxu0 0.0
  %1707 = vmatprep.subr.mxu0 0.0
  %1708 = vmatpush1.msra.mxu0 0.0
  %1709 = vmatprep.subr.mxu0 0.0
  %1710 = vmatpush1.msra.mxu0 0.0
  %1711 = vmatprep.subr.mxu0 0.0
  %1712 = vmatpush1.msra.mxu0 0.0
  %1713 = vmatprep.subr.mxu0 0.0
  %1714 = vmatpush1.msra.mxu0 0.0
  %1715 = vmatprep.subr.mxu0 0.0
  %1716 = vmatpush1.msra.mxu0 0.0
  %1717 = vmatprep.subr.mxu0 0.0
  %1718 = vmatpush1.msra.mxu0 0.0
  %1719 = vmatprep.subr.mxu0 0.0
  %1720 = vmatpush1.msra.mxu0 0.0
  %1721 = vmatprep.subr.mxu0 0.0
  %1722 = vmatpush1.msra.mxu0 0.0
  %1723 = vmatprep.subr.mxu0 0.0
  %1724 = vmatpush1.msra.mxu0 0.0
  %1725 = vmatprep.subr.mxu0 0.0
  %1726 = vmatpush1.msra.mxu0 0.0
  %1727 = vmatprep.subr.mxu0 0.0
  %1728 = vmatpush1.msra.mxu0 0.0
  %1729 = vmatprep.subr.mxu0 0.0
  %1730 = vmatpush1.msra.mxu0 0.0
  %1731 = vmatprep.subr.mxu0 0.0
  %1732 = vmatpush1.msra.mxu0 0.0
  %1733 = vmatprep.subr.mxu0 0.0
  %1734 = vmatpush1.msra.mxu0 0.0
  %1735 = vmatprep.subr.mxu0 0.0
  %1736 = vmatpush1.msra.mxu0 0.0
  %1737 = vmatprep.subr.mxu0 0.0
  %1738 = vmatpush1.msra.mxu0 0.0
  %1739 = vmatprep.subr.mxu0 0.0
  %1740 = vmatpush1.msra.mxu0 0.0
  %1741 = vmatprep.subr.mxu0 0.0
  %1742 = vmatpush1.msra.mxu0 0.0
  %1743 = vmatprep.subr.mxu0 0.0
  %1744 = vmatpush1.msra.mxu0 0.0
  %1745 = vmatprep.subr.mxu0 0.0
  %1746 = vmatpush1.msra.mxu0 0.0
  %1747 = vmatprep.subr.mxu0 0.0
  %1748 = vmatpush1.msra.mxu0 0.0
  %1749 = vmatprep.subr.mxu0 0.0
  %1750 = vmatpush1.msra.mxu0 0.0
  %1751 = vmatprep.subr.mxu0 0.0
  %1752 = vmatpush1.msra.mxu0 0.0
  %1753 = vmatprep.subr.mxu0 0.0
  %1754 = vmatpush1.msra.mxu0 0.0
  %1755 = vmatprep.mubr.f32.mxu0 0.0
  %1756 = vmatmul.mubr.f32.gmra.mrb[0].mxu0 %v1302
  %v1757 = vpop.f32.mrb[0].mxu0
  %v1758 = vadd.f32 0.0, %v1757
  %v1759 = vpop.f32.mrb[0].mxu0
  %v1760 = vadd.f32 0.0, %v1759
  %1761 = vdwg.mxu0
  %1762 = vmatprep.subr.mxu0 %v1330
  %1763 = vmatpush1.msra.mxu0 %v1328
  %1764 = vmatprep.subr.mxu0 0.0
  %1765 = vmatpush1.msra.mxu0 0.0
  %1766 = vmatprep.subr.mxu0 0.0
  %1767 = vmatpush1.msra.mxu0 0.0
  %1768 = vmatprep.subr.mxu0 0.0
  %1769 = vmatpush1.msra.mxu0 0.0
  %1770 = vmatprep.subr.mxu0 0.0
  %1771 = vmatpush1.msra.mxu0 0.0
  %1772 = vmatprep.subr.mxu0 0.0
  %1773 = vmatpush1.msra.mxu0 0.0
  %1774 = vmatprep.subr.mxu0 0.0
  %1775 = vmatpush1.msra.mxu0 0.0
  %1776 = vmatprep.subr.mxu0 0.0
  %1777 = vmatpush1.msra.mxu0 0.0
  %1778 = vmatprep.subr.mxu0 0.0
  %1779 = vmatpush1.msra.mxu0 0.0
  %1780 = vmatprep.subr.mxu0 0.0
  %1781 = vmatpush1.msra.mxu0 0.0
  %1782 = vmatprep.subr.mxu0 0.0
  %1783 = vmatpush1.msra.mxu0 0.0
  %1784 = vmatprep.subr.mxu0 0.0
  %1785 = vmatpush1.msra.mxu0 0.0
  %1786 = vmatprep.subr.mxu0 0.0
  %1787 = vmatpush1.msra.mxu0 0.0
  %1788 = vmatprep.subr.mxu0 0.0
  %1789 = vmatpush1.msra.mxu0 0.0
  %1790 = vmatprep.subr.mxu0 0.0
  %1791 = vmatpush1.msra.mxu0 0.0
  %1792 = vmatprep.subr.mxu0 0.0
  %1793 = vmatpush1.msra.mxu0 0.0
  %1794 = vmatprep.subr.mxu0 0.0
  %1795 = vmatpush1.msra.mxu0 0.0
  %1796 = vmatprep.subr.mxu0 0.0
  %1797 = vmatpush1.msra.mxu0 0.0
  %1798 = vmatprep.subr.mxu0 0.0
  %1799 = vmatpush1.msra.mxu0 0.0
  %1800 = vmatprep.subr.mxu0 0.0
  %1801 = vmatpush1.msra.mxu0 0.0
  %1802 = vmatprep.subr.mxu0 0.0
  %1803 = vmatpush1.msra.mxu0 0.0
  %1804 = vmatprep.subr.mxu0 0.0
  %1805 = vmatpush1.msra.mxu0 0.0
  %1806 = vmatprep.subr.mxu0 0.0
  %1807 = vmatpush1.msra.mxu0 0.0
  %1808 = vmatprep.subr.mxu0 0.0
  %1809 = vmatpush1.msra.mxu0 0.0
  %1810 = vmatprep.subr.mxu0 0.0
  %1811 = vmatpush1.msra.mxu0 0.0
  %1812 = vmatprep.subr.mxu0 0.0
  %1813 = vmatpush1.msra.mxu0 0.0
  %1814 = vmatprep.subr.mxu0 0.0
  %1815 = vmatpush1.msra.mxu0 0.0
  %1816 = vmatprep.subr.mxu0 0.0
  %1817 = vmatpush1.msra.mxu0 0.0
  %1818 = vmatprep.subr.mxu0 0.0
  %1819 = vmatpush1.msra.mxu0 0.0
  %1820 = vmatprep.subr.mxu0 0.0
  %1821 = vmatpush1.msra.mxu0 0.0
  %1822 = vmatprep.subr.mxu0 0.0
  %1823 = vmatpush1.msra.mxu0 0.0
  %1824 = vmatprep.subr.mxu0 0.0
  %1825 = vmatpush1.msra.mxu0 0.0
  %1826 = vmatprep.mubr.f32.mxu0 0.0
  %1827 = vmatmul.mubr.f32.gmra.mrb[0].mxu0 %v1302
  %v1828 = vpop.f32.mrb[0].mxu0
  %v1829 = vadd.f32 0.0, %v1828
  %v1830 = vpop.f32.mrb[0].mxu0
  %v1831 = vadd.f32 0.0, %v1830
  %1832 = vdwg.mxu0
  %1833 = vmatprep.subr.mxu0 %v1334
  %1834 = vmatpush1.msra.mxu0 %v1332
  %1835 = vmatprep.subr.mxu0 0.0
  %1836 = vmatpush1.msra.mxu0 0.0
  %1837 = vmatprep.subr.mxu0 0.0
  %1838 = vmatpush1.msra.mxu0 0.0
  %1839 = vmatprep.subr.mxu0 0.0
  %1840 = vmatpush1.msra.mxu0 0.0
  %1841 = vmatprep.subr.mxu0 0.0
  %1842 = vmatpush1.msra.mxu0 0.0
  %1843 = vmatprep.subr.mxu0 0.0
  %1844 = vmatpush1.msra.mxu0 0.0
  %1845 = vmatprep.subr.mxu0 0.0
  %1846 = vmatpush1.msra.mxu0 0.0
  %1847 = vmatprep.subr.mxu0 0.0
  %1848 = vmatpush1.msra.mxu0 0.0
  %1849 = vmatprep.subr.mxu0 0.0
  %1850 = vmatpush1.msra.mxu0 0.0
  %1851 = vmatprep.subr.mxu0 0.0
  %1852 = vmatpush1.msra.mxu0 0.0
  %1853 = vmatprep.subr.mxu0 0.0
  %1854 = vmatpush1.msra.mxu0 0.0
  %1855 = vmatprep.subr.mxu0 0.0
  %1856 = vmatpush1.msra.mxu0 0.0
  %1857 = vmatprep.subr.mxu0 0.0
  %1858 = vmatpush1.msra.mxu0 0.0
  %1859 = vmatprep.subr.mxu0 0.0
  %1860 = vmatpush1.msra.mxu0 0.0
  %1861 = vmatprep.subr.mxu0 0.0
  %1862 = vmatpush1.msra.mxu0 0.0
  %1863 = vmatprep.subr.mxu0 0.0
  %1864 = vmatpush1.msra.mxu0 0.0
  %1865 = vmatprep.subr.mxu0 0.0
  %1866 = vmatpush1.msra.mxu0 0.0
  %1867 = vmatprep.subr.mxu0 0.0
  %1868 = vmatpush1.msra.mxu0 0.0
  %1869 = vmatprep.subr.mxu0 0.0
  %1870 = vmatpush1.msra.mxu0 0.0
  %1871 = vmatprep.subr.mxu0 0.0
  %1872 = vmatpush1.msra.mxu0 0.0
  %1873 = vmatprep.subr.mxu0 0.0
  %1874 = vmatpush1.msra.mxu0 0.0
  %1875 = vmatprep.subr.mxu0 0.0
  %1876 = vmatpush1.msra.mxu0 0.0
  %1877 = vmatprep.subr.mxu0 0.0
  %1878 = vmatpush1.msra.mxu0 0.0
  %1879 = vmatprep.subr.mxu0 0.0
  %1880 = vmatpush1.msra.mxu0 0.0
  %1881 = vmatprep.subr.mxu0 0.0
  %1882 = vmatpush1.msra.mxu0 0.0
  %1883 = vmatprep.subr.mxu0 0.0
  %1884 = vmatpush1.msra.mxu0 0.0
  %1885 = vmatprep.subr.mxu0 0.0
  %1886 = vmatpush1.msra.mxu0 0.0
  %1887 = vmatprep.subr.mxu0 0.0
  %1888 = vmatpush1.msra.mxu0 0.0
  %1889 = vmatprep.subr.mxu0 0.0
  %1890 = vmatpush1.msra.mxu0 0.0
  %1891 = vmatprep.subr.mxu0 0.0
  %1892 = vmatpush1.msra.mxu0 0.0
  %1893 = vmatprep.subr.mxu0 0.0
  %1894 = vmatpush1.msra.mxu0 0.0
  %1895 = vmatprep.subr.mxu0 0.0
  %1896 = vmatpush1.msra.mxu0 0.0
  %1897 = vmatprep.mubr.f32.mxu0 0.0
  %1898 = vmatmul.mubr.f32.gmra.mrb[0].mxu0 %v1302
  %v1899 = vpop.f32.mrb[0].mxu0
  %v1900 = vadd.f32 0.0, %v1899
  %v1901 = vpop.f32.mrb[0].mxu0
  %v1902 = vadd.f32 0.0, %v1901
  %1903 = vdwg.mxu0
  %v1904 = vadd.f32 %v774, %v1403
  %v1905 = vadd.f32 %v776, %v1405
  %v1906 = vadd.f32 %v845, %v1474
  %v1907 = vadd.f32 %v847, %v1476
  %v1908 = vadd.f32 %v916, %v1545
  %v1909 = vadd.f32 %v918, %v1547
  %v1910 = vadd.f32 %v987, %v1616
  %v1911 = vadd.f32 %v989, %v1618
  %v1912 = vadd.f32 %v1058, %v1687
  %v1913 = vadd.f32 %v1060, %v1689
  %v1914 = vadd.f32 %v1129, %v1758
  %v1915 = vadd.f32 %v1131, %v1760
  %v1916 = vadd.f32 %v1200, %v1829
  %v1917 = vadd.f32 %v1202, %v1831
  %v1918 = vadd.f32 %v1271, %v1900
  %v1919 = vadd.f32 %v1273, %v1902
  %v1920 = vld [vmem:[%s0 + $0xc] sm:$0xff]
  %v1921 = vld [vmem:[%s0 + $0x14] sm:$0xff]
  %v1922 = vld [vmem:[%s0 + $0x1c] sm:$0xff]
  %v1923 = vld [vmem:[%s0 + $0x24] sm:$0xff]
  %v1924 = vld [vmem:[%s0 + $0x2c] sm:$0xff]
  %v1925 = vld [vmem:[%s0 + $0x34] sm:$0xff]
  %v1926 = vld [vmem:[%s0 + $0x3c] sm:$0xff]
  %v1927 = vld [vmem:[%s0 + $0x44] sm:$0xff]
  %s1928 = scalar_lea.vmem %s1, 24
  %v1929 = vld [vmem:[%s1928] sm:$0xff]
  %v1938 = vcombine.high %v1920, %v1920
  %v1939 = vcombine.high %v1921, %v1921
  %v1940 = vcombine.high %v1922, %v1922
  %v1941 = vcombine.high %v1923, %v1923
  %v1942 = vcombine.high %v1924, %v1924
  %v1943 = vcombine.high %v1925, %v1925
  %v1944 = vcombine.high %v1926, %v1926
  %v1945 = vcombine.high %v1927, %v1927
  %v1947 = vsel %vm51, %v1929, 0
  %v1949 = vsel %vm55, %v1920, 0
  %v1951 = vsel %vm55, %v1938, 0
  %v1953 = vsel %vm55, %v1921, 0
  %v1955 = vsel %vm55, %v1939, 0
  %v1957 = vsel %vm55, %v1922, 0
  %v1959 = vsel %vm55, %v1940, 0
  %v1961 = vsel %vm55, %v1923, 0
  %v1963 = vsel %vm55, %v1941, 0
  %v1965 = vsel %vm55, %v1924, 0
  %v1967 = vsel %vm55, %v1942, 0
  %v1969 = vsel %vm55, %v1925, 0
  %v1971 = vsel %vm55, %v1943, 0
  %v1973 = vsel %vm55, %v1926, 0
  %v1975 = vsel %vm55, %v1944, 0
  %v1977 = vsel %vm55, %v1927, 0
  %v1979 = vsel %vm55, %v1945, 0
  %1981 = vmatprep.subr.mxu0 %v1951
  %1982 = vmatpush1.msra.mxu0 %v1949
  %1983 = vmatprep.subr.mxu0 0.0
  %1984 = vmatpush1.msra.mxu0 0.0
  %1985 = vmatprep.subr.mxu0 0.0
  %1986 = vmatpush1.msra.mxu0 0.0
  %1987 = vmatprep.subr.mxu0 0.0
  %1988 = vmatpush1.msra.mxu0 0.0
  %1989 = vmatprep.subr.mxu0 0.0
  %1990 = vmatpush1.msra.mxu0 0.0
  %1991 = vmatprep.subr.mxu0 0.0
  %1992 = vmatpush1.msra.mxu0 0.0
  %1993 = vmatprep.subr.mxu0 0.0
  %1994 = vmatpush1.msra.mxu0 0.0
  %1995 = vmatprep.subr.mxu0 0.0
  %1996 = vmatpush1.msra.mxu0 0.0
  %1997 = vmatprep.subr.mxu0 0.0
  %1998 = vmatpush1.msra.mxu0 0.0
  %1999 = vmatprep.subr.mxu0 0.0
  %2000 = vmatpush1.msra.mxu0 0.0
  %2001 = vmatprep.subr.mxu0 0.0
  %2002 = vmatpush1.msra.mxu0 0.0
  %2003 = vmatprep.subr.mxu0 0.0
  %2004 = vmatpush1.msra.mxu0 0.0
  %2005 = vmatprep.subr.mxu0 0.0
  %2006 = vmatpush1.msra.mxu0 0.0
  %2007 = vmatprep.subr.mxu0 0.0
  %2008 = vmatpush1.msra.mxu0 0.0
  %2009 = vmatprep.subr.mxu0 0.0
  %2010 = vmatpush1.msra.mxu0 0.0
  %2011 = vmatprep.subr.mxu0 0.0
  %2012 = vmatpush1.msra.mxu0 0.0
  %2013 = vmatprep.subr.mxu0 0.0
  %2014 = vmatpush1.msra.mxu0 0.0
  %2015 = vmatprep.subr.mxu0 0.0
  %2016 = vmatpush1.msra.mxu0 0.0
  %2017 = vmatprep.subr.mxu0 0.0
  %2018 = vmatpush1.msra.mxu0 0.0
  %2019 = vmatprep.subr.mxu0 0.0
  %2020 = vmatpush1.msra.mxu0 0.0
  %2021 = vmatprep.subr.mxu0 0.0
  %2022 = vmatpush1.msra.mxu0 0.0
  %2023 = vmatprep.subr.mxu0 0.0
  %2024 = vmatpush1.msra.mxu0 0.0
  %2025 = vmatprep.subr.mxu0 0.0
  %2026 = vmatpush1.msra.mxu0 0.0
  %2027 = vmatprep.subr.mxu0 0.0
  %2028 = vmatpush1.msra.mxu0 0.0
  %2029 = vmatprep.subr.mxu0 0.0
  %2030 = vmatpush1.msra.mxu0 0.0
  %2031 = vmatprep.subr.mxu0 0.0
  %2032 = vmatpush1.msra.mxu0 0.0
  %2033 = vmatprep.subr.mxu0 0.0
  %2034 = vmatpush1.msra.mxu0 0.0
  %2035 = vmatprep.subr.mxu0 0.0
  %2036 = vmatpush1.msra.mxu0 0.0
  %2037 = vmatprep.subr.mxu0 0.0
  %2038 = vmatpush1.msra.mxu0 0.0
  %2039 = vmatprep.subr.mxu0 0.0
  %2040 = vmatpush1.msra.mxu0 0.0
  %2041 = vmatprep.subr.mxu0 0.0
  %2042 = vmatpush1.msra.mxu0 0.0
  %2043 = vmatprep.subr.mxu0 0.0
  %2044 = vmatpush1.msra.mxu0 0.0
  %2045 = vmatprep.mubr.f32.mxu0 0.0
  %2046 = vmatmul.mubr.f32.gmra.mrb[0].mxu0 %v1947
  %v2047 = vpop.f32.mrb[0].mxu0
  %v2048 = vadd.f32 0.0, %v2047
  %v2049 = vpop.f32.mrb[0].mxu0
  %v2050 = vadd.f32 0.0, %v2049
  %2051 = vdwg.mxu0
  %2052 = vmatprep.subr.mxu0 %v1955
  %2053 = vmatpush1.msra.mxu0 %v1953
  %2054 = vmatprep.subr.mxu0 0.0
  %2055 = vmatpush1.msra.mxu0 0.0
  %2056 = vmatprep.subr.mxu0 0.0
  %2057 = vmatpush1.msra.mxu0 0.0
  %2058 = vmatprep.subr.mxu0 0.0
  %2059 = vmatpush1.msra.mxu0 0.0
  %2060 = vmatprep.subr.mxu0 0.0
  %2061 = vmatpush1.msra.mxu0 0.0
  %2062 = vmatprep.subr.mxu0 0.0
  %2063 = vmatpush1.msra.mxu0 0.0
  %2064 = vmatprep.subr.mxu0 0.0
  %2065 = vmatpush1.msra.mxu0 0.0
  %2066 = vmatprep.subr.mxu0 0.0
  %2067 = vmatpush1.msra.mxu0 0.0
  %2068 = vmatprep.subr.mxu0 0.0
  %2069 = vmatpush1.msra.mxu0 0.0
  %2070 = vmatprep.subr.mxu0 0.0
  %2071 = vmatpush1.msra.mxu0 0.0
  %2072 = vmatprep.subr.mxu0 0.0
  %2073 = vmatpush1.msra.mxu0 0.0
  %2074 = vmatprep.subr.mxu0 0.0
  %2075 = vmatpush1.msra.mxu0 0.0
  %2076 = vmatprep.subr.mxu0 0.0
  %2077 = vmatpush1.msra.mxu0 0.0
  %2078 = vmatprep.subr.mxu0 0.0
  %2079 = vmatpush1.msra.mxu0 0.0
  %2080 = vmatprep.subr.mxu0 0.0
  %2081 = vmatpush1.msra.mxu0 0.0
  %2082 = vmatprep.subr.mxu0 0.0
  %2083 = vmatpush1.msra.mxu0 0.0
  %2084 = vmatprep.subr.mxu0 0.0
  %2085 = vmatpush1.msra.mxu0 0.0
  %2086 = vmatprep.subr.mxu0 0.0
  %2087 = vmatpush1.msra.mxu0 0.0
  %2088 = vmatprep.subr.mxu0 0.0
  %2089 = vmatpush1.msra.mxu0 0.0
  %2090 = vmatprep.subr.mxu0 0.0
  %2091 = vmatpush1.msra.mxu0 0.0
  %2092 = vmatprep.subr.mxu0 0.0
  %2093 = vmatpush1.msra.mxu0 0.0
  %2094 = vmatprep.subr.mxu0 0.0
  %2095 = vmatpush1.msra.mxu0 0.0
  %2096 = vmatprep.subr.mxu0 0.0
  %2097 = vmatpush1.msra.mxu0 0.0
  %2098 = vmatprep.subr.mxu0 0.0
  %2099 = vmatpush1.msra.mxu0 0.0
  %2100 = vmatprep.subr.mxu0 0.0
  %2101 = vmatpush1.msra.mxu0 0.0
  %2102 = vmatprep.subr.mxu0 0.0
  %2103 = vmatpush1.msra.mxu0 0.0
  %2104 = vmatprep.subr.mxu0 0.0
  %2105 = vmatpush1.msra.mxu0 0.0
  %2106 = vmatprep.subr.mxu0 0.0
  %2107 = vmatpush1.msra.mxu0 0.0
  %2108 = vmatprep.subr.mxu0 0.0
  %2109 = vmatpush1.msra.mxu0 0.0
  %2110 = vmatprep.subr.mxu0 0.0
  %2111 = vmatpush1.msra.mxu0 0.0
  %2112 = vmatprep.subr.mxu0 0.0
  %2113 = vmatpush1.msra.mxu0 0.0
  %2114 = vmatprep.subr.mxu0 0.0
  %2115 = vmatpush1.msra.mxu0 0.0
  %2116 = vmatprep.mubr.f32.mxu0 0.0
  %2117 = vmatmul.mubr.f32.gmra.mrb[0].mxu0 %v1947
  %v2118 = vpop.f32.mrb[0].mxu0
  %v2119 = vadd.f32 0.0, %v2118
  %v2120 = vpop.f32.mrb[0].mxu0
  %v2121 = vadd.f32 0.0, %v2120
  %2122 = vdwg.mxu0
  %2123 = vmatprep.subr.mxu0 %v1959
  %2124 = vmatpush1.msra.mxu0 %v1957
  %2125 = vmatprep.subr.mxu0 0.0
  %2126 = vmatpush1.msra.mxu0 0.0
  %2127 = vmatprep.subr.mxu0 0.0
  %2128 = vmatpush1.msra.mxu0 0.0
  %2129 = vmatprep.subr.mxu0 0.0
  %2130 = vmatpush1.msra.mxu0 0.0
  %2131 = vmatprep.subr.mxu0 0.0
  %2132 = vmatpush1.msra.mxu0 0.0
  %2133 = vmatprep.subr.mxu0 0.0
  %2134 = vmatpush1.msra.mxu0 0.0
  %2135 = vmatprep.subr.mxu0 0.0
  %2136 = vmatpush1.msra.mxu0 0.0
  %2137 = vmatprep.subr.mxu0 0.0
  %2138 = vmatpush1.msra.mxu0 0.0
  %2139 = vmatprep.subr.mxu0 0.0
  %2140 = vmatpush1.msra.mxu0 0.0
  %2141 = vmatprep.subr.mxu0 0.0
  %2142 = vmatpush1.msra.mxu0 0.0
  %2143 = vmatprep.subr.mxu0 0.0
  %2144 = vmatpush1.msra.mxu0 0.0
  %2145 = vmatprep.subr.mxu0 0.0
  %2146 = vmatpush1.msra.mxu0 0.0
  %2147 = vmatprep.subr.mxu0 0.0
  %2148 = vmatpush1.msra.mxu0 0.0
  %2149 = vmatprep.subr.mxu0 0.0
  %2150 = vmatpush1.msra.mxu0 0.0
  %2151 = vmatprep.subr.mxu0 0.0
  %2152 = vmatpush1.msra.mxu0 0.0
  %2153 = vmatprep.subr.mxu0 0.0
  %2154 = vmatpush1.msra.mxu0 0.0
  %2155 = vmatprep.subr.mxu0 0.0
  %2156 = vmatpush1.msra.mxu0 0.0
  %2157 = vmatprep.subr.mxu0 0.0
  %2158 = vmatpush1.msra.mxu0 0.0
  %2159 = vmatprep.subr.mxu0 0.0
  %2160 = vmatpush1.msra.mxu0 0.0
  %2161 = vmatprep.subr.mxu0 0.0
  %2162 = vmatpush1.msra.mxu0 0.0
  %2163 = vmatprep.subr.mxu0 0.0
  %2164 = vmatpush1.msra.mxu0 0.0
  %2165 = vmatprep.subr.mxu0 0.0
  %2166 = vmatpush1.msra.mxu0 0.0
  %2167 = vmatprep.subr.mxu0 0.0
  %2168 = vmatpush1.msra.mxu0 0.0
  %2169 = vmatprep.subr.mxu0 0.0
  %2170 = vmatpush1.msra.mxu0 0.0
  %2171 = vmatprep.subr.mxu0 0.0
  %2172 = vmatpush1.msra.mxu0 0.0
  %2173 = vmatprep.subr.mxu0 0.0
  %2174 = vmatpush1.msra.mxu0 0.0
  %2175 = vmatprep.subr.mxu0 0.0
  %2176 = vmatpush1.msra.mxu0 0.0
  %2177 = vmatprep.subr.mxu0 0.0
  %2178 = vmatpush1.msra.mxu0 0.0
  %2179 = vmatprep.subr.mxu0 0.0
  %2180 = vmatpush1.msra.mxu0 0.0
  %2181 = vmatprep.subr.mxu0 0.0
  %2182 = vmatpush1.msra.mxu0 0.0
  %2183 = vmatprep.subr.mxu0 0.0
  %2184 = vmatpush1.msra.mxu0 0.0
  %2185 = vmatprep.subr.mxu0 0.0
  %2186 = vmatpush1.msra.mxu0 0.0
  %2187 = vmatprep.mubr.f32.mxu0 0.0
  %2188 = vmatmul.mubr.f32.gmra.mrb[0].mxu0 %v1947
  %v2189 = vpop.f32.mrb[0].mxu0
  %v2190 = vadd.f32 0.0, %v2189
  %v2191 = vpop.f32.mrb[0].mxu0
  %v2192 = vadd.f32 0.0, %v2191
  %2193 = vdwg.mxu0
  %2194 = vmatprep.subr.mxu0 %v1963
  %2195 = vmatpush1.msra.mxu0 %v1961
  %2196 = vmatprep.subr.mxu0 0.0
  %2197 = vmatpush1.msra.mxu0 0.0
  %2198 = vmatprep.subr.mxu0 0.0
  %2199 = vmatpush1.msra.mxu0 0.0
  %2200 = vmatprep.subr.mxu0 0.0
  %2201 = vmatpush1.msra.mxu0 0.0
  %2202 = vmatprep.subr.mxu0 0.0
  %2203 = vmatpush1.msra.mxu0 0.0
  %2204 = vmatprep.subr.mxu0 0.0
  %2205 = vmatpush1.msra.mxu0 0.0
  %2206 = vmatprep.subr.mxu0 0.0
  %2207 = vmatpush1.msra.mxu0 0.0
  %2208 = vmatprep.subr.mxu0 0.0
  %2209 = vmatpush1.msra.mxu0 0.0
  %2210 = vmatprep.subr.mxu0 0.0
  %2211 = vmatpush1.msra.mxu0 0.0
  %2212 = vmatprep.subr.mxu0 0.0
  %2213 = vmatpush1.msra.mxu0 0.0
  %2214 = vmatprep.subr.mxu0 0.0
  %2215 = vmatpush1.msra.mxu0 0.0
  %2216 = vmatprep.subr.mxu0 0.0
  %2217 = vmatpush1.msra.mxu0 0.0
  %2218 = vmatprep.subr.mxu0 0.0
  %2219 = vmatpush1.msra.mxu0 0.0
  %2220 = vmatprep.subr.mxu0 0.0
  %2221 = vmatpush1.msra.mxu0 0.0
  %2222 = vmatprep.subr.mxu0 0.0
  %2223 = vmatpush1.msra.mxu0 0.0
  %2224 = vmatprep.subr.mxu0 0.0
  %2225 = vmatpush1.msra.mxu0 0.0
  %2226 = vmatprep.subr.mxu0 0.0
  %2227 = vmatpush1.msra.mxu0 0.0
  %2228 = vmatprep.subr.mxu0 0.0
  %2229 = vmatpush1.msra.mxu0 0.0
  %2230 = vmatprep.subr.mxu0 0.0
  %2231 = vmatpush1.msra.mxu0 0.0
  %2232 = vmatprep.subr.mxu0 0.0
  %2233 = vmatpush1.msra.mxu0 0.0
  %2234 = vmatprep.subr.mxu0 0.0
  %2235 = vmatpush1.msra.mxu0 0.0
  %2236 = vmatprep.subr.mxu0 0.0
  %2237 = vmatpush1.msra.mxu0 0.0
  %2238 = vmatprep.subr.mxu0 0.0
  %2239 = vmatpush1.msra.mxu0 0.0
  %2240 = vmatprep.subr.mxu0 0.0
  %2241 = vmatpush1.msra.mxu0 0.0
  %2242 = vmatprep.subr.mxu0 0.0
  %2243 = vmatpush1.msra.mxu0 0.0
  %2244 = vmatprep.subr.mxu0 0.0
  %2245 = vmatpush1.msra.mxu0 0.0
  %2246 = vmatprep.subr.mxu0 0.0
  %2247 = vmatpush1.msra.mxu0 0.0
  %2248 = vmatprep.subr.mxu0 0.0
  %2249 = vmatpush1.msra.mxu0 0.0
  %2250 = vmatprep.subr.mxu0 0.0
  %2251 = vmatpush1.msra.mxu0 0.0
  %2252 = vmatprep.subr.mxu0 0.0
  %2253 = vmatpush1.msra.mxu0 0.0
  %2254 = vmatprep.subr.mxu0 0.0
  %2255 = vmatpush1.msra.mxu0 0.0
  %2256 = vmatprep.subr.mxu0 0.0
  %2257 = vmatpush1.msra.mxu0 0.0
  %2258 = vmatprep.mubr.f32.mxu0 0.0
  %2259 = vmatmul.mubr.f32.gmra.mrb[0].mxu0 %v1947
  %v2260 = vpop.f32.mrb[0].mxu0
  %v2261 = vadd.f32 0.0, %v2260
  %v2262 = vpop.f32.mrb[0].mxu0
  %v2263 = vadd.f32 0.0, %v2262
  %2264 = vdwg.mxu0
  %2265 = vmatprep.subr.mxu0 %v1967
  %2266 = vmatpush1.msra.mxu0 %v1965
  %2267 = vmatprep.subr.mxu0 0.0
  %2268 = vmatpush1.msra.mxu0 0.0
  %2269 = vmatprep.subr.mxu0 0.0
  %2270 = vmatpush1.msra.mxu0 0.0
  %2271 = vmatprep.subr.mxu0 0.0
  %2272 = vmatpush1.msra.mxu0 0.0
  %2273 = vmatprep.subr.mxu0 0.0
  %2274 = vmatpush1.msra.mxu0 0.0
  %2275 = vmatprep.subr.mxu0 0.0
  %2276 = vmatpush1.msra.mxu0 0.0
  %2277 = vmatprep.subr.mxu0 0.0
  %2278 = vmatpush1.msra.mxu0 0.0
  %2279 = vmatprep.subr.mxu0 0.0
  %2280 = vmatpush1.msra.mxu0 0.0
  %2281 = vmatprep.subr.mxu0 0.0
  %2282 = vmatpush1.msra.mxu0 0.0
  %2283 = vmatprep.subr.mxu0 0.0
  %2284 = vmatpush1.msra.mxu0 0.0
  %2285 = vmatprep.subr.mxu0 0.0
  %2286 = vmatpush1.msra.mxu0 0.0
  %2287 = vmatprep.subr.mxu0 0.0
  %2288 = vmatpush1.msra.mxu0 0.0
  %2289 = vmatprep.subr.mxu0 0.0
  %2290 = vmatpush1.msra.mxu0 0.0
  %2291 = vmatprep.subr.mxu0 0.0
  %2292 = vmatpush1.msra.mxu0 0.0
  %2293 = vmatprep.subr.mxu0 0.0
  %2294 = vmatpush1.msra.mxu0 0.0
  %2295 = vmatprep.subr.mxu0 0.0
  %2296 = vmatpush1.msra.mxu0 0.0
  %2297 = vmatprep.subr.mxu0 0.0
  %2298 = vmatpush1.msra.mxu0 0.0
  %2299 = vmatprep.subr.mxu0 0.0
  %2300 = vmatpush1.msra.mxu0 0.0
  %2301 = vmatprep.subr.mxu0 0.0
  %2302 = vmatpush1.msra.mxu0 0.0
  %2303 = vmatprep.subr.mxu0 0.0
  %2304 = vmatpush1.msra.mxu0 0.0
  %2305 = vmatprep.subr.mxu0 0.0
  %2306 = vmatpush1.msra.mxu0 0.0
  %2307 = vmatprep.subr.mxu0 0.0
  %2308 = vmatpush1.msra.mxu0 0.0
  %2309 = vmatprep.subr.mxu0 0.0
  %2310 = vmatpush1.msra.mxu0 0.0
  %2311 = vmatprep.subr.mxu0 0.0
  %2312 = vmatpush1.msra.mxu0 0.0
  %2313 = vmatprep.subr.mxu0 0.0
  %2314 = vmatpush1.msra.mxu0 0.0
  %2315 = vmatprep.subr.mxu0 0.0
  %2316 = vmatpush1.msra.mxu0 0.0
  %2317 = vmatprep.subr.mxu0 0.0
  %2318 = vmatpush1.msra.mxu0 0.0
  %2319 = vmatprep.subr.mxu0 0.0
  %2320 = vmatpush1.msra.mxu0 0.0
  %2321 = vmatprep.subr.mxu0 0.0
  %2322 = vmatpush1.msra.mxu0 0.0
  %2323 = vmatprep.subr.mxu0 0.0
  %2324 = vmatpush1.msra.mxu0 0.0
  %2325 = vmatprep.subr.mxu0 0.0
  %2326 = vmatpush1.msra.mxu0 0.0
  %2327 = vmatprep.subr.mxu0 0.0
  %2328 = vmatpush1.msra.mxu0 0.0
  %2329 = vmatprep.mubr.f32.mxu0 0.0
  %2330 = vmatmul.mubr.f32.gmra.mrb[0].mxu0 %v1947
  %v2331 = vpop.f32.mrb[0].mxu0
  %v2332 = vadd.f32 0.0, %v2331
  %v2333 = vpop.f32.mrb[0].mxu0
  %v2334 = vadd.f32 0.0, %v2333
  %2335 = vdwg.mxu0
  %2336 = vmatprep.subr.mxu0 %v1971
  %2337 = vmatpush1.msra.mxu0 %v1969
  %2338 = vmatprep.subr.mxu0 0.0
  %2339 = vmatpush1.msra.mxu0 0.0
  %2340 = vmatprep.subr.mxu0 0.0
  %2341 = vmatpush1.msra.mxu0 0.0
  %2342 = vmatprep.subr.mxu0 0.0
  %2343 = vmatpush1.msra.mxu0 0.0
  %2344 = vmatprep.subr.mxu0 0.0
  %2345 = vmatpush1.msra.mxu0 0.0
  %2346 = vmatprep.subr.mxu0 0.0
  %2347 = vmatpush1.msra.mxu0 0.0
  %2348 = vmatprep.subr.mxu0 0.0
  %2349 = vmatpush1.msra.mxu0 0.0
  %2350 = vmatprep.subr.mxu0 0.0
  %2351 = vmatpush1.msra.mxu0 0.0
  %2352 = vmatprep.subr.mxu0 0.0
  %2353 = vmatpush1.msra.mxu0 0.0
  %2354 = vmatprep.subr.mxu0 0.0
  %2355 = vmatpush1.msra.mxu0 0.0
  %2356 = vmatprep.subr.mxu0 0.0
  %2357 = vmatpush1.msra.mxu0 0.0
  %2358 = vmatprep.subr.mxu0 0.0
  %2359 = vmatpush1.msra.mxu0 0.0
  %2360 = vmatprep.subr.mxu0 0.0
  %2361 = vmatpush1.msra.mxu0 0.0
  %2362 = vmatprep.subr.mxu0 0.0
  %2363 = vmatpush1.msra.mxu0 0.0
  %2364 = vmatprep.subr.mxu0 0.0
  %2365 = vmatpush1.msra.mxu0 0.0
  %2366 = vmatprep.subr.mxu0 0.0
  %2367 = vmatpush1.msra.mxu0 0.0
  %2368 = vmatprep.subr.mxu0 0.0
  %2369 = vmatpush1.msra.mxu0 0.0
  %2370 = vmatprep.subr.mxu0 0.0
  %2371 = vmatpush1.msra.mxu0 0.0
  %2372 = vmatprep.subr.mxu0 0.0
  %2373 = vmatpush1.msra.mxu0 0.0
  %2374 = vmatprep.subr.mxu0 0.0
  %2375 = vmatpush1.msra.mxu0 0.0
  %2376 = vmatprep.subr.mxu0 0.0
  %2377 = vmatpush1.msra.mxu0 0.0
  %2378 = vmatprep.subr.mxu0 0.0
  %2379 = vmatpush1.msra.mxu0 0.0
  %2380 = vmatprep.subr.mxu0 0.0
  %2381 = vmatpush1.msra.mxu0 0.0
  %2382 = vmatprep.subr.mxu0 0.0
  %2383 = vmatpush1.msra.mxu0 0.0
  %2384 = vmatprep.subr.mxu0 0.0
  %2385 = vmatpush1.msra.mxu0 0.0
  %2386 = vmatprep.subr.mxu0 0.0
  %2387 = vmatpush1.msra.mxu0 0.0
  %2388 = vmatprep.subr.mxu0 0.0
  %2389 = vmatpush1.msra.mxu0 0.0
  %2390 = vmatprep.subr.mxu0 0.0
  %2391 = vmatpush1.msra.mxu0 0.0
  %2392 = vmatprep.subr.mxu0 0.0
  %2393 = vmatpush1.msra.mxu0 0.0
  %2394 = vmatprep.subr.mxu0 0.0
  %2395 = vmatpush1.msra.mxu0 0.0
  %2396 = vmatprep.subr.mxu0 0.0
  %2397 = vmatpush1.msra.mxu0 0.0
  %2398 = vmatprep.subr.mxu0 0.0
  %2399 = vmatpush1.msra.mxu0 0.0
  %2400 = vmatprep.mubr.f32.mxu0 0.0
  %2401 = vmatmul.mubr.f32.gmra.mrb[0].mxu0 %v1947
  %v2402 = vpop.f32.mrb[0].mxu0
  %v2403 = vadd.f32 0.0, %v2402
  %v2404 = vpop.f32.mrb[0].mxu0
  %v2405 = vadd.f32 0.0, %v2404
  %2406 = vdwg.mxu0
  %2407 = vmatprep.subr.mxu0 %v1975
  %2408 = vmatpush1.msra.mxu0 %v1973
  %2409 = vmatprep.subr.mxu0 0.0
  %2410 = vmatpush1.msra.mxu0 0.0
  %2411 = vmatprep.subr.mxu0 0.0
  %2412 = vmatpush1.msra.mxu0 0.0
  %2413 = vmatprep.subr.mxu0 0.0
  %2414 = vmatpush1.msra.mxu0 0.0
  %2415 = vmatprep.subr.mxu0 0.0
  %2416 = vmatpush1.msra.mxu0 0.0
  %2417 = vmatprep.subr.mxu0 0.0
  %2418 = vmatpush1.msra.mxu0 0.0
  %2419 = vmatprep.subr.mxu0 0.0
  %2420 = vmatpush1.msra.mxu0 0.0
  %2421 = vmatprep.subr.mxu0 0.0
  %2422 = vmatpush1.msra.mxu0 0.0
  %2423 = vmatprep.subr.mxu0 0.0
  %2424 = vmatpush1.msra.mxu0 0.0
  %2425 = vmatprep.subr.mxu0 0.0
  %2426 = vmatpush1.msra.mxu0 0.0
  %2427 = vmatprep.subr.mxu0 0.0
  %2428 = vmatpush1.msra.mxu0 0.0
  %2429 = vmatprep.subr.mxu0 0.0
  %2430 = vmatpush1.msra.mxu0 0.0
  %2431 = vmatprep.subr.mxu0 0.0
  %2432 = vmatpush1.msra.mxu0 0.0
  %2433 = vmatprep.subr.mxu0 0.0
  %2434 = vmatpush1.msra.mxu0 0.0
  %2435 = vmatprep.subr.mxu0 0.0
  %2436 = vmatpush1.msra.mxu0 0.0
  %2437 = vmatprep.subr.mxu0 0.0
  %2438 = vmatpush1.msra.mxu0 0.0
  %2439 = vmatprep.subr.mxu0 0.0
  %2440 = vmatpush1.msra.mxu0 0.0
  %2441 = vmatprep.subr.mxu0 0.0
  %2442 = vmatpush1.msra.mxu0 0.0
  %2443 = vmatprep.subr.mxu0 0.0
  %2444 = vmatpush1.msra.mxu0 0.0
  %2445 = vmatprep.subr.mxu0 0.0
  %2446 = vmatpush1.msra.mxu0 0.0
  %2447 = vmatprep.subr.mxu0 0.0
  %2448 = vmatpush1.msra.mxu0 0.0
  %2449 = vmatprep.subr.mxu0 0.0
  %2450 = vmatpush1.msra.mxu0 0.0
  %2451 = vmatprep.subr.mxu0 0.0
  %2452 = vmatpush1.msra.mxu0 0.0
  %2453 = vmatprep.subr.mxu0 0.0
  %2454 = vmatpush1.msra.mxu0 0.0
  %2455 = vmatprep.subr.mxu0 0.0
  %2456 = vmatpush1.msra.mxu0 0.0
  %2457 = vmatprep.subr.mxu0 0.0
  %2458 = vmatpush1.msra.mxu0 0.0
  %2459 = vmatprep.subr.mxu0 0.0
  %2460 = vmatpush1.msra.mxu0 0.0
  %2461 = vmatprep.subr.mxu0 0.0
  %2462 = vmatpush1.msra.mxu0 0.0
  %2463 = vmatprep.subr.mxu0 0.0
  %2464 = vmatpush1.msra.mxu0 0.0
  %2465 = vmatprep.subr.mxu0 0.0
  %2466 = vmatpush1.msra.mxu0 0.0
  %2467 = vmatprep.subr.mxu0 0.0
  %2468 = vmatpush1.msra.mxu0 0.0
  %2469 = vmatprep.subr.mxu0 0.0
  %2470 = vmatpush1.msra.mxu0 0.0
  %2471 = vmatprep.mubr.f32.mxu0 0.0
  %2472 = vmatmul.mubr.f32.gmra.mrb[0].mxu0 %v1947
  %v2473 = vpop.f32.mrb[0].mxu0
  %v2474 = vadd.f32 0.0, %v2473
  %v2475 = vpop.f32.mrb[0].mxu0
  %v2476 = vadd.f32 0.0, %v2475
  %2477 = vdwg.mxu0
  %2478 = vmatprep.subr.mxu0 %v1979
  %2479 = vmatpush1.msra.mxu0 %v1977
  %2480 = vmatprep.subr.mxu0 0.0
  %2481 = vmatpush1.msra.mxu0 0.0
  %2482 = vmatprep.subr.mxu0 0.0
  %2483 = vmatpush1.msra.mxu0 0.0
  %2484 = vmatprep.subr.mxu0 0.0
  %2485 = vmatpush1.msra.mxu0 0.0
  %2486 = vmatprep.subr.mxu0 0.0
  %2487 = vmatpush1.msra.mxu0 0.0
  %2488 = vmatprep.subr.mxu0 0.0
  %2489 = vmatpush1.msra.mxu0 0.0
  %2490 = vmatprep.subr.mxu0 0.0
  %2491 = vmatpush1.msra.mxu0 0.0
  %2492 = vmatprep.subr.mxu0 0.0
  %2493 = vmatpush1.msra.mxu0 0.0
  %2494 = vmatprep.subr.mxu0 0.0
  %2495 = vmatpush1.msra.mxu0 0.0
  %2496 = vmatprep.subr.mxu0 0.0
  %2497 = vmatpush1.msra.mxu0 0.0
  %2498 = vmatprep.subr.mxu0 0.0
  %2499 = vmatpush1.msra.mxu0 0.0
  %2500 = vmatprep.subr.mxu0 0.0
  %2501 = vmatpush1.msra.mxu0 0.0
  %2502 = vmatprep.subr.mxu0 0.0
  %2503 = vmatpush1.msra.mxu0 0.0
  %2504 = vmatprep.subr.mxu0 0.0
  %2505 = vmatpush1.msra.mxu0 0.0
  %2506 = vmatprep.subr.mxu0 0.0
  %2507 = vmatpush1.msra.mxu0 0.0
  %2508 = vmatprep.subr.mxu0 0.0
  %2509 = vmatpush1.msra.mxu0 0.0
  %2510 = vmatprep.subr.mxu0 0.0
  %2511 = vmatpush1.msra.mxu0 0.0
  %2512 = vmatprep.subr.mxu0 0.0
  %2513 = vmatpush1.msra.mxu0 0.0
  %2514 = vmatprep.subr.mxu0 0.0
  %2515 = vmatpush1.msra.mxu0 0.0
  %2516 = vmatprep.subr.mxu0 0.0
  %2517 = vmatpush1.msra.mxu0 0.0
  %2518 = vmatprep.subr.mxu0 0.0
  %2519 = vmatpush1.msra.mxu0 0.0
  %2520 = vmatprep.subr.mxu0 0.0
  %2521 = vmatpush1.msra.mxu0 0.0
  %2522 = vmatprep.subr.mxu0 0.0
  %2523 = vmatpush1.msra.mxu0 0.0
  %2524 = vmatprep.subr.mxu0 0.0
  %2525 = vmatpush1.msra.mxu0 0.0
  %2526 = vmatprep.subr.mxu0 0.0
  %2527 = vmatpush1.msra.mxu0 0.0
  %2528 = vmatprep.subr.mxu0 0.0
  %2529 = vmatpush1.msra.mxu0 0.0
  %2530 = vmatprep.subr.mxu0 0.0
  %2531 = vmatpush1.msra.mxu0 0.0
  %2532 = vmatprep.subr.mxu0 0.0
  %2533 = vmatpush1.msra.mxu0 0.0
  %2534 = vmatprep.subr.mxu0 0.0
  %2535 = vmatpush1.msra.mxu0 0.0
  %2536 = vmatprep.subr.mxu0 0.0
  %2537 = vmatpush1.msra.mxu0 0.0
  %2538 = vmatprep.subr.mxu0 0.0
  %2539 = vmatpush1.msra.mxu0 0.0
  %2540 = vmatprep.subr.mxu0 0.0
  %2541 = vmatpush1.msra.mxu0 0.0
  %2542 = vmatprep.mubr.f32.mxu0 0.0
  %2543 = vmatmul.mubr.f32.gmra.mrb[0].mxu0 %v1947
  %v2544 = vpop.f32.mrb[0].mxu0
  %v2545 = vadd.f32 0.0, %v2544
  %v2546 = vpop.f32.mrb[0].mxu0
  %v2547 = vadd.f32 0.0, %v2546
  %2548 = vdwg.mxu0
  %v2549 = vadd.f32 %v1904, %v2048
  %v2550 = vadd.f32 %v1905, %v2050
  %v2551 = vadd.f32 %v1906, %v2119
  %v2552 = vadd.f32 %v1907, %v2121
  %v2553 = vadd.f32 %v1908, %v2190
  %v2554 = vadd.f32 %v1909, %v2192
  %v2555 = vadd.f32 %v1910, %v2261
  %v2556 = vadd.f32 %v1911, %v2263
  %v2557 = vadd.f32 %v1912, %v2332
  %v2558 = vadd.f32 %v1913, %v2334
  %v2559 = vadd.f32 %v1914, %v2403
  %v2560 = vadd.f32 %v1915, %v2405
  %v2561 = vadd.f32 %v1916, %v2474
  %v2562 = vadd.f32 %v1917, %v2476
  %v2563 = vadd.f32 %v1918, %v2545
  %v2564 = vadd.f32 %v1919, %v2547
  %v2565 = vld [vmem:[%s0 + $0x10] sm:$0xff]
  %v2566 = vld [vmem:[%s0 + $0x18] sm:$0xff]
  %v2567 = vld [vmem:[%s0 + $0x20] sm:$0xff]
  %v2568 = vld [vmem:[%s0 + $0x28] sm:$0xff]
  %v2569 = vld [vmem:[%s0 + $0x30] sm:$0xff]
  %v2570 = vld [vmem:[%s0 + $0x38] sm:$0xff]
  %v2571 = vld [vmem:[%s0 + $0x40] sm:$0xff]
  %v2572 = vld [vmem:[%s0 + $0x48] sm:$0xff]
  %s2573 = scalar_lea.vmem %s1, 32
  %v2574 = vld [vmem:[%s2573] sm:$0xff]
  %v2583 = vcombine.high %v2565, %v2565
  %v2584 = vcombine.high %v2566, %v2566
  %v2585 = vcombine.high %v2567, %v2567
  %v2586 = vcombine.high %v2568, %v2568
  %v2587 = vcombine.high %v2569, %v2569
  %v2588 = vcombine.high %v2570, %v2570
  %v2589 = vcombine.high %v2571, %v2571
  %v2590 = vcombine.high %v2572, %v2572
  %v2592 = vsel %vm51, %v2574, 0
  %v2594 = vsel %vm55, %v2565, 0
  %v2596 = vsel %vm55, %v2583, 0
  %v2598 = vsel %vm55, %v2566, 0
  %v2600 = vsel %vm55, %v2584, 0
  %v2602 = vsel %vm55, %v2567, 0
  %v2604 = vsel %vm55, %v2585, 0
  %v2606 = vsel %vm55, %v2568, 0
  %v2608 = vsel %vm55, %v2586, 0
  %v2610 = vsel %vm55, %v2569, 0
  %v2612 = vsel %vm55, %v2587, 0
  %v2614 = vsel %vm55, %v2570, 0
  %v2616 = vsel %vm55, %v2588, 0
  %v2618 = vsel %vm55, %v2571, 0
  %v2620 = vsel %vm55, %v2589, 0
  %v2622 = vsel %vm55, %v2572, 0
  %v2624 = vsel %vm55, %v2590, 0
  %2626 = vmatprep.subr.mxu0 %v2596
  %2627 = vmatpush1.msra.mxu0 %v2594
  %2628 = vmatprep.subr.mxu0 0.0
  %2629 = vmatpush1.msra.mxu0 0.0
  %2630 = vmatprep.subr.mxu0 0.0
  %2631 = vmatpush1.msra.mxu0 0.0
  %2632 = vmatprep.subr.mxu0 0.0
  %2633 = vmatpush1.msra.mxu0 0.0
  %2634 = vmatprep.subr.mxu0 0.0
  %2635 = vmatpush1.msra.mxu0 0.0
  %2636 = vmatprep.subr.mxu0 0.0
  %2637 = vmatpush1.msra.mxu0 0.0
  %2638 = vmatprep.subr.mxu0 0.0
  %2639 = vmatpush1.msra.mxu0 0.0
  %2640 = vmatprep.subr.mxu0 0.0
  %2641 = vmatpush1.msra.mxu0 0.0
  %2642 = vmatprep.subr.mxu0 0.0
  %2643 = vmatpush1.msra.mxu0 0.0
  %2644 = vmatprep.subr.mxu0 0.0
  %2645 = vmatpush1.msra.mxu0 0.0
  %2646 = vmatprep.subr.mxu0 0.0
  %2647 = vmatpush1.msra.mxu0 0.0
  %2648 = vmatprep.subr.mxu0 0.0
  %2649 = vmatpush1.msra.mxu0 0.0
  %2650 = vmatprep.subr.mxu0 0.0
  %2651 = vmatpush1.msra.mxu0 0.0
  %2652 = vmatprep.subr.mxu0 0.0
  %2653 = vmatpush1.msra.mxu0 0.0
  %2654 = vmatprep.subr.mxu0 0.0
  %2655 = vmatpush1.msra.mxu0 0.0
  %2656 = vmatprep.subr.mxu0 0.0
  %2657 = vmatpush1.msra.mxu0 0.0
  %2658 = vmatprep.subr.mxu0 0.0
  %2659 = vmatpush1.msra.mxu0 0.0
  %2660 = vmatprep.subr.mxu0 0.0
  %2661 = vmatpush1.msra.mxu0 0.0
  %2662 = vmatprep.subr.mxu0 0.0
  %2663 = vmatpush1.msra.mxu0 0.0
  %2664 = vmatprep.subr.mxu0 0.0
  %2665 = vmatpush1.msra.mxu0 0.0
  %2666 = vmatprep.subr.mxu0 0.0
  %2667 = vmatpush1.msra.mxu0 0.0
  %2668 = vmatprep.subr.mxu0 0.0
  %2669 = vmatpush1.msra.mxu0 0.0
  %2670 = vmatprep.subr.mxu0 0.0
  %2671 = vmatpush1.msra.mxu0 0.0
  %2672 = vmatprep.subr.mxu0 0.0
  %2673 = vmatpush1.msra.mxu0 0.0
  %2674 = vmatprep.subr.mxu0 0.0
  %2675 = vmatpush1.msra.mxu0 0.0
  %2676 = vmatprep.subr.mxu0 0.0
  %2677 = vmatpush1.msra.mxu0 0.0
  %2678 = vmatprep.subr.mxu0 0.0
  %2679 = vmatpush1.msra.mxu0 0.0
  %2680 = vmatprep.subr.mxu0 0.0
  %2681 = vmatpush1.msra.mxu0 0.0
  %2682 = vmatprep.subr.mxu0 0.0
  %2683 = vmatpush1.msra.mxu0 0.0
  %2684 = vmatprep.subr.mxu0 0.0
  %2685 = vmatpush1.msra.mxu0 0.0
  %2686 = vmatprep.subr.mxu0 0.0
  %2687 = vmatpush1.msra.mxu0 0.0
  %2688 = vmatprep.subr.mxu0 0.0
  %2689 = vmatpush1.msra.mxu0 0.0
  %2690 = vmatprep.mubr.f32.mxu0 0.0
  %2691 = vmatmul.mubr.f32.gmra.mrb[0].mxu0 %v2592
  %v2692 = vpop.f32.mrb[0].mxu0
  %v2693 = vadd.f32 0.0, %v2692
  %v2694 = vpop.f32.mrb[0].mxu0
  %v2695 = vadd.f32 0.0, %v2694
  %2696 = vdwg.mxu0
  %2697 = vmatprep.subr.mxu0 %v2600
  %2698 = vmatpush1.msra.mxu0 %v2598
  %2699 = vmatprep.subr.mxu0 0.0
  %2700 = vmatpush1.msra.mxu0 0.0
  %2701 = vmatprep.subr.mxu0 0.0
  %2702 = vmatpush1.msra.mxu0 0.0
  %2703 = vmatprep.subr.mxu0 0.0
  %2704 = vmatpush1.msra.mxu0 0.0
  %2705 = vmatprep.subr.mxu0 0.0
  %2706 = vmatpush1.msra.mxu0 0.0
  %2707 = vmatprep.subr.mxu0 0.0
  %2708 = vmatpush1.msra.mxu0 0.0
  %2709 = vmatprep.subr.mxu0 0.0
  %2710 = vmatpush1.msra.mxu0 0.0
  %2711 = vmatprep.subr.mxu0 0.0
  %2712 = vmatpush1.msra.mxu0 0.0
  %2713 = vmatprep.subr.mxu0 0.0
  %2714 = vmatpush1.msra.mxu0 0.0
  %2715 = vmatprep.subr.mxu0 0.0
  %2716 = vmatpush1.msra.mxu0 0.0
  %2717 = vmatprep.subr.mxu0 0.0
  %2718 = vmatpush1.msra.mxu0 0.0
  %2719 = vmatprep.subr.mxu0 0.0
  %2720 = vmatpush1.msra.mxu0 0.0
  %2721 = vmatprep.subr.mxu0 0.0
  %2722 = vmatpush1.msra.mxu0 0.0
  %2723 = vmatprep.subr.mxu0 0.0
  %2724 = vmatpush1.msra.mxu0 0.0
  %2725 = vmatprep.subr.mxu0 0.0
  %2726 = vmatpush1.msra.mxu0 0.0
  %2727 = vmatprep.subr.mxu0 0.0
  %2728 = vmatpush1.msra.mxu0 0.0
  %2729 = vmatprep.subr.mxu0 0.0
  %2730 = vmatpush1.msra.mxu0 0.0
  %2731 = vmatprep.subr.mxu0 0.0
  %2732 = vmatpush1.msra.mxu0 0.0
  %2733 = vmatprep.subr.mxu0 0.0
  %2734 = vmatpush1.msra.mxu0 0.0
  %2735 = vmatprep.subr.mxu0 0.0
  %2736 = vmatpush1.msra.mxu0 0.0
  %2737 = vmatprep.subr.mxu0 0.0
  %2738 = vmatpush1.msra.mxu0 0.0
  %2739 = vmatprep.subr.mxu0 0.0
  %2740 = vmatpush1.msra.mxu0 0.0
  %2741 = vmatprep.subr.mxu0 0.0
  %2742 = vmatpush1.msra.mxu0 0.0
  %2743 = vmatprep.subr.mxu0 0.0
  %2744 = vmatpush1.msra.mxu0 0.0
  %2745 = vmatprep.subr.mxu0 0.0
  %2746 = vmatpush1.msra.mxu0 0.0
  %2747 = vmatprep.subr.mxu0 0.0
  %2748 = vmatpush1.msra.mxu0 0.0
  %2749 = vmatprep.subr.mxu0 0.0
  %2750 = vmatpush1.msra.mxu0 0.0
  %2751 = vmatprep.subr.mxu0 0.0
  %2752 = vmatpush1.msra.mxu0 0.0
  %2753 = vmatprep.subr.mxu0 0.0
  %2754 = vmatpush1.msra.mxu0 0.0
  %2755 = vmatprep.subr.mxu0 0.0
  %2756 = vmatpush1.msra.mxu0 0.0
  %2757 = vmatprep.subr.mxu0 0.0
  %2758 = vmatpush1.msra.mxu0 0.0
  %2759 = vmatprep.subr.mxu0 0.0
  %2760 = vmatpush1.msra.mxu0 0.0
  %2761 = vmatprep.mubr.f32.mxu0 0.0
  %2762 = vmatmul.mubr.f32.gmra.mrb[0].mxu0 %v2592
  %v2763 = vpop.f32.mrb[0].mxu0
  %v2764 = vadd.f32 0.0, %v2763
  %v2765 = vpop.f32.mrb[0].mxu0
  %v2766 = vadd.f32 0.0, %v2765
  %2767 = vdwg.mxu0
  %2768 = vmatprep.subr.mxu0 %v2604
  %2769 = vmatpush1.msra.mxu0 %v2602
  %2770 = vmatprep.subr.mxu0 0.0
  %2771 = vmatpush1.msra.mxu0 0.0
  %2772 = vmatprep.subr.mxu0 0.0
  %2773 = vmatpush1.msra.mxu0 0.0
  %2774 = vmatprep.subr.mxu0 0.0
  %2775 = vmatpush1.msra.mxu0 0.0
  %2776 = vmatprep.subr.mxu0 0.0
  %2777 = vmatpush1.msra.mxu0 0.0
  %2778 = vmatprep.subr.mxu0 0.0
  %2779 = vmatpush1.msra.mxu0 0.0
  %2780 = vmatprep.subr.mxu0 0.0
  %2781 = vmatpush1.msra.mxu0 0.0
  %2782 = vmatprep.subr.mxu0 0.0
  %2783 = vmatpush1.msra.mxu0 0.0
  %2784 = vmatprep.subr.mxu0 0.0
  %2785 = vmatpush1.msra.mxu0 0.0
  %2786 = vmatprep.subr.mxu0 0.0
  %2787 = vmatpush1.msra.mxu0 0.0
  %2788 = vmatprep.subr.mxu0 0.0
  %2789 = vmatpush1.msra.mxu0 0.0
  %2790 = vmatprep.subr.mxu0 0.0
  %2791 = vmatpush1.msra.mxu0 0.0
  %2792 = vmatprep.subr.mxu0 0.0
  %2793 = vmatpush1.msra.mxu0 0.0
  %2794 = vmatprep.subr.mxu0 0.0
  %2795 = vmatpush1.msra.mxu0 0.0
  %2796 = vmatprep.subr.mxu0 0.0
  %2797 = vmatpush1.msra.mxu0 0.0
  %2798 = vmatprep.subr.mxu0 0.0
  %2799 = vmatpush1.msra.mxu0 0.0
  %2800 = vmatprep.subr.mxu0 0.0
  %2801 = vmatpush1.msra.mxu0 0.0
  %2802 = vmatprep.subr.mxu0 0.0
  %2803 = vmatpush1.msra.mxu0 0.0
  %2804 = vmatprep.subr.mxu0 0.0
  %2805 = vmatpush1.msra.mxu0 0.0
  %2806 = vmatprep.subr.mxu0 0.0
  %2807 = vmatpush1.msra.mxu0 0.0
  %2808 = vmatprep.subr.mxu0 0.0
  %2809 = vmatpush1.msra.mxu0 0.0
  %2810 = vmatprep.subr.mxu0 0.0
  %2811 = vmatpush1.msra.mxu0 0.0
  %2812 = vmatprep.subr.mxu0 0.0
  %2813 = vmatpush1.msra.mxu0 0.0
  %2814 = vmatprep.subr.mxu0 0.0
  %2815 = vmatpush1.msra.mxu0 0.0
  %2816 = vmatprep.subr.mxu0 0.0
  %2817 = vmatpush1.msra.mxu0 0.0
  %2818 = vmatprep.subr.mxu0 0.0
  %2819 = vmatpush1.msra.mxu0 0.0
  %2820 = vmatprep.subr.mxu0 0.0
  %2821 = vmatpush1.msra.mxu0 0.0
  %2822 = vmatprep.subr.mxu0 0.0
  %2823 = vmatpush1.msra.mxu0 0.0
  %2824 = vmatprep.subr.mxu0 0.0
  %2825 = vmatpush1.msra.mxu0 0.0
  %2826 = vmatprep.subr.mxu0 0.0
  %2827 = vmatpush1.msra.mxu0 0.0
  %2828 = vmatprep.subr.mxu0 0.0
  %2829 = vmatpush1.msra.mxu0 0.0
  %2830 = vmatprep.subr.mxu0 0.0
  %2831 = vmatpush1.msra.mxu0 0.0
  %2832 = vmatprep.mubr.f32.mxu0 0.0
  %2833 = vmatmul.mubr.f32.gmra.mrb[0].mxu0 %v2592
  %v2834 = vpop.f32.mrb[0].mxu0
  %v2835 = vadd.f32 0.0, %v2834
  %v2836 = vpop.f32.mrb[0].mxu0
  %v2837 = vadd.f32 0.0, %v2836
  %2838 = vdwg.mxu0
  %2839 = vmatprep.subr.mxu0 %v2608
  %2840 = vmatpush1.msra.mxu0 %v2606
  %2841 = vmatprep.subr.mxu0 0.0
  %2842 = vmatpush1.msra.mxu0 0.0
  %2843 = vmatprep.subr.mxu0 0.0
  %2844 = vmatpush1.msra.mxu0 0.0
  %2845 = vmatprep.subr.mxu0 0.0
  %2846 = vmatpush1.msra.mxu0 0.0
  %2847 = vmatprep.subr.mxu0 0.0
  %2848 = vmatpush1.msra.mxu0 0.0
  %2849 = vmatprep.subr.mxu0 0.0
  %2850 = vmatpush1.msra.mxu0 0.0
  %2851 = vmatprep.subr.mxu0 0.0
  %2852 = vmatpush1.msra.mxu0 0.0
  %2853 = vmatprep.subr.mxu0 0.0
  %2854 = vmatpush1.msra.mxu0 0.0
  %2855 = vmatprep.subr.mxu0 0.0
  %2856 = vmatpush1.msra.mxu0 0.0
  %2857 = vmatprep.subr.mxu0 0.0
  %2858 = vmatpush1.msra.mxu0 0.0
  %2859 = vmatprep.subr.mxu0 0.0
  %2860 = vmatpush1.msra.mxu0 0.0
  %2861 = vmatprep.subr.mxu0 0.0
  %2862 = vmatpush1.msra.mxu0 0.0
  %2863 = vmatprep.subr.mxu0 0.0
  %2864 = vmatpush1.msra.mxu0 0.0
  %2865 = vmatprep.subr.mxu0 0.0
  %2866 = vmatpush1.msra.mxu0 0.0
  %2867 = vmatprep.subr.mxu0 0.0
  %2868 = vmatpush1.msra.mxu0 0.0
  %2869 = vmatprep.subr.mxu0 0.0
  %2870 = vmatpush1.msra.mxu0 0.0
  %2871 = vmatprep.subr.mxu0 0.0
  %2872 = vmatpush1.msra.mxu0 0.0
  %2873 = vmatprep.subr.mxu0 0.0
  %2874 = vmatpush1.msra.mxu0 0.0
  %2875 = vmatprep.subr.mxu0 0.0
  %2876 = vmatpush1.msra.mxu0 0.0
  %2877 = vmatprep.subr.mxu0 0.0
  %2878 = vmatpush1.msra.mxu0 0.0
  %2879 = vmatprep.subr.mxu0 0.0
  %2880 = vmatpush1.msra.mxu0 0.0
  %2881 = vmatprep.subr.mxu0 0.0
  %2882 = vmatpush1.msra.mxu0 0.0
  %2883 = vmatprep.subr.mxu0 0.0
  %2884 = vmatpush1.msra.mxu0 0.0
  %2885 = vmatprep.subr.mxu0 0.0
  %2886 = vmatpush1.msra.mxu0 0.0
  %2887 = vmatprep.subr.mxu0 0.0
  %2888 = vmatpush1.msra.mxu0 0.0
  %2889 = vmatprep.subr.mxu0 0.0
  %2890 = vmatpush1.msra.mxu0 0.0
  %2891 = vmatprep.subr.mxu0 0.0
  %2892 = vmatpush1.msra.mxu0 0.0
  %2893 = vmatprep.subr.mxu0 0.0
  %2894 = vmatpush1.msra.mxu0 0.0
  %2895 = vmatprep.subr.mxu0 0.0
  %2896 = vmatpush1.msra.mxu0 0.0
  %2897 = vmatprep.subr.mxu0 0.0
  %2898 = vmatpush1.msra.mxu0 0.0
  %2899 = vmatprep.subr.mxu0 0.0
  %2900 = vmatpush1.msra.mxu0 0.0
  %2901 = vmatprep.subr.mxu0 0.0
  %2902 = vmatpush1.msra.mxu0 0.0
  %2903 = vmatprep.mubr.f32.mxu0 0.0
  %2904 = vmatmul.mubr.f32.gmra.mrb[0].mxu0 %v2592
  %v2905 = vpop.f32.mrb[0].mxu0
  %v2906 = vadd.f32 0.0, %v2905
  %v2907 = vpop.f32.mrb[0].mxu0
  %v2908 = vadd.f32 0.0, %v2907
  %2909 = vdwg.mxu0
  %2910 = vmatprep.subr.mxu0 %v2612
  %2911 = vmatpush1.msra.mxu0 %v2610
  %2912 = vmatprep.subr.mxu0 0.0
  %2913 = vmatpush1.msra.mxu0 0.0
  %2914 = vmatprep.subr.mxu0 0.0
  %2915 = vmatpush1.msra.mxu0 0.0
  %2916 = vmatprep.subr.mxu0 0.0
  %2917 = vmatpush1.msra.mxu0 0.0
  %2918 = vmatprep.subr.mxu0 0.0
  %2919 = vmatpush1.msra.mxu0 0.0
  %2920 = vmatprep.subr.mxu0 0.0
  %2921 = vmatpush1.msra.mxu0 0.0
  %2922 = vmatprep.subr.mxu0 0.0
  %2923 = vmatpush1.msra.mxu0 0.0
  %2924 = vmatprep.subr.mxu0 0.0
  %2925 = vmatpush1.msra.mxu0 0.0
  %2926 = vmatprep.subr.mxu0 0.0
  %2927 = vmatpush1.msra.mxu0 0.0
  %2928 = vmatprep.subr.mxu0 0.0
  %2929 = vmatpush1.msra.mxu0 0.0
  %2930 = vmatprep.subr.mxu0 0.0
  %2931 = vmatpush1.msra.mxu0 0.0
  %2932 = vmatprep.subr.mxu0 0.0
  %2933 = vmatpush1.msra.mxu0 0.0
  %2934 = vmatprep.subr.mxu0 0.0
  %2935 = vmatpush1.msra.mxu0 0.0
  %2936 = vmatprep.subr.mxu0 0.0
  %2937 = vmatpush1.msra.mxu0 0.0
  %2938 = vmatprep.subr.mxu0 0.0
  %2939 = vmatpush1.msra.mxu0 0.0
  %2940 = vmatprep.subr.mxu0 0.0
  %2941 = vmatpush1.msra.mxu0 0.0
  %2942 = vmatprep.subr.mxu0 0.0
  %2943 = vmatpush1.msra.mxu0 0.0
  %2944 = vmatprep.subr.mxu0 0.0
  %2945 = vmatpush1.msra.mxu0 0.0
  %2946 = vmatprep.subr.mxu0 0.0
  %2947 = vmatpush1.msra.mxu0 0.0
  %2948 = vmatprep.subr.mxu0 0.0
  %2949 = vmatpush1.msra.mxu0 0.0
  %2950 = vmatprep.subr.mxu0 0.0
  %2951 = vmatpush1.msra.mxu0 0.0
  %2952 = vmatprep.subr.mxu0 0.0
  %2953 = vmatpush1.msra.mxu0 0.0
  %2954 = vmatprep.subr.mxu0 0.0
  %2955 = vmatpush1.msra.mxu0 0.0
  %2956 = vmatprep.subr.mxu0 0.0
  %2957 = vmatpush1.msra.mxu0 0.0
  %2958 = vmatprep.subr.mxu0 0.0
  %2959 = vmatpush1.msra.mxu0 0.0
  %2960 = vmatprep.subr.mxu0 0.0
  %2961 = vmatpush1.msra.mxu0 0.0
  %2962 = vmatprep.subr.mxu0 0.0
  %2963 = vmatpush1.msra.mxu0 0.0
  %2964 = vmatprep.subr.mxu0 0.0
  %2965 = vmatpush1.msra.mxu0 0.0
  %2966 = vmatprep.subr.mxu0 0.0
  %2967 = vmatpush1.msra.mxu0 0.0
  %2968 = vmatprep.subr.mxu0 0.0
  %2969 = vmatpush1.msra.mxu0 0.0
  %2970 = vmatprep.subr.mxu0 0.0
  %2971 = vmatpush1.msra.mxu0 0.0
  %2972 = vmatprep.subr.mxu0 0.0
  %2973 = vmatpush1.msra.mxu0 0.0
  %2974 = vmatprep.mubr.f32.mxu0 0.0
  %2975 = vmatmul.mubr.f32.gmra.mrb[0].mxu0 %v2592
  %v2976 = vpop.f32.mrb[0].mxu0
  %v2977 = vadd.f32 0.0, %v2976
  %v2978 = vpop.f32.mrb[0].mxu0
  %v2979 = vadd.f32 0.0, %v2978
  %2980 = vdwg.mxu0
  %2981 = vmatprep.subr.mxu0 %v2616
  %2982 = vmatpush1.msra.mxu0 %v2614
  %2983 = vmatprep.subr.mxu0 0.0
  %2984 = vmatpush1.msra.mxu0 0.0
  %2985 = vmatprep.subr.mxu0 0.0
  %2986 = vmatpush1.msra.mxu0 0.0
  %2987 = vmatprep.subr.mxu0 0.0
  %2988 = vmatpush1.msra.mxu0 0.0
  %2989 = vmatprep.subr.mxu0 0.0
  %2990 = vmatpush1.msra.mxu0 0.0
  %2991 = vmatprep.subr.mxu0 0.0
  %2992 = vmatpush1.msra.mxu0 0.0
  %2993 = vmatprep.subr.mxu0 0.0
  %2994 = vmatpush1.msra.mxu0 0.0
  %2995 = vmatprep.subr.mxu0 0.0
  %2996 = vmatpush1.msra.mxu0 0.0
  %2997 = vmatprep.subr.mxu0 0.0
  %2998 = vmatpush1.msra.mxu0 0.0
  %2999 = vmatprep.subr.mxu0 0.0
  %3000 = vmatpush1.msra.mxu0 0.0
  %3001 = vmatprep.subr.mxu0 0.0
  %3002 = vmatpush1.msra.mxu0 0.0
  %3003 = vmatprep.subr.mxu0 0.0
  %3004 = vmatpush1.msra.mxu0 0.0
  %3005 = vmatprep.subr.mxu0 0.0
  %3006 = vmatpush1.msra.mxu0 0.0
  %3007 = vmatprep.subr.mxu0 0.0
  %3008 = vmatpush1.msra.mxu0 0.0
  %3009 = vmatprep.subr.mxu0 0.0
  %3010 = vmatpush1.msra.mxu0 0.0
  %3011 = vmatprep.subr.mxu0 0.0
  %3012 = vmatpush1.msra.mxu0 0.0
  %3013 = vmatprep.subr.mxu0 0.0
  %3014 = vmatpush1.msra.mxu0 0.0
  %3015 = vmatprep.subr.mxu0 0.0
  %3016 = vmatpush1.msra.mxu0 0.0
  %3017 = vmatprep.subr.mxu0 0.0
  %3018 = vmatpush1.msra.mxu0 0.0
  %3019 = vmatprep.subr.mxu0 0.0
  %3020 = vmatpush1.msra.mxu0 0.0
  %3021 = vmatprep.subr.mxu0 0.0
  %3022 = vmatpush1.msra.mxu0 0.0
  %3023 = vmatprep.subr.mxu0 0.0
  %3024 = vmatpush1.msra.mxu0 0.0
  %3025 = vmatprep.subr.mxu0 0.0
  %3026 = vmatpush1.msra.mxu0 0.0
  %3027 = vmatprep.subr.mxu0 0.0
  %3028 = vmatpush1.msra.mxu0 0.0
  %3029 = vmatprep.subr.mxu0 0.0
  %3030 = vmatpush1.msra.mxu0 0.0
  %3031 = vmatprep.subr.mxu0 0.0
  %3032 = vmatpush1.msra.mxu0 0.0
  %3033 = vmatprep.subr.mxu0 0.0
  %3034 = vmatpush1.msra.mxu0 0.0
  %3035 = vmatprep.subr.mxu0 0.0
  %3036 = vmatpush1.msra.mxu0 0.0
  %3037 = vmatprep.subr.mxu0 0.0
  %3038 = vmatpush1.msra.mxu0 0.0
  %3039 = vmatprep.subr.mxu0 0.0
  %3040 = vmatpush1.msra.mxu0 0.0
  %3041 = vmatprep.subr.mxu0 0.0
  %3042 = vmatpush1.msra.mxu0 0.0
  %3043 = vmatprep.subr.mxu0 0.0
  %3044 = vmatpush1.msra.mxu0 0.0
  %3045 = vmatprep.mubr.f32.mxu0 0.0
  %3046 = vmatmul.mubr.f32.gmra.mrb[0].mxu0 %v2592
  %v3047 = vpop.f32.mrb[0].mxu0
  %v3048 = vadd.f32 0.0, %v3047
  %v3049 = vpop.f32.mrb[0].mxu0
  %v3050 = vadd.f32 0.0, %v3049
  %3051 = vdwg.mxu0
  %3052 = vmatprep.subr.mxu0 %v2620
  %3053 = vmatpush1.msra.mxu0 %v2618
  %3054 = vmatprep.subr.mxu0 0.0
  %3055 = vmatpush1.msra.mxu0 0.0
  %3056 = vmatprep.subr.mxu0 0.0
  %3057 = vmatpush1.msra.mxu0 0.0
  %3058 = vmatprep.subr.mxu0 0.0
  %3059 = vmatpush1.msra.mxu0 0.0
  %3060 = vmatprep.subr.mxu0 0.0
  %3061 = vmatpush1.msra.mxu0 0.0
  %3062 = vmatprep.subr.mxu0 0.0
  %3063 = vmatpush1.msra.mxu0 0.0
  %3064 = vmatprep.subr.mxu0 0.0
  %3065 = vmatpush1.msra.mxu0 0.0
  %3066 = vmatprep.subr.mxu0 0.0
  %3067 = vmatpush1.msra.mxu0 0.0
  %3068 = vmatprep.subr.mxu0 0.0
  %3069 = vmatpush1.msra.mxu0 0.0
  %3070 = vmatprep.subr.mxu0 0.0
  %3071 = vmatpush1.msra.mxu0 0.0
  %3072 = vmatprep.subr.mxu0 0.0
  %3073 = vmatpush1.msra.mxu0 0.0
  %3074 = vmatprep.subr.mxu0 0.0
  %3075 = vmatpush1.msra.mxu0 0.0
  %3076 = vmatprep.subr.mxu0 0.0
  %3077 = vmatpush1.msra.mxu0 0.0
  %3078 = vmatprep.subr.mxu0 0.0
  %3079 = vmatpush1.msra.mxu0 0.0
  %3080 = vmatprep.subr.mxu0 0.0
  %3081 = vmatpush1.msra.mxu0 0.0
  %3082 = vmatprep.subr.mxu0 0.0
  %3083 = vmatpush1.msra.mxu0 0.0
  %3084 = vmatprep.subr.mxu0 0.0
  %3085 = vmatpush1.msra.mxu0 0.0
  %3086 = vmatprep.subr.mxu0 0.0
  %3087 = vmatpush1.msra.mxu0 0.0
  %3088 = vmatprep.subr.mxu0 0.0
  %3089 = vmatpush1.msra.mxu0 0.0
  %3090 = vmatprep.subr.mxu0 0.0
  %3091 = vmatpush1.msra.mxu0 0.0
  %3092 = vmatprep.subr.mxu0 0.0
  %3093 = vmatpush1.msra.mxu0 0.0
  %3094 = vmatprep.subr.mxu0 0.0
  %3095 = vmatpush1.msra.mxu0 0.0
  %3096 = vmatprep.subr.mxu0 0.0
  %3097 = vmatpush1.msra.mxu0 0.0
  %3098 = vmatprep.subr.mxu0 0.0
  %3099 = vmatpush1.msra.mxu0 0.0
  %3100 = vmatprep.subr.mxu0 0.0
  %3101 = vmatpush1.msra.mxu0 0.0
  %3102 = vmatprep.subr.mxu0 0.0
  %3103 = vmatpush1.msra.mxu0 0.0
  %3104 = vmatprep.subr.mxu0 0.0
  %3105 = vmatpush1.msra.mxu0 0.0
  %3106 = vmatprep.subr.mxu0 0.0
  %3107 = vmatpush1.msra.mxu0 0.0
  %3108 = vmatprep.subr.mxu0 0.0
  %3109 = vmatpush1.msra.mxu0 0.0
  %3110 = vmatprep.subr.mxu0 0.0
  %3111 = vmatpush1.msra.mxu0 0.0
  %3112 = vmatprep.subr.mxu0 0.0
  %3113 = vmatpush1.msra.mxu0 0.0
  %3114 = vmatprep.subr.mxu0 0.0
  %3115 = vmatpush1.msra.mxu0 0.0
  %3116 = vmatprep.mubr.f32.mxu0 0.0
  %3117 = vmatmul.mubr.f32.gmra.mrb[0].mxu0 %v2592
  %v3118 = vpop.f32.mrb[0].mxu0
  %v3119 = vadd.f32 0.0, %v3118
  %v3120 = vpop.f32.mrb[0].mxu0
  %v3121 = vadd.f32 0.0, %v3120
  %3122 = vdwg.mxu0
  %3123 = vmatprep.subr.mxu0 %v2624
  %3124 = vmatpush1.msra.mxu0 %v2622
  %3125 = vmatprep.subr.mxu0 0.0
  %3126 = vmatpush1.msra.mxu0 0.0
  %3127 = vmatprep.subr.mxu0 0.0
  %3128 = vmatpush1.msra.mxu0 0.0
  %3129 = vmatprep.subr.mxu0 0.0
  %3130 = vmatpush1.msra.mxu0 0.0
  %3131 = vmatprep.subr.mxu0 0.0
  %3132 = vmatpush1.msra.mxu0 0.0
  %3133 = vmatprep.subr.mxu0 0.0
  %3134 = vmatpush1.msra.mxu0 0.0
  %3135 = vmatprep.subr.mxu0 0.0
  %3136 = vmatpush1.msra.mxu0 0.0
  %3137 = vmatprep.subr.mxu0 0.0
  %3138 = vmatpush1.msra.mxu0 0.0
  %3139 = vmatprep.subr.mxu0 0.0
  %3140 = vmatpush1.msra.mxu0 0.0
  %3141 = vmatprep.subr.mxu0 0.0
  %3142 = vmatpush1.msra.mxu0 0.0
  %3143 = vmatprep.subr.mxu0 0.0
  %3144 = vmatpush1.msra.mxu0 0.0
  %3145 = vmatprep.subr.mxu0 0.0
  %3146 = vmatpush1.msra.mxu0 0.0
  %3147 = vmatprep.subr.mxu0 0.0
  %3148 = vmatpush1.msra.mxu0 0.0
  %3149 = vmatprep.subr.mxu0 0.0
  %3150 = vmatpush1.msra.mxu0 0.0
  %3151 = vmatprep.subr.mxu0 0.0
  %3152 = vmatpush1.msra.mxu0 0.0
  %3153 = vmatprep.subr.mxu0 0.0
  %3154 = vmatpush1.msra.mxu0 0.0
  %3155 = vmatprep.subr.mxu0 0.0
  %3156 = vmatpush1.msra.mxu0 0.0
  %3157 = vmatprep.subr.mxu0 0.0
  %3158 = vmatpush1.msra.mxu0 0.0
  %3159 = vmatprep.subr.mxu0 0.0
  %3160 = vmatpush1.msra.mxu0 0.0
  %3161 = vmatprep.subr.mxu0 0.0
  %3162 = vmatpush1.msra.mxu0 0.0
  %3163 = vmatprep.subr.mxu0 0.0
  %3164 = vmatpush1.msra.mxu0 0.0
  %3165 = vmatprep.subr.mxu0 0.0
  %3166 = vmatpush1.msra.mxu0 0.0
  %3167 = vmatprep.subr.mxu0 0.0
  %3168 = vmatpush1.msra.mxu0 0.0
  %3169 = vmatprep.subr.mxu0 0.0
  %3170 = vmatpush1.msra.mxu0 0.0
  %3171 = vmatprep.subr.mxu0 0.0
  %3172 = vmatpush1.msra.mxu0 0.0
  %3173 = vmatprep.subr.mxu0 0.0
  %3174 = vmatpush1.msra.mxu0 0.0
  %3175 = vmatprep.subr.mxu0 0.0
  %3176 = vmatpush1.msra.mxu0 0.0
  %3177 = vmatprep.subr.mxu0 0.0
  %3178 = vmatpush1.msra.mxu0 0.0
  %3179 = vmatprep.subr.mxu0 0.0
  %3180 = vmatpush1.msra.mxu0 0.0
  %3181 = vmatprep.subr.mxu0 0.0
  %3182 = vmatpush1.msra.mxu0 0.0
  %3183 = vmatprep.subr.mxu0 0.0
  %3184 = vmatpush1.msra.mxu0 0.0
  %3185 = vmatprep.subr.mxu0 0.0
  %3186 = vmatpush1.msra.mxu0 0.0
  %3187 = vmatprep.mubr.f32.mxu0 0.0
  %3188 = vmatmul.mubr.f32.gmra.mrb[0].mxu0 %v2592
  %v3189 = vpop.f32.mrb[0].mxu0
  %v3190 = vadd.f32 0.0, %v3189
  %v3191 = vpop.f32.mrb[0].mxu0
  %v3192 = vadd.f32 0.0, %v3191
  %3193 = vdwg.mxu0
  %v3194 = vadd.f32 %v2549, %v2693
  %v3195 = vadd.f32 %v2550, %v2695
  %v3196 = vadd.f32 %v2551, %v2764
  %v3197 = vadd.f32 %v2552, %v2766
  %v3198 = vadd.f32 %v2553, %v2835
  %v3199 = vadd.f32 %v2554, %v2837
  %v3200 = vadd.f32 %v2555, %v2906
  %v3201 = vadd.f32 %v2556, %v2908
  %v3202 = vadd.f32 %v2557, %v2977
  %v3203 = vadd.f32 %v2558, %v2979
  %v3204 = vadd.f32 %v2559, %v3048
  %v3205 = vadd.f32 %v2560, %v3050
  %v3206 = vadd.f32 %v2561, %v3119
  %v3207 = vadd.f32 %v2562, %v3121
  %v3208 = vadd.f32 %v2563, %v3190
  %v3209 = vadd.f32 %v2564, %v3192
  %v3210 = vld [vmem:[%s0 + $0x14] sm:$0xff]
  %v3211 = vld [vmem:[%s0 + $0x1c] sm:$0xff]
  %v3212 = vld [vmem:[%s0 + $0x24] sm:$0xff]
  %v3213 = vld [vmem:[%s0 + $0x2c] sm:$0xff]
  %v3214 = vld [vmem:[%s0 + $0x34] sm:$0xff]
  %v3215 = vld [vmem:[%s0 + $0x3c] sm:$0xff]
  %v3216 = vld [vmem:[%s0 + $0x44] sm:$0xff]
  %v3217 = vld [vmem:[%s0 + $0x4c] sm:$0xff]
  %s3218 = scalar_lea.vmem %s1, 40
  %v3219 = vld [vmem:[%s3218] sm:$0xff]
  %v3228 = vcombine.high %v3210, %v3210
  %v3229 = vcombine.high %v3211, %v3211
  %v3230 = vcombine.high %v3212, %v3212
  %v3231 = vcombine.high %v3213, %v3213
  %v3232 = vcombine.high %v3214, %v3214
  %v3233 = vcombine.high %v3215, %v3215
  %v3234 = vcombine.high %v3216, %v3216
  %v3235 = vcombine.high %v3217, %v3217
  %v3237 = vsel %vm51, %v3219, 0
  %v3239 = vsel %vm55, %v3210, 0
  %v3241 = vsel %vm55, %v3228, 0
  %v3243 = vsel %vm55, %v3211, 0
  %v3245 = vsel %vm55, %v3229, 0
  %v3247 = vsel %vm55, %v3212, 0
  %v3249 = vsel %vm55, %v3230, 0
  %v3251 = vsel %vm55, %v3213, 0
  %v3253 = vsel %vm55, %v3231, 0
  %v3255 = vsel %vm55, %v3214, 0
  %v3257 = vsel %vm55, %v3232, 0
  %v3259 = vsel %vm55, %v3215, 0
  %v3261 = vsel %vm55, %v3233, 0
  %v3263 = vsel %vm55, %v3216, 0
  %v3265 = vsel %vm55, %v3234, 0
  %v3267 = vsel %vm55, %v3217, 0
  %v3269 = vsel %vm55, %v3235, 0
  %3271 = vmatprep.subr.mxu0 %v3241
  %3272 = vmatpush1.msra.mxu0 %v3239
  %3273 = vmatprep.subr.mxu0 0.0
  %3274 = vmatpush1.msra.mxu0 0.0
  %3275 = vmatprep.subr.mxu0 0.0
  %3276 = vmatpush1.msra.mxu0 0.0
  %3277 = vmatprep.subr.mxu0 0.0
  %3278 = vmatpush1.msra.mxu0 0.0
  %3279 = vmatprep.subr.mxu0 0.0
  %3280 = vmatpush1.msra.mxu0 0.0
  %3281 = vmatprep.subr.mxu0 0.0
  %3282 = vmatpush1.msra.mxu0 0.0
  %3283 = vmatprep.subr.mxu0 0.0
  %3284 = vmatpush1.msra.mxu0 0.0
  %3285 = vmatprep.subr.mxu0 0.0
  %3286 = vmatpush1.msra.mxu0 0.0
  %3287 = vmatprep.subr.mxu0 0.0
  %3288 = vmatpush1.msra.mxu0 0.0
  %3289 = vmatprep.subr.mxu0 0.0
  %3290 = vmatpush1.msra.mxu0 0.0
  %3291 = vmatprep.subr.mxu0 0.0
  %3292 = vmatpush1.msra.mxu0 0.0
  %3293 = vmatprep.subr.mxu0 0.0
  %3294 = vmatpush1.msra.mxu0 0.0
  %3295 = vmatprep.subr.mxu0 0.0
  %3296 = vmatpush1.msra.mxu0 0.0
  %3297 = vmatprep.subr.mxu0 0.0
  %3298 = vmatpush1.msra.mxu0 0.0
  %3299 = vmatprep.subr.mxu0 0.0
  %3300 = vmatpush1.msra.mxu0 0.0
  %3301 = vmatprep.subr.mxu0 0.0
  %3302 = vmatpush1.msra.mxu0 0.0
  %3303 = vmatprep.subr.mxu0 0.0
  %3304 = vmatpush1.msra.mxu0 0.0
  %3305 = vmatprep.subr.mxu0 0.0
  %3306 = vmatpush1.msra.mxu0 0.0
  %3307 = vmatprep.subr.mxu0 0.0
  %3308 = vmatpush1.msra.mxu0 0.0
  %3309 = vmatprep.subr.mxu0 0.0
  %3310 = vmatpush1.msra.mxu0 0.0
  %3311 = vmatprep.subr.mxu0 0.0
  %3312 = vmatpush1.msra.mxu0 0.0
  %3313 = vmatprep.subr.mxu0 0.0
  %3314 = vmatpush1.msra.mxu0 0.0
  %3315 = vmatprep.subr.mxu0 0.0
  %3316 = vmatpush1.msra.mxu0 0.0
  %3317 = vmatprep.subr.mxu0 0.0
  %3318 = vmatpush1.msra.mxu0 0.0
  %3319 = vmatprep.subr.mxu0 0.0
  %3320 = vmatpush1.msra.mxu0 0.0
  %3321 = vmatprep.subr.mxu0 0.0
  %3322 = vmatpush1.msra.mxu0 0.0
  %3323 = vmatprep.subr.mxu0 0.0
  %3324 = vmatpush1.msra.mxu0 0.0
  %3325 = vmatprep.subr.mxu0 0.0
  %3326 = vmatpush1.msra.mxu0 0.0
  %3327 = vmatprep.subr.mxu0 0.0
  %3328 = vmatpush1.msra.mxu0 0.0
  %3329 = vmatprep.subr.mxu0 0.0
  %3330 = vmatpush1.msra.mxu0 0.0
  %3331 = vmatprep.subr.mxu0 0.0
  %3332 = vmatpush1.msra.mxu0 0.0
  %3333 = vmatprep.subr.mxu0 0.0
  %3334 = vmatpush1.msra.mxu0 0.0
  %3335 = vmatprep.mubr.f32.mxu0 0.0
  %3336 = vmatmul.mubr.f32.gmra.mrb[0].mxu0 %v3237
  %v3337 = vpop.f32.mrb[0].mxu0
  %v3338 = vadd.f32 0.0, %v3337
  %v3339 = vpop.f32.mrb[0].mxu0
  %v3340 = vadd.f32 0.0, %v3339
  %3341 = vdwg.mxu0
  %3342 = vmatprep.subr.mxu0 %v3245
  %3343 = vmatpush1.msra.mxu0 %v3243
  %3344 = vmatprep.subr.mxu0 0.0
  %3345 = vmatpush1.msra.mxu0 0.0
  %3346 = vmatprep.subr.mxu0 0.0
  %3347 = vmatpush1.msra.mxu0 0.0
  %3348 = vmatprep.subr.mxu0 0.0
  %3349 = vmatpush1.msra.mxu0 0.0
  %3350 = vmatprep.subr.mxu0 0.0
  %3351 = vmatpush1.msra.mxu0 0.0
  %3352 = vmatprep.subr.mxu0 0.0
  %3353 = vmatpush1.msra.mxu0 0.0
  %3354 = vmatprep.subr.mxu0 0.0
  %3355 = vmatpush1.msra.mxu0 0.0
  %3356 = vmatprep.subr.mxu0 0.0
  %3357 = vmatpush1.msra.mxu0 0.0
  %3358 = vmatprep.subr.mxu0 0.0
  %3359 = vmatpush1.msra.mxu0 0.0
  %3360 = vmatprep.subr.mxu0 0.0
  %3361 = vmatpush1.msra.mxu0 0.0
  %3362 = vmatprep.subr.mxu0 0.0
  %3363 = vmatpush1.msra.mxu0 0.0
  %3364 = vmatprep.subr.mxu0 0.0
  %3365 = vmatpush1.msra.mxu0 0.0
  %3366 = vmatprep.subr.mxu0 0.0
  %3367 = vmatpush1.msra.mxu0 0.0
  %3368 = vmatprep.subr.mxu0 0.0
  %3369 = vmatpush1.msra.mxu0 0.0
  %3370 = vmatprep.subr.mxu0 0.0
  %3371 = vmatpush1.msra.mxu0 0.0
  %3372 = vmatprep.subr.mxu0 0.0
  %3373 = vmatpush1.msra.mxu0 0.0
  %3374 = vmatprep.subr.mxu0 0.0
  %3375 = vmatpush1.msra.mxu0 0.0
  %3376 = vmatprep.subr.mxu0 0.0
  %3377 = vmatpush1.msra.mxu0 0.0
  %3378 = vmatprep.subr.mxu0 0.0
  %3379 = vmatpush1.msra.mxu0 0.0
  %3380 = vmatprep.subr.mxu0 0.0
  %3381 = vmatpush1.msra.mxu0 0.0
  %3382 = vmatprep.subr.mxu0 0.0
  %3383 = vmatpush1.msra.mxu0 0.0
  %3384 = vmatprep.subr.mxu0 0.0
  %3385 = vmatpush1.msra.mxu0 0.0
  %3386 = vmatprep.subr.mxu0 0.0
  %3387 = vmatpush1.msra.mxu0 0.0
  %3388 = vmatprep.subr.mxu0 0.0
  %3389 = vmatpush1.msra.mxu0 0.0
  %3390 = vmatprep.subr.mxu0 0.0
  %3391 = vmatpush1.msra.mxu0 0.0
  %3392 = vmatprep.subr.mxu0 0.0
  %3393 = vmatpush1.msra.mxu0 0.0
  %3394 = vmatprep.subr.mxu0 0.0
  %3395 = vmatpush1.msra.mxu0 0.0
  %3396 = vmatprep.subr.mxu0 0.0
  %3397 = vmatpush1.msra.mxu0 0.0
  %3398 = vmatprep.subr.mxu0 0.0
  %3399 = vmatpush1.msra.mxu0 0.0
  %3400 = vmatprep.subr.mxu0 0.0
  %3401 = vmatpush1.msra.mxu0 0.0
  %3402 = vmatprep.subr.mxu0 0.0
  %3403 = vmatpush1.msra.mxu0 0.0
  %3404 = vmatprep.subr.mxu0 0.0
  %3405 = vmatpush1.msra.mxu0 0.0
  %3406 = vmatprep.mubr.f32.mxu0 0.0
  %3407 = vmatmul.mubr.f32.gmra.mrb[0].mxu0 %v3237
  %v3408 = vpop.f32.mrb[0].mxu0
  %v3409 = vadd.f32 0.0, %v3408
  %v3410 = vpop.f32.mrb[0].mxu0
  %v3411 = vadd.f32 0.0, %v3410
  %3412 = vdwg.mxu0
  %3413 = vmatprep.subr.mxu0 %v3249
  %3414 = vmatpush1.msra.mxu0 %v3247
  %3415 = vmatprep.subr.mxu0 0.0
  %3416 = vmatpush1.msra.mxu0 0.0
  %3417 = vmatprep.subr.mxu0 0.0
  %3418 = vmatpush1.msra.mxu0 0.0
  %3419 = vmatprep.subr.mxu0 0.0
  %3420 = vmatpush1.msra.mxu0 0.0
  %3421 = vmatprep.subr.mxu0 0.0
  %3422 = vmatpush1.msra.mxu0 0.0
  %3423 = vmatprep.subr.mxu0 0.0
  %3424 = vmatpush1.msra.mxu0 0.0
  %3425 = vmatprep.subr.mxu0 0.0
  %3426 = vmatpush1.msra.mxu0 0.0
  %3427 = vmatprep.subr.mxu0 0.0
  %3428 = vmatpush1.msra.mxu0 0.0
  %3429 = vmatprep.subr.mxu0 0.0
  %3430 = vmatpush1.msra.mxu0 0.0
  %3431 = vmatprep.subr.mxu0 0.0
  %3432 = vmatpush1.msra.mxu0 0.0
  %3433 = vmatprep.subr.mxu0 0.0
  %3434 = vmatpush1.msra.mxu0 0.0
  %3435 = vmatprep.subr.mxu0 0.0
  %3436 = vmatpush1.msra.mxu0 0.0
  %3437 = vmatprep.subr.mxu0 0.0
  %3438 = vmatpush1.msra.mxu0 0.0
  %3439 = vmatprep.subr.mxu0 0.0
  %3440 = vmatpush1.msra.mxu0 0.0
  %3441 = vmatprep.subr.mxu0 0.0
  %3442 = vmatpush1.msra.mxu0 0.0
  %3443 = vmatprep.subr.mxu0 0.0
  %3444 = vmatpush1.msra.mxu0 0.0
  %3445 = vmatprep.subr.mxu0 0.0
  %3446 = vmatpush1.msra.mxu0 0.0
  %3447 = vmatprep.subr.mxu0 0.0
  %3448 = vmatpush1.msra.mxu0 0.0
  %3449 = vmatprep.subr.mxu0 0.0
  %3450 = vmatpush1.msra.mxu0 0.0
  %3451 = vmatprep.subr.mxu0 0.0
  %3452 = vmatpush1.msra.mxu0 0.0
  %3453 = vmatprep.subr.mxu0 0.0
  %3454 = vmatpush1.msra.mxu0 0.0
  %3455 = vmatprep.subr.mxu0 0.0
  %3456 = vmatpush1.msra.mxu0 0.0
  %3457 = vmatprep.subr.mxu0 0.0
  %3458 = vmatpush1.msra.mxu0 0.0
  %3459 = vmatprep.subr.mxu0 0.0
  %3460 = vmatpush1.msra.mxu0 0.0
  %3461 = vmatprep.subr.mxu0 0.0
  %3462 = vmatpush1.msra.mxu0 0.0
  %3463 = vmatprep.subr.mxu0 0.0
  %3464 = vmatpush1.msra.mxu0 0.0
  %3465 = vmatprep.subr.mxu0 0.0
  %3466 = vmatpush1.msra.mxu0 0.0
  %3467 = vmatprep.subr.mxu0 0.0
  %3468 = vmatpush1.msra.mxu0 0.0
  %3469 = vmatprep.subr.mxu0 0.0
  %3470 = vmatpush1.msra.mxu0 0.0
  %3471 = vmatprep.subr.mxu0 0.0
  %3472 = vmatpush1.msra.mxu0 0.0
  %3473 = vmatprep.subr.mxu0 0.0
  %3474 = vmatpush1.msra.mxu0 0.0
  %3475 = vmatprep.subr.mxu0 0.0
  %3476 = vmatpush1.msra.mxu0 0.0
  %3477 = vmatprep.mubr.f32.mxu0 0.0
  %3478 = vmatmul.mubr.f32.gmra.mrb[0].mxu0 %v3237
  %v3479 = vpop.f32.mrb[0].mxu0
  %v3480 = vadd.f32 0.0, %v3479
  %v3481 = vpop.f32.mrb[0].mxu0
  %v3482 = vadd.f32 0.0, %v3481
  %3483 = vdwg.mxu0
  %3484 = vmatprep.subr.mxu0 %v3253
  %3485 = vmatpush1.msra.mxu0 %v3251
  %3486 = vmatprep.subr.mxu0 0.0
  %3487 = vmatpush1.msra.mxu0 0.0
  %3488 = vmatprep.subr.mxu0 0.0
  %3489 = vmatpush1.msra.mxu0 0.0
  %3490 = vmatprep.subr.mxu0 0.0
  %3491 = vmatpush1.msra.mxu0 0.0
  %3492 = vmatprep.subr.mxu0 0.0
  %3493 = vmatpush1.msra.mxu0 0.0
  %3494 = vmatprep.subr.mxu0 0.0
  %3495 = vmatpush1.msra.mxu0 0.0
  %3496 = vmatprep.subr.mxu0 0.0
  %3497 = vmatpush1.msra.mxu0 0.0
  %3498 = vmatprep.subr.mxu0 0.0
  %3499 = vmatpush1.msra.mxu0 0.0
  %3500 = vmatprep.subr.mxu0 0.0
  %3501 = vmatpush1.msra.mxu0 0.0
  %3502 = vmatprep.subr.mxu0 0.0
  %3503 = vmatpush1.msra.mxu0 0.0
  %3504 = vmatprep.subr.mxu0 0.0
  %3505 = vmatpush1.msra.mxu0 0.0
  %3506 = vmatprep.subr.mxu0 0.0
  %3507 = vmatpush1.msra.mxu0 0.0
  %3508 = vmatprep.subr.mxu0 0.0
  %3509 = vmatpush1.msra.mxu0 0.0
  %3510 = vmatprep.subr.mxu0 0.0
  %3511 = vmatpush1.msra.mxu0 0.0
  %3512 = vmatprep.subr.mxu0 0.0
  %3513 = vmatpush1.msra.mxu0 0.0
  %3514 = vmatprep.subr.mxu0 0.0
  %3515 = vmatpush1.msra.mxu0 0.0
  %3516 = vmatprep.subr.mxu0 0.0
  %3517 = vmatpush1.msra.mxu0 0.0
  %3518 = vmatprep.subr.mxu0 0.0
  %3519 = vmatpush1.msra.mxu0 0.0
  %3520 = vmatprep.subr.mxu0 0.0
  %3521 = vmatpush1.msra.mxu0 0.0
  %3522 = vmatprep.subr.mxu0 0.0
  %3523 = vmatpush1.msra.mxu0 0.0
  %3524 = vmatprep.subr.mxu0 0.0
  %3525 = vmatpush1.msra.mxu0 0.0
  %3526 = vmatprep.subr.mxu0 0.0
  %3527 = vmatpush1.msra.mxu0 0.0
  %3528 = vmatprep.subr.mxu0 0.0
  %3529 = vmatpush1.msra.mxu0 0.0
  %3530 = vmatprep.subr.mxu0 0.0
  %3531 = vmatpush1.msra.mxu0 0.0
  %3532 = vmatprep.subr.mxu0 0.0
  %3533 = vmatpush1.msra.mxu0 0.0
  %3534 = vmatprep.subr.mxu0 0.0
  %3535 = vmatpush1.msra.mxu0 0.0
  %3536 = vmatprep.subr.mxu0 0.0
  %3537 = vmatpush1.msra.mxu0 0.0
  %3538 = vmatprep.subr.mxu0 0.0
  %3539 = vmatpush1.msra.mxu0 0.0
  %3540 = vmatprep.subr.mxu0 0.0
  %3541 = vmatpush1.msra.mxu0 0.0
  %3542 = vmatprep.subr.mxu0 0.0
  %3543 = vmatpush1.msra.mxu0 0.0
  %3544 = vmatprep.subr.mxu0 0.0
  %3545 = vmatpush1.msra.mxu0 0.0
  %3546 = vmatprep.subr.mxu0 0.0
  %3547 = vmatpush1.msra.mxu0 0.0
  %3548 = vmatprep.mubr.f32.mxu0 0.0
  %3549 = vmatmul.mubr.f32.gmra.mrb[0].mxu0 %v3237
  %v3550 = vpop.f32.mrb[0].mxu0
  %v3551 = vadd.f32 0.0, %v3550
  %v3552 = vpop.f32.mrb[0].mxu0
  %v3553 = vadd.f32 0.0, %v3552
  %3554 = vdwg.mxu0
  %3555 = vmatprep.subr.mxu0 %v3257
  %3556 = vmatpush1.msra.mxu0 %v3255
  %3557 = vmatprep.subr.mxu0 0.0
  %3558 = vmatpush1.msra.mxu0 0.0
  %3559 = vmatprep.subr.mxu0 0.0
  %3560 = vmatpush1.msra.mxu0 0.0
  %3561 = vmatprep.subr.mxu0 0.0
  %3562 = vmatpush1.msra.mxu0 0.0
  %3563 = vmatprep.subr.mxu0 0.0
  %3564 = vmatpush1.msra.mxu0 0.0
  %3565 = vmatprep.subr.mxu0 0.0
  %3566 = vmatpush1.msra.mxu0 0.0
  %3567 = vmatprep.subr.mxu0 0.0
  %3568 = vmatpush1.msra.mxu0 0.0
  %3569 = vmatprep.subr.mxu0 0.0
  %3570 = vmatpush1.msra.mxu0 0.0
  %3571 = vmatprep.subr.mxu0 0.0
  %3572 = vmatpush1.msra.mxu0 0.0
  %3573 = vmatprep.subr.mxu0 0.0
  %3574 = vmatpush1.msra.mxu0 0.0
  %3575 = vmatprep.subr.mxu0 0.0
  %3576 = vmatpush1.msra.mxu0 0.0
  %3577 = vmatprep.subr.mxu0 0.0
  %3578 = vmatpush1.msra.mxu0 0.0
  %3579 = vmatprep.subr.mxu0 0.0
  %3580 = vmatpush1.msra.mxu0 0.0
  %3581 = vmatprep.subr.mxu0 0.0
  %3582 = vmatpush1.msra.mxu0 0.0
  %3583 = vmatprep.subr.mxu0 0.0
  %3584 = vmatpush1.msra.mxu0 0.0
  %3585 = vmatprep.subr.mxu0 0.0
  %3586 = vmatpush1.msra.mxu0 0.0
  %3587 = vmatprep.subr.mxu0 0.0
  %3588 = vmatpush1.msra.mxu0 0.0
  %3589 = vmatprep.subr.mxu0 0.0
  %3590 = vmatpush1.msra.mxu0 0.0
  %3591 = vmatprep.subr.mxu0 0.0
  %3592 = vmatpush1.msra.mxu0 0.0
  %3593 = vmatprep.subr.mxu0 0.0
  %3594 = vmatpush1.msra.mxu0 0.0
  %3595 = vmatprep.subr.mxu0 0.0
  %3596 = vmatpush1.msra.mxu0 0.0
  %3597 = vmatprep.subr.mxu0 0.0
  %3598 = vmatpush1.msra.mxu0 0.0
  %3599 = vmatprep.subr.mxu0 0.0
  %3600 = vmatpush1.msra.mxu0 0.0
  %3601 = vmatprep.subr.mxu0 0.0
  %3602 = vmatpush1.msra.mxu0 0.0
  %3603 = vmatprep.subr.mxu0 0.0
  %3604 = vmatpush1.msra.mxu0 0.0
  %3605 = vmatprep.subr.mxu0 0.0
  %3606 = vmatpush1.msra.mxu0 0.0
  %3607 = vmatprep.subr.mxu0 0.0
  %3608 = vmatpush1.msra.mxu0 0.0
  %3609 = vmatprep.subr.mxu0 0.0
  %3610 = vmatpush1.msra.mxu0 0.0
  %3611 = vmatprep.subr.mxu0 0.0
  %3612 = vmatpush1.msra.mxu0 0.0
  %3613 = vmatprep.subr.mxu0 0.0
  %3614 = vmatpush1.msra.mxu0 0.0
  %3615 = vmatprep.subr.mxu0 0.0
  %3616 = vmatpush1.msra.mxu0 0.0
  %3617 = vmatprep.subr.mxu0 0.0
  %3618 = vmatpush1.msra.mxu0 0.0
  %3619 = vmatprep.mubr.f32.mxu0 0.0
  %3620 = vmatmul.mubr.f32.gmra.mrb[0].mxu0 %v3237
  %v3621 = vpop.f32.mrb[0].mxu0
  %v3622 = vadd.f32 0.0, %v3621
  %v3623 = vpop.f32.mrb[0].mxu0
  %v3624 = vadd.f32 0.0, %v3623
  %3625 = vdwg.mxu0
  %3626 = vmatprep.subr.mxu0 %v3261
  %3627 = vmatpush1.msra.mxu0 %v3259
  %3628 = vmatprep.subr.mxu0 0.0
  %3629 = vmatpush1.msra.mxu0 0.0
  %3630 = vmatprep.subr.mxu0 0.0
  %3631 = vmatpush1.msra.mxu0 0.0
  %3632 = vmatprep.subr.mxu0 0.0
  %3633 = vmatpush1.msra.mxu0 0.0
  %3634 = vmatprep.subr.mxu0 0.0
  %3635 = vmatpush1.msra.mxu0 0.0
  %3636 = vmatprep.subr.mxu0 0.0
  %3637 = vmatpush1.msra.mxu0 0.0
  %3638 = vmatprep.subr.mxu0 0.0
  %3639 = vmatpush1.msra.mxu0 0.0
  %3640 = vmatprep.subr.mxu0 0.0
  %3641 = vmatpush1.msra.mxu0 0.0
  %3642 = vmatprep.subr.mxu0 0.0
  %3643 = vmatpush1.msra.mxu0 0.0
  %3644 = vmatprep.subr.mxu0 0.0
  %3645 = vmatpush1.msra.mxu0 0.0
  %3646 = vmatprep.subr.mxu0 0.0
  %3647 = vmatpush1.msra.mxu0 0.0
  %3648 = vmatprep.subr.mxu0 0.0
  %3649 = vmatpush1.msra.mxu0 0.0
  %3650 = vmatprep.subr.mxu0 0.0
  %3651 = vmatpush1.msra.mxu0 0.0
  %3652 = vmatprep.subr.mxu0 0.0
  %3653 = vmatpush1.msra.mxu0 0.0
  %3654 = vmatprep.subr.mxu0 0.0
  %3655 = vmatpush1.msra.mxu0 0.0
  %3656 = vmatprep.subr.mxu0 0.0
  %3657 = vmatpush1.msra.mxu0 0.0
  %3658 = vmatprep.subr.mxu0 0.0
  %3659 = vmatpush1.msra.mxu0 0.0
  %3660 = vmatprep.subr.mxu0 0.0
  %3661 = vmatpush1.msra.mxu0 0.0
  %3662 = vmatprep.subr.mxu0 0.0
  %3663 = vmatpush1.msra.mxu0 0.0
  %3664 = vmatprep.subr.mxu0 0.0
  %3665 = vmatpush1.msra.mxu0 0.0
  %3666 = vmatprep.subr.mxu0 0.0
  %3667 = vmatpush1.msra.mxu0 0.0
  %3668 = vmatprep.subr.mxu0 0.0
  %3669 = vmatpush1.msra.mxu0 0.0
  %3670 = vmatprep.subr.mxu0 0.0
  %3671 = vmatpush1.msra.mxu0 0.0
  %3672 = vmatprep.subr.mxu0 0.0
  %3673 = vmatpush1.msra.mxu0 0.0
  %3674 = vmatprep.subr.mxu0 0.0
  %3675 = vmatpush1.msra.mxu0 0.0
  %3676 = vmatprep.subr.mxu0 0.0
  %3677 = vmatpush1.msra.mxu0 0.0
  %3678 = vmatprep.subr.mxu0 0.0
  %3679 = vmatpush1.msra.mxu0 0.0
  %3680 = vmatprep.subr.mxu0 0.0
  %3681 = vmatpush1.msra.mxu0 0.0
  %3682 = vmatprep.subr.mxu0 0.0
  %3683 = vmatpush1.msra.mxu0 0.0
  %3684 = vmatprep.subr.mxu0 0.0
  %3685 = vmatpush1.msra.mxu0 0.0
  %3686 = vmatprep.subr.mxu0 0.0
  %3687 = vmatpush1.msra.mxu0 0.0
  %3688 = vmatprep.subr.mxu0 0.0
  %3689 = vmatpush1.msra.mxu0 0.0
  %3690 = vmatprep.mubr.f32.mxu0 0.0
  %3691 = vmatmul.mubr.f32.gmra.mrb[0].mxu0 %v3237
  %v3692 = vpop.f32.mrb[0].mxu0
  %v3693 = vadd.f32 0.0, %v3692
  %v3694 = vpop.f32.mrb[0].mxu0
  %v3695 = vadd.f32 0.0, %v3694
  %3696 = vdwg.mxu0
  %3697 = vmatprep.subr.mxu0 %v3265
  %3698 = vmatpush1.msra.mxu0 %v3263
  %3699 = vmatprep.subr.mxu0 0.0
  %3700 = vmatpush1.msra.mxu0 0.0
  %3701 = vmatprep.subr.mxu0 0.0
  %3702 = vmatpush1.msra.mxu0 0.0
  %3703 = vmatprep.subr.mxu0 0.0
  %3704 = vmatpush1.msra.mxu0 0.0
  %3705 = vmatprep.subr.mxu0 0.0
  %3706 = vmatpush1.msra.mxu0 0.0
  %3707 = vmatprep.subr.mxu0 0.0
  %3708 = vmatpush1.msra.mxu0 0.0
  %3709 = vmatprep.subr.mxu0 0.0
  %3710 = vmatpush1.msra.mxu0 0.0
  %3711 = vmatprep.subr.mxu0 0.0
  %3712 = vmatpush1.msra.mxu0 0.0
  %3713 = vmatprep.subr.mxu0 0.0
  %3714 = vmatpush1.msra.mxu0 0.0
  %3715 = vmatprep.subr.mxu0 0.0
  %3716 = vmatpush1.msra.mxu0 0.0
  %3717 = vmatprep.subr.mxu0 0.0
  %3718 = vmatpush1.msra.mxu0 0.0
  %3719 = vmatprep.subr.mxu0 0.0
  %3720 = vmatpush1.msra.mxu0 0.0
  %3721 = vmatprep.subr.mxu0 0.0
  %3722 = vmatpush1.msra.mxu0 0.0
  %3723 = vmatprep.subr.mxu0 0.0
  %3724 = vmatpush1.msra.mxu0 0.0
  %3725 = vmatprep.subr.mxu0 0.0
  %3726 = vmatpush1.msra.mxu0 0.0
  %3727 = vmatprep.subr.mxu0 0.0
  %3728 = vmatpush1.msra.mxu0 0.0
  %3729 = vmatprep.subr.mxu0 0.0
  %3730 = vmatpush1.msra.mxu0 0.0
  %3731 = vmatprep.subr.mxu0 0.0
  %3732 = vmatpush1.msra.mxu0 0.0
  %3733 = vmatprep.subr.mxu0 0.0
  %3734 = vmatpush1.msra.mxu0 0.0
  %3735 = vmatprep.subr.mxu0 0.0
  %3736 = vmatpush1.msra.mxu0 0.0
  %3737 = vmatprep.subr.mxu0 0.0
  %3738 = vmatpush1.msra.mxu0 0.0
  %3739 = vmatprep.subr.mxu0 0.0
  %3740 = vmatpush1.msra.mxu0 0.0
  %3741 = vmatprep.subr.mxu0 0.0
  %3742 = vmatpush1.msra.mxu0 0.0
  %3743 = vmatprep.subr.mxu0 0.0
  %3744 = vmatpush1.msra.mxu0 0.0
  %3745 = vmatprep.subr.mxu0 0.0
  %3746 = vmatpush1.msra.mxu0 0.0
  %3747 = vmatprep.subr.mxu0 0.0
  %3748 = vmatpush1.msra.mxu0 0.0
  %3749 = vmatprep.subr.mxu0 0.0
  %3750 = vmatpush1.msra.mxu0 0.0
  %3751 = vmatprep.subr.mxu0 0.0
  %3752 = vmatpush1.msra.mxu0 0.0
  %3753 = vmatprep.subr.mxu0 0.0
  %3754 = vmatpush1.msra.mxu0 0.0
  %3755 = vmatprep.subr.mxu0 0.0
  %3756 = vmatpush1.msra.mxu0 0.0
  %3757 = vmatprep.subr.mxu0 0.0
  %3758 = vmatpush1.msra.mxu0 0.0
  %3759 = vmatprep.subr.mxu0 0.0
  %3760 = vmatpush1.msra.mxu0 0.0
  %3761 = vmatprep.mubr.f32.mxu0 0.0
  %3762 = vmatmul.mubr.f32.gmra.mrb[0].mxu0 %v3237
  %v3763 = vpop.f32.mrb[0].mxu0
  %v3764 = vadd.f32 0.0, %v3763
  %v3765 = vpop.f32.mrb[0].mxu0
  %v3766 = vadd.f32 0.0, %v3765
  %3767 = vdwg.mxu0
  %3768 = vmatprep.subr.mxu0 %v3269
  %3769 = vmatpush1.msra.mxu0 %v3267
  %3770 = vmatprep.subr.mxu0 0.0
  %3771 = vmatpush1.msra.mxu0 0.0
  %3772 = vmatprep.subr.mxu0 0.0
  %3773 = vmatpush1.msra.mxu0 0.0
  %3774 = vmatprep.subr.mxu0 0.0
  %3775 = vmatpush1.msra.mxu0 0.0
  %3776 = vmatprep.subr.mxu0 0.0
  %3777 = vmatpush1.msra.mxu0 0.0
  %3778 = vmatprep.subr.mxu0 0.0
  %3779 = vmatpush1.msra.mxu0 0.0
  %3780 = vmatprep.subr.mxu0 0.0
  %3781 = vmatpush1.msra.mxu0 0.0
  %3782 = vmatprep.subr.mxu0 0.0
  %3783 = vmatpush1.msra.mxu0 0.0
  %3784 = vmatprep.subr.mxu0 0.0
  %3785 = vmatpush1.msra.mxu0 0.0
  %3786 = vmatprep.subr.mxu0 0.0
  %3787 = vmatpush1.msra.mxu0 0.0
  %3788 = vmatprep.subr.mxu0 0.0
  %3789 = vmatpush1.msra.mxu0 0.0
  %3790 = vmatprep.subr.mxu0 0.0
  %3791 = vmatpush1.msra.mxu0 0.0
  %3792 = vmatprep.subr.mxu0 0.0
  %3793 = vmatpush1.msra.mxu0 0.0
  %3794 = vmatprep.subr.mxu0 0.0
  %3795 = vmatpush1.msra.mxu0 0.0
  %3796 = vmatprep.subr.mxu0 0.0
  %3797 = vmatpush1.msra.mxu0 0.0
  %3798 = vmatprep.subr.mxu0 0.0
  %3799 = vmatpush1.msra.mxu0 0.0
  %3800 = vmatprep.subr.mxu0 0.0
  %3801 = vmatpush1.msra.mxu0 0.0
  %3802 = vmatprep.subr.mxu0 0.0
  %3803 = vmatpush1.msra.mxu0 0.0
  %3804 = vmatprep.subr.mxu0 0.0
  %3805 = vmatpush1.msra.mxu0 0.0
  %3806 = vmatprep.subr.mxu0 0.0
  %3807 = vmatpush1.msra.mxu0 0.0
  %3808 = vmatprep.subr.mxu0 0.0
  %3809 = vmatpush1.msra.mxu0 0.0
  %3810 = vmatprep.subr.mxu0 0.0
  %3811 = vmatpush1.msra.mxu0 0.0
  %3812 = vmatprep.subr.mxu0 0.0
  %3813 = vmatpush1.msra.mxu0 0.0
  %3814 = vmatprep.subr.mxu0 0.0
  %3815 = vmatpush1.msra.mxu0 0.0
  %3816 = vmatprep.subr.mxu0 0.0
  %3817 = vmatpush1.msra.mxu0 0.0
  %3818 = vmatprep.subr.mxu0 0.0
  %3819 = vmatpush1.msra.mxu0 0.0
  %3820 = vmatprep.subr.mxu0 0.0
  %3821 = vmatpush1.msra.mxu0 0.0
  %3822 = vmatprep.subr.mxu0 0.0
  %3823 = vmatpush1.msra.mxu0 0.0
  %3824 = vmatprep.subr.mxu0 0.0
  %3825 = vmatpush1.msra.mxu0 0.0
  %3826 = vmatprep.subr.mxu0 0.0
  %3827 = vmatpush1.msra.mxu0 0.0
  %3828 = vmatprep.subr.mxu0 0.0
  %3829 = vmatpush1.msra.mxu0 0.0
  %3830 = vmatprep.subr.mxu0 0.0
  %3831 = vmatpush1.msra.mxu0 0.0
  %3832 = vmatprep.mubr.f32.mxu0 0.0
  %3833 = vmatmul.mubr.f32.gmra.mrb[0].mxu0 %v3237
  %v3834 = vpop.f32.mrb[0].mxu0
  %v3835 = vadd.f32 0.0, %v3834
  %v3836 = vpop.f32.mrb[0].mxu0
  %v3837 = vadd.f32 0.0, %v3836
  %3838 = vdwg.mxu0
  %v3839 = vadd.f32 %v3194, %v3338
  %v3840 = vadd.f32 %v3195, %v3340
  %v3841 = vadd.f32 %v3196, %v3409
  %v3842 = vadd.f32 %v3197, %v3411
  %v3843 = vadd.f32 %v3198, %v3480
  %v3844 = vadd.f32 %v3199, %v3482
  %v3845 = vadd.f32 %v3200, %v3551
  %v3846 = vadd.f32 %v3201, %v3553
  %v3847 = vadd.f32 %v3202, %v3622
  %v3848 = vadd.f32 %v3203, %v3624
  %v3849 = vadd.f32 %v3204, %v3693
  %v3850 = vadd.f32 %v3205, %v3695
  %v3851 = vadd.f32 %v3206, %v3764
  %v3852 = vadd.f32 %v3207, %v3766
  %v3853 = vadd.f32 %v3208, %v3835
  %v3854 = vadd.f32 %v3209, %v3837
  %v3855 = vld [vmem:[%s0 + $0x18] sm:$0xff]
  %v3856 = vld [vmem:[%s0 + $0x20] sm:$0xff]
  %v3857 = vld [vmem:[%s0 + $0x28] sm:$0xff]
  %v3858 = vld [vmem:[%s0 + $0x30] sm:$0xff]
  %v3859 = vld [vmem:[%s0 + $0x38] sm:$0xff]
  %v3860 = vld [vmem:[%s0 + $0x40] sm:$0xff]
  %v3861 = vld [vmem:[%s0 + $0x48] sm:$0xff]
  %v3862 = vld [vmem:[%s0 + $0x50] sm:$0xff]
  %s3863 = scalar_lea.vmem %s1, 48
  %v3864 = vld [vmem:[%s3863] sm:$0xff]
  %v3873 = vcombine.high %v3855, %v3855
  %v3874 = vcombine.high %v3856, %v3856
  %v3875 = vcombine.high %v3857, %v3857
  %v3876 = vcombine.high %v3858, %v3858
  %v3877 = vcombine.high %v3859, %v3859
  %v3878 = vcombine.high %v3860, %v3860
  %v3879 = vcombine.high %v3861, %v3861
  %v3880 = vcombine.high %v3862, %v3862
  %v3882 = vsel %vm51, %v3864, 0
  %v3884 = vsel %vm55, %v3855, 0
  %v3886 = vsel %vm55, %v3873, 0
  %v3888 = vsel %vm55, %v3856, 0
  %v3890 = vsel %vm55, %v3874, 0
  %v3892 = vsel %vm55, %v3857, 0
  %v3894 = vsel %vm55, %v3875, 0
  %v3896 = vsel %vm55, %v3858, 0
  %v3898 = vsel %vm55, %v3876, 0
  %v3900 = vsel %vm55, %v3859, 0
  %v3902 = vsel %vm55, %v3877, 0
  %v3904 = vsel %vm55, %v3860, 0
  %v3906 = vsel %vm55, %v3878, 0
  %v3908 = vsel %vm55, %v3861, 0
  %v3910 = vsel %vm55, %v3879, 0
  %v3912 = vsel %vm55, %v3862, 0
  %v3914 = vsel %vm55, %v3880, 0
  %3916 = vmatprep.subr.mxu0 %v3886
  %3917 = vmatpush1.msra.mxu0 %v3884
  %3918 = vmatprep.subr.mxu0 0.0
  %3919 = vmatpush1.msra.mxu0 0.0
  %3920 = vmatprep.subr.mxu0 0.0
  %3921 = vmatpush1.msra.mxu0 0.0
  %3922 = vmatprep.subr.mxu0 0.0
  %3923 = vmatpush1.msra.mxu0 0.0
  %3924 = vmatprep.subr.mxu0 0.0
  %3925 = vmatpush1.msra.mxu0 0.0
  %3926 = vmatprep.subr.mxu0 0.0
  %3927 = vmatpush1.msra.mxu0 0.0
  %3928 = vmatprep.subr.mxu0 0.0
  %3929 = vmatpush1.msra.mxu0 0.0
  %3930 = vmatprep.subr.mxu0 0.0
  %3931 = vmatpush1.msra.mxu0 0.0
  %3932 = vmatprep.subr.mxu0 0.0
  %3933 = vmatpush1.msra.mxu0 0.0
  %3934 = vmatprep.subr.mxu0 0.0
  %3935 = vmatpush1.msra.mxu0 0.0
  %3936 = vmatprep.subr.mxu0 0.0
  %3937 = vmatpush1.msra.mxu0 0.0
  %3938 = vmatprep.subr.mxu0 0.0
  %3939 = vmatpush1.msra.mxu0 0.0
  %3940 = vmatprep.subr.mxu0 0.0
  %3941 = vmatpush1.msra.mxu0 0.0
  %3942 = vmatprep.subr.mxu0 0.0
  %3943 = vmatpush1.msra.mxu0 0.0
  %3944 = vmatprep.subr.mxu0 0.0
  %3945 = vmatpush1.msra.mxu0 0.0
  %3946 = vmatprep.subr.mxu0 0.0
  %3947 = vmatpush1.msra.mxu0 0.0
  %3948 = vmatprep.subr.mxu0 0.0
  %3949 = vmatpush1.msra.mxu0 0.0
  %3950 = vmatprep.subr.mxu0 0.0
  %3951 = vmatpush1.msra.mxu0 0.0
  %3952 = vmatprep.subr.mxu0 0.0
  %3953 = vmatpush1.msra.mxu0 0.0
  %3954 = vmatprep.subr.mxu0 0.0
  %3955 = vmatpush1.msra.mxu0 0.0
  %3956 = vmatprep.subr.mxu0 0.0
  %3957 = vmatpush1.msra.mxu0 0.0
  %3958 = vmatprep.subr.mxu0 0.0
  %3959 = vmatpush1.msra.mxu0 0.0
  %3960 = vmatprep.subr.mxu0 0.0
  %3961 = vmatpush1.msra.mxu0 0.0
  %3962 = vmatprep.subr.mxu0 0.0
  %3963 = vmatpush1.msra.mxu0 0.0
  %3964 = vmatprep.subr.mxu0 0.0
  %3965 = vmatpush1.msra.mxu0 0.0
  %3966 = vmatprep.subr.mxu0 0.0
  %3967 = vmatpush1.msra.mxu0 0.0
  %3968 = vmatprep.subr.mxu0 0.0
  %3969 = vmatpush1.msra.mxu0 0.0
  %3970 = vmatprep.subr.mxu0 0.0
  %3971 = vmatpush1.msra.mxu0 0.0
  %3972 = vmatprep.subr.mxu0 0.0
  %3973 = vmatpush1.msra.mxu0 0.0
  %3974 = vmatprep.subr.mxu0 0.0
  %3975 = vmatpush1.msra.mxu0 0.0
  %3976 = vmatprep.subr.mxu0 0.0
  %3977 = vmatpush1.msra.mxu0 0.0
  %3978 = vmatprep.subr.mxu0 0.0
  %3979 = vmatpush1.msra.mxu0 0.0
  %3980 = vmatprep.mubr.f32.mxu0 0.0
  %3981 = vmatmul.mubr.f32.gmra.mrb[0].mxu0 %v3882
  %v3982 = vpop.f32.mrb[0].mxu0
  %v3983 = vadd.f32 0.0, %v3982
  %v3984 = vpop.f32.mrb[0].mxu0
  %v3985 = vadd.f32 0.0, %v3984
  %3986 = vdwg.mxu0
  %3987 = vmatprep.subr.mxu0 %v3890
  %3988 = vmatpush1.msra.mxu0 %v3888
  %3989 = vmatprep.subr.mxu0 0.0
  %3990 = vmatpush1.msra.mxu0 0.0
  %3991 = vmatprep.subr.mxu0 0.0
  %3992 = vmatpush1.msra.mxu0 0.0
  %3993 = vmatprep.subr.mxu0 0.0
  %3994 = vmatpush1.msra.mxu0 0.0
  %3995 = vmatprep.subr.mxu0 0.0
  %3996 = vmatpush1.msra.mxu0 0.0
  %3997 = vmatprep.subr.mxu0 0.0
  %3998 = vmatpush1.msra.mxu0 0.0
  %3999 = vmatprep.subr.mxu0 0.0
  %4000 = vmatpush1.msra.mxu0 0.0
  %4001 = vmatprep.subr.mxu0 0.0
  %4002 = vmatpush1.msra.mxu0 0.0
  %4003 = vmatprep.subr.mxu0 0.0
  %4004 = vmatpush1.msra.mxu0 0.0
  %4005 = vmatprep.subr.mxu0 0.0
  %4006 = vmatpush1.msra.mxu0 0.0
  %4007 = vmatprep.subr.mxu0 0.0
  %4008 = vmatpush1.msra.mxu0 0.0
  %4009 = vmatprep.subr.mxu0 0.0
  %4010 = vmatpush1.msra.mxu0 0.0
  %4011 = vmatprep.subr.mxu0 0.0
  %4012 = vmatpush1.msra.mxu0 0.0
  %4013 = vmatprep.subr.mxu0 0.0
  %4014 = vmatpush1.msra.mxu0 0.0
  %4015 = vmatprep.subr.mxu0 0.0
  %4016 = vmatpush1.msra.mxu0 0.0
  %4017 = vmatprep.subr.mxu0 0.0
  %4018 = vmatpush1.msra.mxu0 0.0
  %4019 = vmatprep.subr.mxu0 0.0
  %4020 = vmatpush1.msra.mxu0 0.0
  %4021 = vmatprep.subr.mxu0 0.0
  %4022 = vmatpush1.msra.mxu0 0.0
  %4023 = vmatprep.subr.mxu0 0.0
  %4024 = vmatpush1.msra.mxu0 0.0
  %4025 = vmatprep.subr.mxu0 0.0
  %4026 = vmatpush1.msra.mxu0 0.0
  %4027 = vmatprep.subr.mxu0 0.0
  %4028 = vmatpush1.msra.mxu0 0.0
  %4029 = vmatprep.subr.mxu0 0.0
  %4030 = vmatpush1.msra.mxu0 0.0
  %4031 = vmatprep.subr.mxu0 0.0
  %4032 = vmatpush1.msra.mxu0 0.0
  %4033 = vmatprep.subr.mxu0 0.0
  %4034 = vmatpush1.msra.mxu0 0.0
  %4035 = vmatprep.subr.mxu0 0.0
  %4036 = vmatpush1.msra.mxu0 0.0
  %4037 = vmatprep.subr.mxu0 0.0
  %4038 = vmatpush1.msra.mxu0 0.0
  %4039 = vmatprep.subr.mxu0 0.0
  %4040 = vmatpush1.msra.mxu0 0.0
  %4041 = vmatprep.subr.mxu0 0.0
  %4042 = vmatpush1.msra.mxu0 0.0
  %4043 = vmatprep.subr.mxu0 0.0
  %4044 = vmatpush1.msra.mxu0 0.0
  %4045 = vmatprep.subr.mxu0 0.0
  %4046 = vmatpush1.msra.mxu0 0.0
  %4047 = vmatprep.subr.mxu0 0.0
  %4048 = vmatpush1.msra.mxu0 0.0
  %4049 = vmatprep.subr.mxu0 0.0
  %4050 = vmatpush1.msra.mxu0 0.0
  %4051 = vmatprep.mubr.f32.mxu0 0.0
  %4052 = vmatmul.mubr.f32.gmra.mrb[0].mxu0 %v3882
  %v4053 = vpop.f32.mrb[0].mxu0
  %v4054 = vadd.f32 0.0, %v4053
  %v4055 = vpop.f32.mrb[0].mxu0
  %v4056 = vadd.f32 0.0, %v4055
  %4057 = vdwg.mxu0
  %4058 = vmatprep.subr.mxu0 %v3894
  %4059 = vmatpush1.msra.mxu0 %v3892
  %4060 = vmatprep.subr.mxu0 0.0
  %4061 = vmatpush1.msra.mxu0 0.0
  %4062 = vmatprep.subr.mxu0 0.0
  %4063 = vmatpush1.msra.mxu0 0.0
  %4064 = vmatprep.subr.mxu0 0.0
  %4065 = vmatpush1.msra.mxu0 0.0
  %4066 = vmatprep.subr.mxu0 0.0
  %4067 = vmatpush1.msra.mxu0 0.0
  %4068 = vmatprep.subr.mxu0 0.0
  %4069 = vmatpush1.msra.mxu0 0.0
  %4070 = vmatprep.subr.mxu0 0.0
  %4071 = vmatpush1.msra.mxu0 0.0
  %4072 = vmatprep.subr.mxu0 0.0
  %4073 = vmatpush1.msra.mxu0 0.0
  %4074 = vmatprep.subr.mxu0 0.0
  %4075 = vmatpush1.msra.mxu0 0.0
  %4076 = vmatprep.subr.mxu0 0.0
  %4077 = vmatpush1.msra.mxu0 0.0
  %4078 = vmatprep.subr.mxu0 0.0
  %4079 = vmatpush1.msra.mxu0 0.0
  %4080 = vmatprep.subr.mxu0 0.0
  %4081 = vmatpush1.msra.mxu0 0.0
  %4082 = vmatprep.subr.mxu0 0.0
  %4083 = vmatpush1.msra.mxu0 0.0
  %4084 = vmatprep.subr.mxu0 0.0
  %4085 = vmatpush1.msra.mxu0 0.0
  %4086 = vmatprep.subr.mxu0 0.0
  %4087 = vmatpush1.msra.mxu0 0.0
  %4088 = vmatprep.subr.mxu0 0.0
  %4089 = vmatpush1.msra.mxu0 0.0
  %4090 = vmatprep.subr.mxu0 0.0
  %4091 = vmatpush1.msra.mxu0 0.0
  %4092 = vmatprep.subr.mxu0 0.0
  %4093 = vmatpush1.msra.mxu0 0.0
  %4094 = vmatprep.subr.mxu0 0.0
  %4095 = vmatpush1.msra.mxu0 0.0
  %4096 = vmatprep.subr.mxu0 0.0
  %4097 = vmatpush1.msra.mxu0 0.0
  %4098 = vmatprep.subr.mxu0 0.0
  %4099 = vmatpush1.msra.mxu0 0.0
  %4100 = vmatprep.subr.mxu0 0.0
  %4101 = vmatpush1.msra.mxu0 0.0
  %4102 = vmatprep.subr.mxu0 0.0
  %4103 = vmatpush1.msra.mxu0 0.0
  %4104 = vmatprep.subr.mxu0 0.0
  %4105 = vmatpush1.msra.mxu0 0.0
  %4106 = vmatprep.subr.mxu0 0.0
  %4107 = vmatpush1.msra.mxu0 0.0
  %4108 = vmatprep.subr.mxu0 0.0
  %4109 = vmatpush1.msra.mxu0 0.0
  %4110 = vmatprep.subr.mxu0 0.0
  %4111 = vmatpush1.msra.mxu0 0.0
  %4112 = vmatprep.subr.mxu0 0.0
  %4113 = vmatpush1.msra.mxu0 0.0
  %4114 = vmatprep.subr.mxu0 0.0
  %4115 = vmatpush1.msra.mxu0 0.0
  %4116 = vmatprep.subr.mxu0 0.0
  %4117 = vmatpush1.msra.mxu0 0.0
  %4118 = vmatprep.subr.mxu0 0.0
  %4119 = vmatpush1.msra.mxu0 0.0
  %4120 = vmatprep.subr.mxu0 0.0
  %4121 = vmatpush1.msra.mxu0 0.0
  %4122 = vmatprep.mubr.f32.mxu0 0.0
  %4123 = vmatmul.mubr.f32.gmra.mrb[0].mxu0 %v3882
  %v4124 = vpop.f32.mrb[0].mxu0
  %v4125 = vadd.f32 0.0, %v4124
  %v4126 = vpop.f32.mrb[0].mxu0
  %v4127 = vadd.f32 0.0, %v4126
  %4128 = vdwg.mxu0
  %4129 = vmatprep.subr.mxu0 %v3898
  %4130 = vmatpush1.msra.mxu0 %v3896
  %4131 = vmatprep.subr.mxu0 0.0
  %4132 = vmatpush1.msra.mxu0 0.0
  %4133 = vmatprep.subr.mxu0 0.0
  %4134 = vmatpush1.msra.mxu0 0.0
  %4135 = vmatprep.subr.mxu0 0.0
  %4136 = vmatpush1.msra.mxu0 0.0
  %4137 = vmatprep.subr.mxu0 0.0
  %4138 = vmatpush1.msra.mxu0 0.0
  %4139 = vmatprep.subr.mxu0 0.0
  %4140 = vmatpush1.msra.mxu0 0.0
  %4141 = vmatprep.subr.mxu0 0.0
  %4142 = vmatpush1.msra.mxu0 0.0
  %4143 = vmatprep.subr.mxu0 0.0
  %4144 = vmatpush1.msra.mxu0 0.0
  %4145 = vmatprep.subr.mxu0 0.0
  %4146 = vmatpush1.msra.mxu0 0.0
  %4147 = vmatprep.subr.mxu0 0.0
  %4148 = vmatpush1.msra.mxu0 0.0
  %4149 = vmatprep.subr.mxu0 0.0
  %4150 = vmatpush1.msra.mxu0 0.0
  %4151 = vmatprep.subr.mxu0 0.0
  %4152 = vmatpush1.msra.mxu0 0.0
  %4153 = vmatprep.subr.mxu0 0.0
  %4154 = vmatpush1.msra.mxu0 0.0
  %4155 = vmatprep.subr.mxu0 0.0
  %4156 = vmatpush1.msra.mxu0 0.0
  %4157 = vmatprep.subr.mxu0 0.0
  %4158 = vmatpush1.msra.mxu0 0.0
  %4159 = vmatprep.subr.mxu0 0.0
  %4160 = vmatpush1.msra.mxu0 0.0
  %4161 = vmatprep.subr.mxu0 0.0
  %4162 = vmatpush1.msra.mxu0 0.0
  %4163 = vmatprep.subr.mxu0 0.0
  %4164 = vmatpush1.msra.mxu0 0.0
  %4165 = vmatprep.subr.mxu0 0.0
  %4166 = vmatpush1.msra.mxu0 0.0
  %4167 = vmatprep.subr.mxu0 0.0
  %4168 = vmatpush1.msra.mxu0 0.0
  %4169 = vmatprep.subr.mxu0 0.0
  %4170 = vmatpush1.msra.mxu0 0.0
  %4171 = vmatprep.subr.mxu0 0.0
  %4172 = vmatpush1.msra.mxu0 0.0
  %4173 = vmatprep.subr.mxu0 0.0
  %4174 = vmatpush1.msra.mxu0 0.0
  %4175 = vmatprep.subr.mxu0 0.0
  %4176 = vmatpush1.msra.mxu0 0.0
  %4177 = vmatprep.subr.mxu0 0.0
  %4178 = vmatpush1.msra.mxu0 0.0
  %4179 = vmatprep.subr.mxu0 0.0
  %4180 = vmatpush1.msra.mxu0 0.0
  %4181 = vmatprep.subr.mxu0 0.0
  %4182 = vmatpush1.msra.mxu0 0.0
  %4183 = vmatprep.subr.mxu0 0.0
  %4184 = vmatpush1.msra.mxu0 0.0
  %4185 = vmatprep.subr.mxu0 0.0
  %4186 = vmatpush1.msra.mxu0 0.0
  %4187 = vmatprep.subr.mxu0 0.0
  %4188 = vmatpush1.msra.mxu0 0.0
  %4189 = vmatprep.subr.mxu0 0.0
  %4190 = vmatpush1.msra.mxu0 0.0
  %4191 = vmatprep.subr.mxu0 0.0
  %4192 = vmatpush1.msra.mxu0 0.0
  %4193 = vmatprep.mubr.f32.mxu0 0.0
  %4194 = vmatmul.mubr.f32.gmra.mrb[0].mxu0 %v3882
  %v4195 = vpop.f32.mrb[0].mxu0
  %v4196 = vadd.f32 0.0, %v4195
  %v4197 = vpop.f32.mrb[0].mxu0
  %v4198 = vadd.f32 0.0, %v4197
  %4199 = vdwg.mxu0
  %4200 = vmatprep.subr.mxu0 %v3902
  %4201 = vmatpush1.msra.mxu0 %v3900
  %4202 = vmatprep.subr.mxu0 0.0
  %4203 = vmatpush1.msra.mxu0 0.0
  %4204 = vmatprep.subr.mxu0 0.0
  %4205 = vmatpush1.msra.mxu0 0.0
  %4206 = vmatprep.subr.mxu0 0.0
  %4207 = vmatpush1.msra.mxu0 0.0
  %4208 = vmatprep.subr.mxu0 0.0
  %4209 = vmatpush1.msra.mxu0 0.0
  %4210 = vmatprep.subr.mxu0 0.0
  %4211 = vmatpush1.msra.mxu0 0.0
  %4212 = vmatprep.subr.mxu0 0.0
  %4213 = vmatpush1.msra.mxu0 0.0
  %4214 = vmatprep.subr.mxu0 0.0
  %4215 = vmatpush1.msra.mxu0 0.0
  %4216 = vmatprep.subr.mxu0 0.0
  %4217 = vmatpush1.msra.mxu0 0.0
  %4218 = vmatprep.subr.mxu0 0.0
  %4219 = vmatpush1.msra.mxu0 0.0
  %4220 = vmatprep.subr.mxu0 0.0
  %4221 = vmatpush1.msra.mxu0 0.0
  %4222 = vmatprep.subr.mxu0 0.0
  %4223 = vmatpush1.msra.mxu0 0.0
  %4224 = vmatprep.subr.mxu0 0.0
  %4225 = vmatpush1.msra.mxu0 0.0
  %4226 = vmatprep.subr.mxu0 0.0
  %4227 = vmatpush1.msra.mxu0 0.0
  %4228 = vmatprep.subr.mxu0 0.0
  %4229 = vmatpush1.msra.mxu0 0.0
  %4230 = vmatprep.subr.mxu0 0.0
  %4231 = vmatpush1.msra.mxu0 0.0
  %4232 = vmatprep.subr.mxu0 0.0
  %4233 = vmatpush1.msra.mxu0 0.0
  %4234 = vmatprep.subr.mxu0 0.0
  %4235 = vmatpush1.msra.mxu0 0.0
  %4236 = vmatprep.subr.mxu0 0.0
  %4237 = vmatpush1.msra.mxu0 0.0
  %4238 = vmatprep.subr.mxu0 0.0
  %4239 = vmatpush1.msra.mxu0 0.0
  %4240 = vmatprep.subr.mxu0 0.0
  %4241 = vmatpush1.msra.mxu0 0.0
  %4242 = vmatprep.subr.mxu0 0.0
  %4243 = vmatpush1.msra.mxu0 0.0
  %4244 = vmatprep.subr.mxu0 0.0
  %4245 = vmatpush1.msra.mxu0 0.0
  %4246 = vmatprep.subr.mxu0 0.0
  %4247 = vmatpush1.msra.mxu0 0.0
  %4248 = vmatprep.subr.mxu0 0.0
  %4249 = vmatpush1.msra.mxu0 0.0
  %4250 = vmatprep.subr.mxu0 0.0
  %4251 = vmatpush1.msra.mxu0 0.0
  %4252 = vmatprep.subr.mxu0 0.0
  %4253 = vmatpush1.msra.mxu0 0.0
  %4254 = vmatprep.subr.mxu0 0.0
  %4255 = vmatpush1.msra.mxu0 0.0
  %4256 = vmatprep.subr.mxu0 0.0
  %4257 = vmatpush1.msra.mxu0 0.0
  %4258 = vmatprep.subr.mxu0 0.0
  %4259 = vmatpush1.msra.mxu0 0.0
  %4260 = vmatprep.subr.mxu0 0.0
  %4261 = vmatpush1.msra.mxu0 0.0
  %4262 = vmatprep.subr.mxu0 0.0
  %4263 = vmatpush1.msra.mxu0 0.0
  %4264 = vmatprep.mubr.f32.mxu0 0.0
  %4265 = vmatmul.mubr.f32.gmra.mrb[0].mxu0 %v3882
  %v4266 = vpop.f32.mrb[0].mxu0
  %v4267 = vadd.f32 0.0, %v4266
  %v4268 = vpop.f32.mrb[0].mxu0
  %v4269 = vadd.f32 0.0, %v4268
  %4270 = vdwg.mxu0
  %4271 = vmatprep.subr.mxu0 %v3906
  %4272 = vmatpush1.msra.mxu0 %v3904
  %4273 = vmatprep.subr.mxu0 0.0
  %4274 = vmatpush1.msra.mxu0 0.0
  %4275 = vmatprep.subr.mxu0 0.0
  %4276 = vmatpush1.msra.mxu0 0.0
  %4277 = vmatprep.subr.mxu0 0.0
  %4278 = vmatpush1.msra.mxu0 0.0
  %4279 = vmatprep.subr.mxu0 0.0
  %4280 = vmatpush1.msra.mxu0 0.0
  %4281 = vmatprep.subr.mxu0 0.0
  %4282 = vmatpush1.msra.mxu0 0.0
  %4283 = vmatprep.subr.mxu0 0.0
  %4284 = vmatpush1.msra.mxu0 0.0
  %4285 = vmatprep.subr.mxu0 0.0
  %4286 = vmatpush1.msra.mxu0 0.0
  %4287 = vmatprep.subr.mxu0 0.0
  %4288 = vmatpush1.msra.mxu0 0.0
  %4289 = vmatprep.subr.mxu0 0.0
  %4290 = vmatpush1.msra.mxu0 0.0
  %4291 = vmatprep.subr.mxu0 0.0
  %4292 = vmatpush1.msra.mxu0 0.0
  %4293 = vmatprep.subr.mxu0 0.0
  %4294 = vmatpush1.msra.mxu0 0.0
  %4295 = vmatprep.subr.mxu0 0.0
  %4296 = vmatpush1.msra.mxu0 0.0
  %4297 = vmatprep.subr.mxu0 0.0
  %4298 = vmatpush1.msra.mxu0 0.0
  %4299 = vmatprep.subr.mxu0 0.0
  %4300 = vmatpush1.msra.mxu0 0.0
  %4301 = vmatprep.subr.mxu0 0.0
  %4302 = vmatpush1.msra.mxu0 0.0
  %4303 = vmatprep.subr.mxu0 0.0
  %4304 = vmatpush1.msra.mxu0 0.0
  %4305 = vmatprep.subr.mxu0 0.0
  %4306 = vmatpush1.msra.mxu0 0.0
  %4307 = vmatprep.subr.mxu0 0.0
  %4308 = vmatpush1.msra.mxu0 0.0
  %4309 = vmatprep.subr.mxu0 0.0
  %4310 = vmatpush1.msra.mxu0 0.0
  %4311 = vmatprep.subr.mxu0 0.0
  %4312 = vmatpush1.msra.mxu0 0.0
  %4313 = vmatprep.subr.mxu0 0.0
  %4314 = vmatpush1.msra.mxu0 0.0
  %4315 = vmatprep.subr.mxu0 0.0
  %4316 = vmatpush1.msra.mxu0 0.0
  %4317 = vmatprep.subr.mxu0 0.0
  %4318 = vmatpush1.msra.mxu0 0.0
  %4319 = vmatprep.subr.mxu0 0.0
  %4320 = vmatpush1.msra.mxu0 0.0
  %4321 = vmatprep.subr.mxu0 0.0
  %4322 = vmatpush1.msra.mxu0 0.0
  %4323 = vmatprep.subr.mxu0 0.0
  %4324 = vmatpush1.msra.mxu0 0.0
  %4325 = vmatprep.subr.mxu0 0.0
  %4326 = vmatpush1.msra.mxu0 0.0
  %4327 = vmatprep.subr.mxu0 0.0
  %4328 = vmatpush1.msra.mxu0 0.0
  %4329 = vmatprep.subr.mxu0 0.0
  %4330 = vmatpush1.msra.mxu0 0.0
  %4331 = vmatprep.subr.mxu0 0.0
  %4332 = vmatpush1.msra.mxu0 0.0
  %4333 = vmatprep.subr.mxu0 0.0
  %4334 = vmatpush1.msra.mxu0 0.0
  %4335 = vmatprep.mubr.f32.mxu0 0.0
  %4336 = vmatmul.mubr.f32.gmra.mrb[0].mxu0 %v3882
  %v4337 = vpop.f32.mrb[0].mxu0
  %v4338 = vadd.f32 0.0, %v4337
  %v4339 = vpop.f32.mrb[0].mxu0
  %v4340 = vadd.f32 0.0, %v4339
  %4341 = vdwg.mxu0
  %4342 = vmatprep.subr.mxu0 %v3910
  %4343 = vmatpush1.msra.mxu0 %v3908
  %4344 = vmatprep.subr.mxu0 0.0
  %4345 = vmatpush1.msra.mxu0 0.0
  %4346 = vmatprep.subr.mxu0 0.0
  %4347 = vmatpush1.msra.mxu0 0.0
  %4348 = vmatprep.subr.mxu0 0.0
  %4349 = vmatpush1.msra.mxu0 0.0
  %4350 = vmatprep.subr.mxu0 0.0
  %4351 = vmatpush1.msra.mxu0 0.0
  %4352 = vmatprep.subr.mxu0 0.0
  %4353 = vmatpush1.msra.mxu0 0.0
  %4354 = vmatprep.subr.mxu0 0.0
  %4355 = vmatpush1.msra.mxu0 0.0
  %4356 = vmatprep.subr.mxu0 0.0
  %4357 = vmatpush1.msra.mxu0 0.0
  %4358 = vmatprep.subr.mxu0 0.0
  %4359 = vmatpush1.msra.mxu0 0.0
  %4360 = vmatprep.subr.mxu0 0.0
  %4361 = vmatpush1.msra.mxu0 0.0
  %4362 = vmatprep.subr.mxu0 0.0
  %4363 = vmatpush1.msra.mxu0 0.0
  %4364 = vmatprep.subr.mxu0 0.0
  %4365 = vmatpush1.msra.mxu0 0.0
  %4366 = vmatprep.subr.mxu0 0.0
  %4367 = vmatpush1.msra.mxu0 0.0
  %4368 = vmatprep.subr.mxu0 0.0
  %4369 = vmatpush1.msra.mxu0 0.0
  %4370 = vmatprep.subr.mxu0 0.0
  %4371 = vmatpush1.msra.mxu0 0.0
  %4372 = vmatprep.subr.mxu0 0.0
  %4373 = vmatpush1.msra.mxu0 0.0
  %4374 = vmatprep.subr.mxu0 0.0
  %4375 = vmatpush1.msra.mxu0 0.0
  %4376 = vmatprep.subr.mxu0 0.0
  %4377 = vmatpush1.msra.mxu0 0.0
  %4378 = vmatprep.subr.mxu0 0.0
  %4379 = vmatpush1.msra.mxu0 0.0
  %4380 = vmatprep.subr.mxu0 0.0
  %4381 = vmatpush1.msra.mxu0 0.0
  %4382 = vmatprep.subr.mxu0 0.0
  %4383 = vmatpush1.msra.mxu0 0.0
  %4384 = vmatprep.subr.mxu0 0.0
  %4385 = vmatpush1.msra.mxu0 0.0
  %4386 = vmatprep.subr.mxu0 0.0
  %4387 = vmatpush1.msra.mxu0 0.0
  %4388 = vmatprep.subr.mxu0 0.0
  %4389 = vmatpush1.msra.mxu0 0.0
  %4390 = vmatprep.subr.mxu0 0.0
  %4391 = vmatpush1.msra.mxu0 0.0
  %4392 = vmatprep.subr.mxu0 0.0
  %4393 = vmatpush1.msra.mxu0 0.0
  %4394 = vmatprep.subr.mxu0 0.0
  %4395 = vmatpush1.msra.mxu0 0.0
  %4396 = vmatprep.subr.mxu0 0.0
  %4397 = vmatpush1.msra.mxu0 0.0
  %4398 = vmatprep.subr.mxu0 0.0
  %4399 = vmatpush1.msra.mxu0 0.0
  %4400 = vmatprep.subr.mxu0 0.0
  %4401 = vmatpush1.msra.mxu0 0.0
  %4402 = vmatprep.subr.mxu0 0.0
  %4403 = vmatpush1.msra.mxu0 0.0
  %4404 = vmatprep.subr.mxu0 0.0
  %4405 = vmatpush1.msra.mxu0 0.0
  %4406 = vmatprep.mubr.f32.mxu0 0.0
  %4407 = vmatmul.mubr.f32.gmra.mrb[0].mxu0 %v3882
  %v4408 = vpop.f32.mrb[0].mxu0
  %v4409 = vadd.f32 0.0, %v4408
  %v4410 = vpop.f32.mrb[0].mxu0
  %v4411 = vadd.f32 0.0, %v4410
  %4412 = vdwg.mxu0
  %4413 = vmatprep.subr.mxu0 %v3914
  %4414 = vmatpush1.msra.mxu0 %v3912
  %4415 = vmatprep.subr.mxu0 0.0
  %4416 = vmatpush1.msra.mxu0 0.0
  %4417 = vmatprep.subr.mxu0 0.0
  %4418 = vmatpush1.msra.mxu0 0.0
  %4419 = vmatprep.subr.mxu0 0.0
  %4420 = vmatpush1.msra.mxu0 0.0
  %4421 = vmatprep.subr.mxu0 0.0
  %4422 = vmatpush1.msra.mxu0 0.0
  %4423 = vmatprep.subr.mxu0 0.0
  %4424 = vmatpush1.msra.mxu0 0.0
  %4425 = vmatprep.subr.mxu0 0.0
  %4426 = vmatpush1.msra.mxu0 0.0
  %4427 = vmatprep.subr.mxu0 0.0
  %4428 = vmatpush1.msra.mxu0 0.0
  %4429 = vmatprep.subr.mxu0 0.0
  %4430 = vmatpush1.msra.mxu0 0.0
  %4431 = vmatprep.subr.mxu0 0.0
  %4432 = vmatpush1.msra.mxu0 0.0
  %4433 = vmatprep.subr.mxu0 0.0
  %4434 = vmatpush1.msra.mxu0 0.0
  %4435 = vmatprep.subr.mxu0 0.0
  %4436 = vmatpush1.msra.mxu0 0.0
  %4437 = vmatprep.subr.mxu0 0.0
  %4438 = vmatpush1.msra.mxu0 0.0
  %4439 = vmatprep.subr.mxu0 0.0
  %4440 = vmatpush1.msra.mxu0 0.0
  %4441 = vmatprep.subr.mxu0 0.0
  %4442 = vmatpush1.msra.mxu0 0.0
  %4443 = vmatprep.subr.mxu0 0.0
  %4444 = vmatpush1.msra.mxu0 0.0
  %4445 = vmatprep.subr.mxu0 0.0
  %4446 = vmatpush1.msra.mxu0 0.0
  %4447 = vmatprep.subr.mxu0 0.0
  %4448 = vmatpush1.msra.mxu0 0.0
  %4449 = vmatprep.subr.mxu0 0.0
  %4450 = vmatpush1.msra.mxu0 0.0
  %4451 = vmatprep.subr.mxu0 0.0
  %4452 = vmatpush1.msra.mxu0 0.0
  %4453 = vmatprep.subr.mxu0 0.0
  %4454 = vmatpush1.msra.mxu0 0.0
  %4455 = vmatprep.subr.mxu0 0.0
  %4456 = vmatpush1.msra.mxu0 0.0
  %4457 = vmatprep.subr.mxu0 0.0
  %4458 = vmatpush1.msra.mxu0 0.0
  %4459 = vmatprep.subr.mxu0 0.0
  %4460 = vmatpush1.msra.mxu0 0.0
  %4461 = vmatprep.subr.mxu0 0.0
  %4462 = vmatpush1.msra.mxu0 0.0
  %4463 = vmatprep.subr.mxu0 0.0
  %4464 = vmatpush1.msra.mxu0 0.0
  %4465 = vmatprep.subr.mxu0 0.0
  %4466 = vmatpush1.msra.mxu0 0.0
  %4467 = vmatprep.subr.mxu0 0.0
  %4468 = vmatpush1.msra.mxu0 0.0
  %4469 = vmatprep.subr.mxu0 0.0
  %4470 = vmatpush1.msra.mxu0 0.0
  %4471 = vmatprep.subr.mxu0 0.0
  %4472 = vmatpush1.msra.mxu0 0.0
  %4473 = vmatprep.subr.mxu0 0.0
  %4474 = vmatpush1.msra.mxu0 0.0
  %4475 = vmatprep.subr.mxu0 0.0
  %4476 = vmatpush1.msra.mxu0 0.0
  %4477 = vmatprep.mubr.f32.mxu0 0.0
  %4478 = vmatmul.mubr.f32.gmra.mrb[0].mxu0 %v3882
  %v4479 = vpop.f32.mrb[0].mxu0
  %v4480 = vadd.f32 0.0, %v4479
  %v4481 = vpop.f32.mrb[0].mxu0
  %v4482 = vadd.f32 0.0, %v4481
  %4483 = vdwg.mxu0
  %v4484 = vadd.f32 %v3839, %v3983
  %v4485 = vadd.f32 %v3840, %v3985
  %v4486 = vadd.f32 %v3841, %v4054
  %v4487 = vadd.f32 %v3842, %v4056
  %v4488 = vadd.f32 %v3843, %v4125
  %v4489 = vadd.f32 %v3844, %v4127
  %v4490 = vadd.f32 %v3845, %v4196
  %v4491 = vadd.f32 %v3846, %v4198
  %v4492 = vadd.f32 %v3847, %v4267
  %v4493 = vadd.f32 %v3848, %v4269
  %v4494 = vadd.f32 %v3849, %v4338
  %v4495 = vadd.f32 %v3850, %v4340
  %v4496 = vadd.f32 %v3851, %v4409
  %v4497 = vadd.f32 %v3852, %v4411
  %v4498 = vadd.f32 %v3853, %v4480
  %v4499 = vadd.f32 %v3854, %v4482
  %v4500 = vld [vmem:[%s0 + $0x1c] sm:$0xff]
  %v4501 = vld [vmem:[%s0 + $0x24] sm:$0xff]
  %v4502 = vld [vmem:[%s0 + $0x2c] sm:$0xff]
  %v4503 = vld [vmem:[%s0 + $0x34] sm:$0xff]
  %v4504 = vld [vmem:[%s0 + $0x3c] sm:$0xff]
  %v4505 = vld [vmem:[%s0 + $0x44] sm:$0xff]
  %v4506 = vld [vmem:[%s0 + $0x4c] sm:$0xff]
  %v4507 = vld [vmem:[%s0 + $0x54] sm:$0xff]
  %s4508 = scalar_lea.vmem %s1, 56
  %v4509 = vld [vmem:[%s4508] sm:$0xff]
  %v4518 = vcombine.high %v4500, %v4500
  %v4519 = vcombine.high %v4501, %v4501
  %v4520 = vcombine.high %v4502, %v4502
  %v4521 = vcombine.high %v4503, %v4503
  %v4522 = vcombine.high %v4504, %v4504
  %v4523 = vcombine.high %v4505, %v4505
  %v4524 = vcombine.high %v4506, %v4506
  %v4525 = vcombine.high %v4507, %v4507
  %v4527 = vsel %vm51, %v4509, 0
  %v4529 = vsel %vm55, %v4500, 0
  %v4531 = vsel %vm55, %v4518, 0
  %v4533 = vsel %vm55, %v4501, 0
  %v4535 = vsel %vm55, %v4519, 0
  %v4537 = vsel %vm55, %v4502, 0
  %v4539 = vsel %vm55, %v4520, 0
  %v4541 = vsel %vm55, %v4503, 0
  %v4543 = vsel %vm55, %v4521, 0
  %v4545 = vsel %vm55, %v4504, 0
  %v4547 = vsel %vm55, %v4522, 0
  %v4549 = vsel %vm55, %v4505, 0
  %v4551 = vsel %vm55, %v4523, 0
  %v4553 = vsel %vm55, %v4506, 0
  %v4555 = vsel %vm55, %v4524, 0
  %v4557 = vsel %vm55, %v4507, 0
  %v4559 = vsel %vm55, %v4525, 0
  %4561 = vmatprep.subr.mxu0 %v4531
  %4562 = vmatpush1.msra.mxu0 %v4529
  %4563 = vmatprep.subr.mxu0 0.0
  %4564 = vmatpush1.msra.mxu0 0.0
  %4565 = vmatprep.subr.mxu0 0.0
  %4566 = vmatpush1.msra.mxu0 0.0
  %4567 = vmatprep.subr.mxu0 0.0
  %4568 = vmatpush1.msra.mxu0 0.0
  %4569 = vmatprep.subr.mxu0 0.0
  %4570 = vmatpush1.msra.mxu0 0.0
  %4571 = vmatprep.subr.mxu0 0.0
  %4572 = vmatpush1.msra.mxu0 0.0
  %4573 = vmatprep.subr.mxu0 0.0
  %4574 = vmatpush1.msra.mxu0 0.0
  %4575 = vmatprep.subr.mxu0 0.0
  %4576 = vmatpush1.msra.mxu0 0.0
  %4577 = vmatprep.subr.mxu0 0.0
  %4578 = vmatpush1.msra.mxu0 0.0
  %4579 = vmatprep.subr.mxu0 0.0
  %4580 = vmatpush1.msra.mxu0 0.0
  %4581 = vmatprep.subr.mxu0 0.0
  %4582 = vmatpush1.msra.mxu0 0.0
  %4583 = vmatprep.subr.mxu0 0.0
  %4584 = vmatpush1.msra.mxu0 0.0
  %4585 = vmatprep.subr.mxu0 0.0
  %4586 = vmatpush1.msra.mxu0 0.0
  %4587 = vmatprep.subr.mxu0 0.0
  %4588 = vmatpush1.msra.mxu0 0.0
  %4589 = vmatprep.subr.mxu0 0.0
  %4590 = vmatpush1.msra.mxu0 0.0
  %4591 = vmatprep.subr.mxu0 0.0
  %4592 = vmatpush1.msra.mxu0 0.0
  %4593 = vmatprep.subr.mxu0 0.0
  %4594 = vmatpush1.msra.mxu0 0.0
  %4595 = vmatprep.subr.mxu0 0.0
  %4596 = vmatpush1.msra.mxu0 0.0
  %4597 = vmatprep.subr.mxu0 0.0
  %4598 = vmatpush1.msra.mxu0 0.0
  %4599 = vmatprep.subr.mxu0 0.0
  %4600 = vmatpush1.msra.mxu0 0.0
  %4601 = vmatprep.subr.mxu0 0.0
  %4602 = vmatpush1.msra.mxu0 0.0
  %4603 = vmatprep.subr.mxu0 0.0
  %4604 = vmatpush1.msra.mxu0 0.0
  %4605 = vmatprep.subr.mxu0 0.0
  %4606 = vmatpush1.msra.mxu0 0.0
  %4607 = vmatprep.subr.mxu0 0.0
  %4608 = vmatpush1.msra.mxu0 0.0
  %4609 = vmatprep.subr.mxu0 0.0
  %4610 = vmatpush1.msra.mxu0 0.0
  %4611 = vmatprep.subr.mxu0 0.0
  %4612 = vmatpush1.msra.mxu0 0.0
  %4613 = vmatprep.subr.mxu0 0.0
  %4614 = vmatpush1.msra.mxu0 0.0
  %4615 = vmatprep.subr.mxu0 0.0
  %4616 = vmatpush1.msra.mxu0 0.0
  %4617 = vmatprep.subr.mxu0 0.0
  %4618 = vmatpush1.msra.mxu0 0.0
  %4619 = vmatprep.subr.mxu0 0.0
  %4620 = vmatpush1.msra.mxu0 0.0
  %4621 = vmatprep.subr.mxu0 0.0
  %4622 = vmatpush1.msra.mxu0 0.0
  %4623 = vmatprep.subr.mxu0 0.0
  %4624 = vmatpush1.msra.mxu0 0.0
  %4625 = vmatprep.mubr.f32.mxu0 0.0
  %4626 = vmatmul.mubr.f32.gmra.mrb[0].mxu0 %v4527
  %v4627 = vpop.f32.mrb[0].mxu0
  %v4628 = vadd.f32 0.0, %v4627
  %v4629 = vpop.f32.mrb[0].mxu0
  %v4630 = vadd.f32 0.0, %v4629
  %4631 = vdwg.mxu0
  %4632 = vmatprep.subr.mxu0 %v4535
  %4633 = vmatpush1.msra.mxu0 %v4533
  %4634 = vmatprep.subr.mxu0 0.0
  %4635 = vmatpush1.msra.mxu0 0.0
  %4636 = vmatprep.subr.mxu0 0.0
  %4637 = vmatpush1.msra.mxu0 0.0
  %4638 = vmatprep.subr.mxu0 0.0
  %4639 = vmatpush1.msra.mxu0 0.0
  %4640 = vmatprep.subr.mxu0 0.0
  %4641 = vmatpush1.msra.mxu0 0.0
  %4642 = vmatprep.subr.mxu0 0.0
  %4643 = vmatpush1.msra.mxu0 0.0
  %4644 = vmatprep.subr.mxu0 0.0
  %4645 = vmatpush1.msra.mxu0 0.0
  %4646 = vmatprep.subr.mxu0 0.0
  %4647 = vmatpush1.msra.mxu0 0.0
  %4648 = vmatprep.subr.mxu0 0.0
  %4649 = vmatpush1.msra.mxu0 0.0
  %4650 = vmatprep.subr.mxu0 0.0
  %4651 = vmatpush1.msra.mxu0 0.0
  %4652 = vmatprep.subr.mxu0 0.0
  %4653 = vmatpush1.msra.mxu0 0.0
  %4654 = vmatprep.subr.mxu0 0.0
  %4655 = vmatpush1.msra.mxu0 0.0
  %4656 = vmatprep.subr.mxu0 0.0
  %4657 = vmatpush1.msra.mxu0 0.0
  %4658 = vmatprep.subr.mxu0 0.0
  %4659 = vmatpush1.msra.mxu0 0.0
  %4660 = vmatprep.subr.mxu0 0.0
  %4661 = vmatpush1.msra.mxu0 0.0
  %4662 = vmatprep.subr.mxu0 0.0
  %4663 = vmatpush1.msra.mxu0 0.0
  %4664 = vmatprep.subr.mxu0 0.0
  %4665 = vmatpush1.msra.mxu0 0.0
  %4666 = vmatprep.subr.mxu0 0.0
  %4667 = vmatpush1.msra.mxu0 0.0
  %4668 = vmatprep.subr.mxu0 0.0
  %4669 = vmatpush1.msra.mxu0 0.0
  %4670 = vmatprep.subr.mxu0 0.0
  %4671 = vmatpush1.msra.mxu0 0.0
  %4672 = vmatprep.subr.mxu0 0.0
  %4673 = vmatpush1.msra.mxu0 0.0
  %4674 = vmatprep.subr.mxu0 0.0
  %4675 = vmatpush1.msra.mxu0 0.0
  %4676 = vmatprep.subr.mxu0 0.0
  %4677 = vmatpush1.msra.mxu0 0.0
  %4678 = vmatprep.subr.mxu0 0.0
  %4679 = vmatpush1.msra.mxu0 0.0
  %4680 = vmatprep.subr.mxu0 0.0
  %4681 = vmatpush1.msra.mxu0 0.0
  %4682 = vmatprep.subr.mxu0 0.0
  %4683 = vmatpush1.msra.mxu0 0.0
  %4684 = vmatprep.subr.mxu0 0.0
  %4685 = vmatpush1.msra.mxu0 0.0
  %4686 = vmatprep.subr.mxu0 0.0
  %4687 = vmatpush1.msra.mxu0 0.0
  %4688 = vmatprep.subr.mxu0 0.0
  %4689 = vmatpush1.msra.mxu0 0.0
  %4690 = vmatprep.subr.mxu0 0.0
  %4691 = vmatpush1.msra.mxu0 0.0
  %4692 = vmatprep.subr.mxu0 0.0
  %4693 = vmatpush1.msra.mxu0 0.0
  %4694 = vmatprep.subr.mxu0 0.0
  %4695 = vmatpush1.msra.mxu0 0.0
  %4696 = vmatprep.mubr.f32.mxu0 0.0
  %4697 = vmatmul.mubr.f32.gmra.mrb[0].mxu0 %v4527
  %v4698 = vpop.f32.mrb[0].mxu0
  %v4699 = vadd.f32 0.0, %v4698
  %v4700 = vpop.f32.mrb[0].mxu0
  %v4701 = vadd.f32 0.0, %v4700
  %4702 = vdwg.mxu0
  %4703 = vmatprep.subr.mxu0 %v4539
  %4704 = vmatpush1.msra.mxu0 %v4537
  %4705 = vmatprep.subr.mxu0 0.0
  %4706 = vmatpush1.msra.mxu0 0.0
  %4707 = vmatprep.subr.mxu0 0.0
  %4708 = vmatpush1.msra.mxu0 0.0
  %4709 = vmatprep.subr.mxu0 0.0
  %4710 = vmatpush1.msra.mxu0 0.0
  %4711 = vmatprep.subr.mxu0 0.0
  %4712 = vmatpush1.msra.mxu0 0.0
  %4713 = vmatprep.subr.mxu0 0.0
  %4714 = vmatpush1.msra.mxu0 0.0
  %4715 = vmatprep.subr.mxu0 0.0
  %4716 = vmatpush1.msra.mxu0 0.0
  %4717 = vmatprep.subr.mxu0 0.0
  %4718 = vmatpush1.msra.mxu0 0.0
  %4719 = vmatprep.subr.mxu0 0.0
  %4720 = vmatpush1.msra.mxu0 0.0
  %4721 = vmatprep.subr.mxu0 0.0
  %4722 = vmatpush1.msra.mxu0 0.0
  %4723 = vmatprep.subr.mxu0 0.0
  %4724 = vmatpush1.msra.mxu0 0.0
  %4725 = vmatprep.subr.mxu0 0.0
  %4726 = vmatpush1.msra.mxu0 0.0
  %4727 = vmatprep.subr.mxu0 0.0
  %4728 = vmatpush1.msra.mxu0 0.0
  %4729 = vmatprep.subr.mxu0 0.0
  %4730 = vmatpush1.msra.mxu0 0.0
  %4731 = vmatprep.subr.mxu0 0.0
  %4732 = vmatpush1.msra.mxu0 0.0
  %4733 = vmatprep.subr.mxu0 0.0
  %4734 = vmatpush1.msra.mxu0 0.0
  %4735 = vmatprep.subr.mxu0 0.0
  %4736 = vmatpush1.msra.mxu0 0.0
  %4737 = vmatprep.subr.mxu0 0.0
  %4738 = vmatpush1.msra.mxu0 0.0
  %4739 = vmatprep.subr.mxu0 0.0
  %4740 = vmatpush1.msra.mxu0 0.0
  %4741 = vmatprep.subr.mxu0 0.0
  %4742 = vmatpush1.msra.mxu0 0.0
  %4743 = vmatprep.subr.mxu0 0.0
  %4744 = vmatpush1.msra.mxu0 0.0
  %4745 = vmatprep.subr.mxu0 0.0
  %4746 = vmatpush1.msra.mxu0 0.0
  %4747 = vmatprep.subr.mxu0 0.0
  %4748 = vmatpush1.msra.mxu0 0.0
  %4749 = vmatprep.subr.mxu0 0.0
  %4750 = vmatpush1.msra.mxu0 0.0
  %4751 = vmatprep.subr.mxu0 0.0
  %4752 = vmatpush1.msra.mxu0 0.0
  %4753 = vmatprep.subr.mxu0 0.0
  %4754 = vmatpush1.msra.mxu0 0.0
  %4755 = vmatprep.subr.mxu0 0.0
  %4756 = vmatpush1.msra.mxu0 0.0
  %4757 = vmatprep.subr.mxu0 0.0
  %4758 = vmatpush1.msra.mxu0 0.0
  %4759 = vmatprep.subr.mxu0 0.0
  %4760 = vmatpush1.msra.mxu0 0.0
  %4761 = vmatprep.subr.mxu0 0.0
  %4762 = vmatpush1.msra.mxu0 0.0
  %4763 = vmatprep.subr.mxu0 0.0
  %4764 = vmatpush1.msra.mxu0 0.0
  %4765 = vmatprep.subr.mxu0 0.0
  %4766 = vmatpush1.msra.mxu0 0.0
  %4767 = vmatprep.mubr.f32.mxu0 0.0
  %4768 = vmatmul.mubr.f32.gmra.mrb[0].mxu0 %v4527
  %v4769 = vpop.f32.mrb[0].mxu0
  %v4770 = vadd.f32 0.0, %v4769
  %v4771 = vpop.f32.mrb[0].mxu0
  %v4772 = vadd.f32 0.0, %v4771
  %4773 = vdwg.mxu0
  %4774 = vmatprep.subr.mxu0 %v4543
  %4775 = vmatpush1.msra.mxu0 %v4541
  %4776 = vmatprep.subr.mxu0 0.0
  %4777 = vmatpush1.msra.mxu0 0.0
  %4778 = vmatprep.subr.mxu0 0.0
  %4779 = vmatpush1.msra.mxu0 0.0
  %4780 = vmatprep.subr.mxu0 0.0
  %4781 = vmatpush1.msra.mxu0 0.0
  %4782 = vmatprep.subr.mxu0 0.0
  %4783 = vmatpush1.msra.mxu0 0.0
  %4784 = vmatprep.subr.mxu0 0.0
  %4785 = vmatpush1.msra.mxu0 0.0
  %4786 = vmatprep.subr.mxu0 0.0
  %4787 = vmatpush1.msra.mxu0 0.0
  %4788 = vmatprep.subr.mxu0 0.0
  %4789 = vmatpush1.msra.mxu0 0.0
  %4790 = vmatprep.subr.mxu0 0.0
  %4791 = vmatpush1.msra.mxu0 0.0
  %4792 = vmatprep.subr.mxu0 0.0
  %4793 = vmatpush1.msra.mxu0 0.0
  %4794 = vmatprep.subr.mxu0 0.0
  %4795 = vmatpush1.msra.mxu0 0.0
  %4796 = vmatprep.subr.mxu0 0.0
  %4797 = vmatpush1.msra.mxu0 0.0
  %4798 = vmatprep.subr.mxu0 0.0
  %4799 = vmatpush1.msra.mxu0 0.0
  %4800 = vmatprep.subr.mxu0 0.0
  %4801 = vmatpush1.msra.mxu0 0.0
  %4802 = vmatprep.subr.mxu0 0.0
  %4803 = vmatpush1.msra.mxu0 0.0
  %4804 = vmatprep.subr.mxu0 0.0
  %4805 = vmatpush1.msra.mxu0 0.0
  %4806 = vmatprep.subr.mxu0 0.0
  %4807 = vmatpush1.msra.mxu0 0.0
  %4808 = vmatprep.subr.mxu0 0.0
  %4809 = vmatpush1.msra.mxu0 0.0
  %4810 = vmatprep.subr.mxu0 0.0
  %4811 = vmatpush1.msra.mxu0 0.0
  %4812 = vmatprep.subr.mxu0 0.0
  %4813 = vmatpush1.msra.mxu0 0.0
  %4814 = vmatprep.subr.mxu0 0.0
  %4815 = vmatpush1.msra.mxu0 0.0
  %4816 = vmatprep.subr.mxu0 0.0
  %4817 = vmatpush1.msra.mxu0 0.0
  %4818 = vmatprep.subr.mxu0 0.0
  %4819 = vmatpush1.msra.mxu0 0.0
  %4820 = vmatprep.subr.mxu0 0.0
  %4821 = vmatpush1.msra.mxu0 0.0
  %4822 = vmatprep.subr.mxu0 0.0
  %4823 = vmatpush1.msra.mxu0 0.0
  %4824 = vmatprep.subr.mxu0 0.0
  %4825 = vmatpush1.msra.mxu0 0.0
  %4826 = vmatprep.subr.mxu0 0.0
  %4827 = vmatpush1.msra.mxu0 0.0
  %4828 = vmatprep.subr.mxu0 0.0
  %4829 = vmatpush1.msra.mxu0 0.0
  %4830 = vmatprep.subr.mxu0 0.0
  %4831 = vmatpush1.msra.mxu0 0.0
  %4832 = vmatprep.subr.mxu0 0.0
  %4833 = vmatpush1.msra.mxu0 0.0
  %4834 = vmatprep.subr.mxu0 0.0
  %4835 = vmatpush1.msra.mxu0 0.0
  %4836 = vmatprep.subr.mxu0 0.0
  %4837 = vmatpush1.msra.mxu0 0.0
  %4838 = vmatprep.mubr.f32.mxu0 0.0
  %4839 = vmatmul.mubr.f32.gmra.mrb[0].mxu0 %v4527
  %v4840 = vpop.f32.mrb[0].mxu0
  %v4841 = vadd.f32 0.0, %v4840
  %v4842 = vpop.f32.mrb[0].mxu0
  %v4843 = vadd.f32 0.0, %v4842
  %4844 = vdwg.mxu0
  %4845 = vmatprep.subr.mxu0 %v4547
  %4846 = vmatpush1.msra.mxu0 %v4545
  %4847 = vmatprep.subr.mxu0 0.0
  %4848 = vmatpush1.msra.mxu0 0.0
  %4849 = vmatprep.subr.mxu0 0.0
  %4850 = vmatpush1.msra.mxu0 0.0
  %4851 = vmatprep.subr.mxu0 0.0
  %4852 = vmatpush1.msra.mxu0 0.0
  %4853 = vmatprep.subr.mxu0 0.0
  %4854 = vmatpush1.msra.mxu0 0.0
  %4855 = vmatprep.subr.mxu0 0.0
  %4856 = vmatpush1.msra.mxu0 0.0
  %4857 = vmatprep.subr.mxu0 0.0
  %4858 = vmatpush1.msra.mxu0 0.0
  %4859 = vmatprep.subr.mxu0 0.0
  %4860 = vmatpush1.msra.mxu0 0.0
  %4861 = vmatprep.subr.mxu0 0.0
  %4862 = vmatpush1.msra.mxu0 0.0
  %4863 = vmatprep.subr.mxu0 0.0
  %4864 = vmatpush1.msra.mxu0 0.0
  %4865 = vmatprep.subr.mxu0 0.0
  %4866 = vmatpush1.msra.mxu0 0.0
  %4867 = vmatprep.subr.mxu0 0.0
  %4868 = vmatpush1.msra.mxu0 0.0
  %4869 = vmatprep.subr.mxu0 0.0
  %4870 = vmatpush1.msra.mxu0 0.0
  %4871 = vmatprep.subr.mxu0 0.0
  %4872 = vmatpush1.msra.mxu0 0.0
  %4873 = vmatprep.subr.mxu0 0.0
  %4874 = vmatpush1.msra.mxu0 0.0
  %4875 = vmatprep.subr.mxu0 0.0
  %4876 = vmatpush1.msra.mxu0 0.0
  %4877 = vmatprep.subr.mxu0 0.0
  %4878 = vmatpush1.msra.mxu0 0.0
  %4879 = vmatprep.subr.mxu0 0.0
  %4880 = vmatpush1.msra.mxu0 0.0
  %4881 = vmatprep.subr.mxu0 0.0
  %4882 = vmatpush1.msra.mxu0 0.0
  %4883 = vmatprep.subr.mxu0 0.0
  %4884 = vmatpush1.msra.mxu0 0.0
  %4885 = vmatprep.subr.mxu0 0.0
  %4886 = vmatpush1.msra.mxu0 0.0
  %4887 = vmatprep.subr.mxu0 0.0
  %4888 = vmatpush1.msra.mxu0 0.0
  %4889 = vmatprep.subr.mxu0 0.0
  %4890 = vmatpush1.msra.mxu0 0.0
  %4891 = vmatprep.subr.mxu0 0.0
  %4892 = vmatpush1.msra.mxu0 0.0
  %4893 = vmatprep.subr.mxu0 0.0
  %4894 = vmatpush1.msra.mxu0 0.0
  %4895 = vmatprep.subr.mxu0 0.0
  %4896 = vmatpush1.msra.mxu0 0.0
  %4897 = vmatprep.subr.mxu0 0.0
  %4898 = vmatpush1.msra.mxu0 0.0
  %4899 = vmatprep.subr.mxu0 0.0
  %4900 = vmatpush1.msra.mxu0 0.0
  %4901 = vmatprep.subr.mxu0 0.0
  %4902 = vmatpush1.msra.mxu0 0.0
  %4903 = vmatprep.subr.mxu0 0.0
  %4904 = vmatpush1.msra.mxu0 0.0
  %4905 = vmatprep.subr.mxu0 0.0
  %4906 = vmatpush1.msra.mxu0 0.0
  %4907 = vmatprep.subr.mxu0 0.0
  %4908 = vmatpush1.msra.mxu0 0.0
  %4909 = vmatprep.mubr.f32.mxu0 0.0
  %4910 = vmatmul.mubr.f32.gmra.mrb[0].mxu0 %v4527
  %v4911 = vpop.f32.mrb[0].mxu0
  %v4912 = vadd.f32 0.0, %v4911
  %v4913 = vpop.f32.mrb[0].mxu0
  %v4914 = vadd.f32 0.0, %v4913
  %4915 = vdwg.mxu0
  %4916 = vmatprep.subr.mxu0 %v4551
  %4917 = vmatpush1.msra.mxu0 %v4549
  %4918 = vmatprep.subr.mxu0 0.0
  %4919 = vmatpush1.msra.mxu0 0.0
  %4920 = vmatprep.subr.mxu0 0.0
  %4921 = vmatpush1.msra.mxu0 0.0
  %4922 = vmatprep.subr.mxu0 0.0
  %4923 = vmatpush1.msra.mxu0 0.0
  %4924 = vmatprep.subr.mxu0 0.0
  %4925 = vmatpush1.msra.mxu0 0.0
  %4926 = vmatprep.subr.mxu0 0.0
  %4927 = vmatpush1.msra.mxu0 0.0
  %4928 = vmatprep.subr.mxu0 0.0
  %4929 = vmatpush1.msra.mxu0 0.0
  %4930 = vmatprep.subr.mxu0 0.0
  %4931 = vmatpush1.msra.mxu0 0.0
  %4932 = vmatprep.subr.mxu0 0.0
  %4933 = vmatpush1.msra.mxu0 0.0
  %4934 = vmatprep.subr.mxu0 0.0
  %4935 = vmatpush1.msra.mxu0 0.0
  %4936 = vmatprep.subr.mxu0 0.0
  %4937 = vmatpush1.msra.mxu0 0.0
  %4938 = vmatprep.subr.mxu0 0.0
  %4939 = vmatpush1.msra.mxu0 0.0
  %4940 = vmatprep.subr.mxu0 0.0
  %4941 = vmatpush1.msra.mxu0 0.0
  %4942 = vmatprep.subr.mxu0 0.0
  %4943 = vmatpush1.msra.mxu0 0.0
  %4944 = vmatprep.subr.mxu0 0.0
  %4945 = vmatpush1.msra.mxu0 0.0
  %4946 = vmatprep.subr.mxu0 0.0
  %4947 = vmatpush1.msra.mxu0 0.0
  %4948 = vmatprep.subr.mxu0 0.0
  %4949 = vmatpush1.msra.mxu0 0.0
  %4950 = vmatprep.subr.mxu0 0.0
  %4951 = vmatpush1.msra.mxu0 0.0
  %4952 = vmatprep.subr.mxu0 0.0
  %4953 = vmatpush1.msra.mxu0 0.0
  %4954 = vmatprep.subr.mxu0 0.0
  %4955 = vmatpush1.msra.mxu0 0.0
  %4956 = vmatprep.subr.mxu0 0.0
  %4957 = vmatpush1.msra.mxu0 0.0
  %4958 = vmatprep.subr.mxu0 0.0
  %4959 = vmatpush1.msra.mxu0 0.0
  %4960 = vmatprep.subr.mxu0 0.0
  %4961 = vmatpush1.msra.mxu0 0.0
  %4962 = vmatprep.subr.mxu0 0.0
  %4963 = vmatpush1.msra.mxu0 0.0
  %4964 = vmatprep.subr.mxu0 0.0
  %4965 = vmatpush1.msra.mxu0 0.0
  %4966 = vmatprep.subr.mxu0 0.0
  %4967 = vmatpush1.msra.mxu0 0.0
  %4968 = vmatprep.subr.mxu0 0.0
  %4969 = vmatpush1.msra.mxu0 0.0
  %4970 = vmatprep.subr.mxu0 0.0
  %4971 = vmatpush1.msra.mxu0 0.0
  %4972 = vmatprep.subr.mxu0 0.0
  %4973 = vmatpush1.msra.mxu0 0.0
  %4974 = vmatprep.subr.mxu0 0.0
  %4975 = vmatpush1.msra.mxu0 0.0
  %4976 = vmatprep.subr.mxu0 0.0
  %4977 = vmatpush1.msra.mxu0 0.0
  %4978 = vmatprep.subr.mxu0 0.0
  %4979 = vmatpush1.msra.mxu0 0.0
  %4980 = vmatprep.mubr.f32.mxu0 0.0
  %4981 = vmatmul.mubr.f32.gmra.mrb[0].mxu0 %v4527
  %v4982 = vpop.f32.mrb[0].mxu0
  %v4983 = vadd.f32 0.0, %v4982
  %v4984 = vpop.f32.mrb[0].mxu0
  %v4985 = vadd.f32 0.0, %v4984
  %4986 = vdwg.mxu0
  %4987 = vmatprep.subr.mxu0 %v4555
  %4988 = vmatpush1.msra.mxu0 %v4553
  %4989 = vmatprep.subr.mxu0 0.0
  %4990 = vmatpush1.msra.mxu0 0.0
  %4991 = vmatprep.subr.mxu0 0.0
  %4992 = vmatpush1.msra.mxu0 0.0
  %4993 = vmatprep.subr.mxu0 0.0
  %4994 = vmatpush1.msra.mxu0 0.0
  %4995 = vmatprep.subr.mxu0 0.0
  %4996 = vmatpush1.msra.mxu0 0.0
  %4997 = vmatprep.subr.mxu0 0.0
  %4998 = vmatpush1.msra.mxu0 0.0
  %4999 = vmatprep.subr.mxu0 0.0
  %5000 = vmatpush1.msra.mxu0 0.0
  %5001 = vmatprep.subr.mxu0 0.0
  %5002 = vmatpush1.msra.mxu0 0.0
  %5003 = vmatprep.subr.mxu0 0.0
  %5004 = vmatpush1.msra.mxu0 0.0
  %5005 = vmatprep.subr.mxu0 0.0
  %5006 = vmatpush1.msra.mxu0 0.0
  %5007 = vmatprep.subr.mxu0 0.0
  %5008 = vmatpush1.msra.mxu0 0.0
  %5009 = vmatprep.subr.mxu0 0.0
  %5010 = vmatpush1.msra.mxu0 0.0
  %5011 = vmatprep.subr.mxu0 0.0
  %5012 = vmatpush1.msra.mxu0 0.0
  %5013 = vmatprep.subr.mxu0 0.0
  %5014 = vmatpush1.msra.mxu0 0.0
  %5015 = vmatprep.subr.mxu0 0.0
  %5016 = vmatpush1.msra.mxu0 0.0
  %5017 = vmatprep.subr.mxu0 0.0
  %5018 = vmatpush1.msra.mxu0 0.0
  %5019 = vmatprep.subr.mxu0 0.0
  %5020 = vmatpush1.msra.mxu0 0.0
  %5021 = vmatprep.subr.mxu0 0.0
  %5022 = vmatpush1.msra.mxu0 0.0
  %5023 = vmatprep.subr.mxu0 0.0
  %5024 = vmatpush1.msra.mxu0 0.0
  %5025 = vmatprep.subr.mxu0 0.0
  %5026 = vmatpush1.msra.mxu0 0.0
  %5027 = vmatprep.subr.mxu0 0.0
  %5028 = vmatpush1.msra.mxu0 0.0
  %5029 = vmatprep.subr.mxu0 0.0
  %5030 = vmatpush1.msra.mxu0 0.0
  %5031 = vmatprep.subr.mxu0 0.0
  %5032 = vmatpush1.msra.mxu0 0.0
  %5033 = vmatprep.subr.mxu0 0.0
  %5034 = vmatpush1.msra.mxu0 0.0
  %5035 = vmatprep.subr.mxu0 0.0
  %5036 = vmatpush1.msra.mxu0 0.0
  %5037 = vmatprep.subr.mxu0 0.0
  %5038 = vmatpush1.msra.mxu0 0.0
  %5039 = vmatprep.subr.mxu0 0.0
  %5040 = vmatpush1.msra.mxu0 0.0
  %5041 = vmatprep.subr.mxu0 0.0
  %5042 = vmatpush1.msra.mxu0 0.0
  %5043 = vmatprep.subr.mxu0 0.0
  %5044 = vmatpush1.msra.mxu0 0.0
  %5045 = vmatprep.subr.mxu0 0.0
  %5046 = vmatpush1.msra.mxu0 0.0
  %5047 = vmatprep.subr.mxu0 0.0
  %5048 = vmatpush1.msra.mxu0 0.0
  %5049 = vmatprep.subr.mxu0 0.0
  %5050 = vmatpush1.msra.mxu0 0.0
  %5051 = vmatprep.mubr.f32.mxu0 0.0
  %5052 = vmatmul.mubr.f32.gmra.mrb[0].mxu0 %v4527
  %v5053 = vpop.f32.mrb[0].mxu0
  %v5054 = vadd.f32 0.0, %v5053
  %v5055 = vpop.f32.mrb[0].mxu0
  %v5056 = vadd.f32 0.0, %v5055
  %5057 = vdwg.mxu0
  %5058 = vmatprep.subr.mxu0 %v4559
  %5059 = vmatpush1.msra.mxu0 %v4557
  %5060 = vmatprep.subr.mxu0 0.0
  %5061 = vmatpush1.msra.mxu0 0.0
  %5062 = vmatprep.subr.mxu0 0.0
  %5063 = vmatpush1.msra.mxu0 0.0
  %5064 = vmatprep.subr.mxu0 0.0
  %5065 = vmatpush1.msra.mxu0 0.0
  %5066 = vmatprep.subr.mxu0 0.0
  %5067 = vmatpush1.msra.mxu0 0.0
  %5068 = vmatprep.subr.mxu0 0.0
  %5069 = vmatpush1.msra.mxu0 0.0
  %5070 = vmatprep.subr.mxu0 0.0
  %5071 = vmatpush1.msra.mxu0 0.0
  %5072 = vmatprep.subr.mxu0 0.0
  %5073 = vmatpush1.msra.mxu0 0.0
  %5074 = vmatprep.subr.mxu0 0.0
  %5075 = vmatpush1.msra.mxu0 0.0
  %5076 = vmatprep.subr.mxu0 0.0
  %5077 = vmatpush1.msra.mxu0 0.0
  %5078 = vmatprep.subr.mxu0 0.0
  %5079 = vmatpush1.msra.mxu0 0.0
  %5080 = vmatprep.subr.mxu0 0.0
  %5081 = vmatpush1.msra.mxu0 0.0
  %5082 = vmatprep.subr.mxu0 0.0
  %5083 = vmatpush1.msra.mxu0 0.0
  %5084 = vmatprep.subr.mxu0 0.0
  %5085 = vmatpush1.msra.mxu0 0.0
  %5086 = vmatprep.subr.mxu0 0.0
  %5087 = vmatpush1.msra.mxu0 0.0
  %5088 = vmatprep.subr.mxu0 0.0
  %5089 = vmatpush1.msra.mxu0 0.0
  %5090 = vmatprep.subr.mxu0 0.0
  %5091 = vmatpush1.msra.mxu0 0.0
  %5092 = vmatprep.subr.mxu0 0.0
  %5093 = vmatpush1.msra.mxu0 0.0
  %5094 = vmatprep.subr.mxu0 0.0
  %5095 = vmatpush1.msra.mxu0 0.0
  %5096 = vmatprep.subr.mxu0 0.0
  %5097 = vmatpush1.msra.mxu0 0.0
  %5098 = vmatprep.subr.mxu0 0.0
  %5099 = vmatpush1.msra.mxu0 0.0
  %5100 = vmatprep.subr.mxu0 0.0
  %5101 = vmatpush1.msra.mxu0 0.0
  %5102 = vmatprep.subr.mxu0 0.0
  %5103 = vmatpush1.msra.mxu0 0.0
  %5104 = vmatprep.subr.mxu0 0.0
  %5105 = vmatpush1.msra.mxu0 0.0
  %5106 = vmatprep.subr.mxu0 0.0
  %5107 = vmatpush1.msra.mxu0 0.0
  %5108 = vmatprep.subr.mxu0 0.0
  %5109 = vmatpush1.msra.mxu0 0.0
  %5110 = vmatprep.subr.mxu0 0.0
  %5111 = vmatpush1.msra.mxu0 0.0
  %5112 = vmatprep.subr.mxu0 0.0
  %5113 = vmatpush1.msra.mxu0 0.0
  %5114 = vmatprep.subr.mxu0 0.0
  %5115 = vmatpush1.msra.mxu0 0.0
  %5116 = vmatprep.subr.mxu0 0.0
  %5117 = vmatpush1.msra.mxu0 0.0
  %5118 = vmatprep.subr.mxu0 0.0
  %5119 = vmatpush1.msra.mxu0 0.0
  %5120 = vmatprep.subr.mxu0 0.0
  %5121 = vmatpush1.msra.mxu0 0.0
  %5122 = vmatprep.mubr.f32.mxu0 0.0
  %5123 = vmatmul.mubr.f32.gmra.mrb[0].mxu0 %v4527
  %v5124 = vpop.f32.mrb[0].mxu0
  %v5125 = vadd.f32 0.0, %v5124
  %v5126 = vpop.f32.mrb[0].mxu0
  %v5127 = vadd.f32 0.0, %v5126
  %5128 = vdwg.mxu0
  %v5129 = vadd.f32 %v4484, %v4628
  %v5130 = vadd.f32 %v4485, %v4630
  %v5131 = vadd.f32 %v4486, %v4699
  %v5132 = vadd.f32 %v4487, %v4701
  %v5133 = vadd.f32 %v4488, %v4770
  %v5134 = vadd.f32 %v4489, %v4772
  %v5135 = vadd.f32 %v4490, %v4841
  %v5136 = vadd.f32 %v4491, %v4843
  %v5137 = vadd.f32 %v4492, %v4912
  %v5138 = vadd.f32 %v4493, %v4914
  %v5139 = vadd.f32 %v4494, %v4983
  %v5140 = vadd.f32 %v4495, %v4985
  %v5141 = vadd.f32 %v4496, %v5054
  %v5142 = vadd.f32 %v4497, %v5056
  %v5143 = vadd.f32 %v4498, %v5125
  %v5144 = vadd.f32 %v4499, %v5127
  %v5145 = vld [vmem:[%s0 + $0x20] sm:$0xff]
  %v5146 = vld [vmem:[%s0 + $0x28] sm:$0xff]
  %v5147 = vld [vmem:[%s0 + $0x30] sm:$0xff]
  %v5148 = vld [vmem:[%s0 + $0x38] sm:$0xff]
  %v5149 = vld [vmem:[%s0 + $0x40] sm:$0xff]
  %v5150 = vld [vmem:[%s0 + $0x48] sm:$0xff]
  %v5151 = vld [vmem:[%s0 + $0x50] sm:$0xff]
  %v5152 = vld [vmem:[%s0 + $0x58] sm:$0xff]
  %s5153 = scalar_lea.vmem %s1, 64
  %v5154 = vld [vmem:[%s5153] sm:$0xff]
  %v5163 = vcombine.high %v5145, %v5145
  %v5164 = vcombine.high %v5146, %v5146
  %v5165 = vcombine.high %v5147, %v5147
  %v5166 = vcombine.high %v5148, %v5148
  %v5167 = vcombine.high %v5149, %v5149
  %v5168 = vcombine.high %v5150, %v5150
  %v5169 = vcombine.high %v5151, %v5151
  %v5170 = vcombine.high %v5152, %v5152
  %v5172 = vsel %vm51, %v5154, 0
  %v5174 = vsel %vm55, %v5145, 0
  %v5176 = vsel %vm55, %v5163, 0
  %v5178 = vsel %vm55, %v5146, 0
  %v5180 = vsel %vm55, %v5164, 0
  %v5182 = vsel %vm55, %v5147, 0
  %v5184 = vsel %vm55, %v5165, 0
  %v5186 = vsel %vm55, %v5148, 0
  %v5188 = vsel %vm55, %v5166, 0
  %v5190 = vsel %vm55, %v5149, 0
  %v5192 = vsel %vm55, %v5167, 0
  %v5194 = vsel %vm55, %v5150, 0
  %v5196 = vsel %vm55, %v5168, 0
  %v5198 = vsel %vm55, %v5151, 0
  %v5200 = vsel %vm55, %v5169, 0
  %v5202 = vsel %vm55, %v5152, 0
  %v5204 = vsel %vm55, %v5170, 0
  %5206 = vmatprep.subr.mxu0 %v5176
  %5207 = vmatpush1.msra.mxu0 %v5174
  %5208 = vmatprep.subr.mxu0 0.0
  %5209 = vmatpush1.msra.mxu0 0.0
  %5210 = vmatprep.subr.mxu0 0.0
  %5211 = vmatpush1.msra.mxu0 0.0
  %5212 = vmatprep.subr.mxu0 0.0
  %5213 = vmatpush1.msra.mxu0 0.0
  %5214 = vmatprep.subr.mxu0 0.0
  %5215 = vmatpush1.msra.mxu0 0.0
  %5216 = vmatprep.subr.mxu0 0.0
  %5217 = vmatpush1.msra.mxu0 0.0
  %5218 = vmatprep.subr.mxu0 0.0
  %5219 = vmatpush1.msra.mxu0 0.0
  %5220 = vmatprep.subr.mxu0 0.0
  %5221 = vmatpush1.msra.mxu0 0.0
  %5222 = vmatprep.subr.mxu0 0.0
  %5223 = vmatpush1.msra.mxu0 0.0
  %5224 = vmatprep.subr.mxu0 0.0
  %5225 = vmatpush1.msra.mxu0 0.0
  %5226 = vmatprep.subr.mxu0 0.0
  %5227 = vmatpush1.msra.mxu0 0.0
  %5228 = vmatprep.subr.mxu0 0.0
  %5229 = vmatpush1.msra.mxu0 0.0
  %5230 = vmatprep.subr.mxu0 0.0
  %5231 = vmatpush1.msra.mxu0 0.0
  %5232 = vmatprep.subr.mxu0 0.0
  %5233 = vmatpush1.msra.mxu0 0.0
  %5234 = vmatprep.subr.mxu0 0.0
  %5235 = vmatpush1.msra.mxu0 0.0
  %5236 = vmatprep.subr.mxu0 0.0
  %5237 = vmatpush1.msra.mxu0 0.0
  %5238 = vmatprep.subr.mxu0 0.0
  %5239 = vmatpush1.msra.mxu0 0.0
  %5240 = vmatprep.subr.mxu0 0.0
  %5241 = vmatpush1.msra.mxu0 0.0
  %5242 = vmatprep.subr.mxu0 0.0
  %5243 = vmatpush1.msra.mxu0 0.0
  %5244 = vmatprep.subr.mxu0 0.0
  %5245 = vmatpush1.msra.mxu0 0.0
  %5246 = vmatprep.subr.mxu0 0.0
  %5247 = vmatpush1.msra.mxu0 0.0
  %5248 = vmatprep.subr.mxu0 0.0
  %5249 = vmatpush1.msra.mxu0 0.0
  %5250 = vmatprep.subr.mxu0 0.0
  %5251 = vmatpush1.msra.mxu0 0.0
  %5252 = vmatprep.subr.mxu0 0.0
  %5253 = vmatpush1.msra.mxu0 0.0
  %5254 = vmatprep.subr.mxu0 0.0
  %5255 = vmatpush1.msra.mxu0 0.0
  %5256 = vmatprep.subr.mxu0 0.0
  %5257 = vmatpush1.msra.mxu0 0.0
  %5258 = vmatprep.subr.mxu0 0.0
  %5259 = vmatpush1.msra.mxu0 0.0
  %5260 = vmatprep.subr.mxu0 0.0
  %5261 = vmatpush1.msra.mxu0 0.0
  %5262 = vmatprep.subr.mxu0 0.0
  %5263 = vmatpush1.msra.mxu0 0.0
  %5264 = vmatprep.subr.mxu0 0.0
  %5265 = vmatpush1.msra.mxu0 0.0
  %5266 = vmatprep.subr.mxu0 0.0
  %5267 = vmatpush1.msra.mxu0 0.0
  %5268 = vmatprep.subr.mxu0 0.0
  %5269 = vmatpush1.msra.mxu0 0.0
  %5270 = vmatprep.mubr.f32.mxu0 0.0
  %5271 = vmatmul.mubr.f32.gmra.mrb[0].mxu0 %v5172
  %v5272 = vpop.f32.mrb[0].mxu0
  %v5273 = vadd.f32 0.0, %v5272
  %v5274 = vpop.f32.mrb[0].mxu0
  %v5275 = vadd.f32 0.0, %v5274
  %5276 = vdwg.mxu0
  %5277 = vmatprep.subr.mxu0 %v5180
  %5278 = vmatpush1.msra.mxu0 %v5178
  %5279 = vmatprep.subr.mxu0 0.0
  %5280 = vmatpush1.msra.mxu0 0.0
  %5281 = vmatprep.subr.mxu0 0.0
  %5282 = vmatpush1.msra.mxu0 0.0
  %5283 = vmatprep.subr.mxu0 0.0
  %5284 = vmatpush1.msra.mxu0 0.0
  %5285 = vmatprep.subr.mxu0 0.0
  %5286 = vmatpush1.msra.mxu0 0.0
  %5287 = vmatprep.subr.mxu0 0.0
  %5288 = vmatpush1.msra.mxu0 0.0
  %5289 = vmatprep.subr.mxu0 0.0
  %5290 = vmatpush1.msra.mxu0 0.0
  %5291 = vmatprep.subr.mxu0 0.0
  %5292 = vmatpush1.msra.mxu0 0.0
  %5293 = vmatprep.subr.mxu0 0.0
  %5294 = vmatpush1.msra.mxu0 0.0
  %5295 = vmatprep.subr.mxu0 0.0
  %5296 = vmatpush1.msra.mxu0 0.0
  %5297 = vmatprep.subr.mxu0 0.0
  %5298 = vmatpush1.msra.mxu0 0.0
  %5299 = vmatprep.subr.mxu0 0.0
  %5300 = vmatpush1.msra.mxu0 0.0
  %5301 = vmatprep.subr.mxu0 0.0
  %5302 = vmatpush1.msra.mxu0 0.0
  %5303 = vmatprep.subr.mxu0 0.0
  %5304 = vmatpush1.msra.mxu0 0.0
  %5305 = vmatprep.subr.mxu0 0.0
  %5306 = vmatpush1.msra.mxu0 0.0
  %5307 = vmatprep.subr.mxu0 0.0
  %5308 = vmatpush1.msra.mxu0 0.0
  %5309 = vmatprep.subr.mxu0 0.0
  %5310 = vmatpush1.msra.mxu0 0.0
  %5311 = vmatprep.subr.mxu0 0.0
  %5312 = vmatpush1.msra.mxu0 0.0
  %5313 = vmatprep.subr.mxu0 0.0
  %5314 = vmatpush1.msra.mxu0 0.0
  %5315 = vmatprep.subr.mxu0 0.0
  %5316 = vmatpush1.msra.mxu0 0.0
  %5317 = vmatprep.subr.mxu0 0.0
  %5318 = vmatpush1.msra.mxu0 0.0
  %5319 = vmatprep.subr.mxu0 0.0
  %5320 = vmatpush1.msra.mxu0 0.0
  %5321 = vmatprep.subr.mxu0 0.0
  %5322 = vmatpush1.msra.mxu0 0.0
  %5323 = vmatprep.subr.mxu0 0.0
  %5324 = vmatpush1.msra.mxu0 0.0
  %5325 = vmatprep.subr.mxu0 0.0
  %5326 = vmatpush1.msra.mxu0 0.0
  %5327 = vmatprep.subr.mxu0 0.0
  %5328 = vmatpush1.msra.mxu0 0.0
  %5329 = vmatprep.subr.mxu0 0.0
  %5330 = vmatpush1.msra.mxu0 0.0
  %5331 = vmatprep.subr.mxu0 0.0
  %5332 = vmatpush1.msra.mxu0 0.0
  %5333 = vmatprep.subr.mxu0 0.0
  %5334 = vmatpush1.msra.mxu0 0.0
  %5335 = vmatprep.subr.mxu0 0.0
  %5336 = vmatpush1.msra.mxu0 0.0
  %5337 = vmatprep.subr.mxu0 0.0
  %5338 = vmatpush1.msra.mxu0 0.0
  %5339 = vmatprep.subr.mxu0 0.0
  %5340 = vmatpush1.msra.mxu0 0.0
  %5341 = vmatprep.mubr.f32.mxu0 0.0
  %5342 = vmatmul.mubr.f32.gmra.mrb[0].mxu0 %v5172
  %v5343 = vpop.f32.mrb[0].mxu0
  %v5344 = vadd.f32 0.0, %v5343
  %v5345 = vpop.f32.mrb[0].mxu0
  %v5346 = vadd.f32 0.0, %v5345
  %5347 = vdwg.mxu0
  %5348 = vmatprep.subr.mxu0 %v5184
  %5349 = vmatpush1.msra.mxu0 %v5182
  %5350 = vmatprep.subr.mxu0 0.0
  %5351 = vmatpush1.msra.mxu0 0.0
  %5352 = vmatprep.subr.mxu0 0.0
  %5353 = vmatpush1.msra.mxu0 0.0
  %5354 = vmatprep.subr.mxu0 0.0
  %5355 = vmatpush1.msra.mxu0 0.0
  %5356 = vmatprep.subr.mxu0 0.0
  %5357 = vmatpush1.msra.mxu0 0.0
  %5358 = vmatprep.subr.mxu0 0.0
  %5359 = vmatpush1.msra.mxu0 0.0
  %5360 = vmatprep.subr.mxu0 0.0
  %5361 = vmatpush1.msra.mxu0 0.0
  %5362 = vmatprep.subr.mxu0 0.0
  %5363 = vmatpush1.msra.mxu0 0.0
  %5364 = vmatprep.subr.mxu0 0.0
  %5365 = vmatpush1.msra.mxu0 0.0
  %5366 = vmatprep.subr.mxu0 0.0
  %5367 = vmatpush1.msra.mxu0 0.0
  %5368 = vmatprep.subr.mxu0 0.0
  %5369 = vmatpush1.msra.mxu0 0.0
  %5370 = vmatprep.subr.mxu0 0.0
  %5371 = vmatpush1.msra.mxu0 0.0
  %5372 = vmatprep.subr.mxu0 0.0
  %5373 = vmatpush1.msra.mxu0 0.0
  %5374 = vmatprep.subr.mxu0 0.0
  %5375 = vmatpush1.msra.mxu0 0.0
  %5376 = vmatprep.subr.mxu0 0.0
  %5377 = vmatpush1.msra.mxu0 0.0
  %5378 = vmatprep.subr.mxu0 0.0
  %5379 = vmatpush1.msra.mxu0 0.0
  %5380 = vmatprep.subr.mxu0 0.0
  %5381 = vmatpush1.msra.mxu0 0.0
  %5382 = vmatprep.subr.mxu0 0.0
  %5383 = vmatpush1.msra.mxu0 0.0
  %5384 = vmatprep.subr.mxu0 0.0
  %5385 = vmatpush1.msra.mxu0 0.0
  %5386 = vmatprep.subr.mxu0 0.0
  %5387 = vmatpush1.msra.mxu0 0.0
  %5388 = vmatprep.subr.mxu0 0.0
  %5389 = vmatpush1.msra.mxu0 0.0
  %5390 = vmatprep.subr.mxu0 0.0
  %5391 = vmatpush1.msra.mxu0 0.0
  %5392 = vmatprep.subr.mxu0 0.0
  %5393 = vmatpush1.msra.mxu0 0.0
  %5394 = vmatprep.subr.mxu0 0.0
  %5395 = vmatpush1.msra.mxu0 0.0
  %5396 = vmatprep.subr.mxu0 0.0
  %5397 = vmatpush1.msra.mxu0 0.0
  %5398 = vmatprep.subr.mxu0 0.0
  %5399 = vmatpush1.msra.mxu0 0.0
  %5400 = vmatprep.subr.mxu0 0.0
  %5401 = vmatpush1.msra.mxu0 0.0
  %5402 = vmatprep.subr.mxu0 0.0
  %5403 = vmatpush1.msra.mxu0 0.0
  %5404 = vmatprep.subr.mxu0 0.0
  %5405 = vmatpush1.msra.mxu0 0.0
  %5406 = vmatprep.subr.mxu0 0.0
  %5407 = vmatpush1.msra.mxu0 0.0
  %5408 = vmatprep.subr.mxu0 0.0
  %5409 = vmatpush1.msra.mxu0 0.0
  %5410 = vmatprep.subr.mxu0 0.0
  %5411 = vmatpush1.msra.mxu0 0.0
  %5412 = vmatprep.mubr.f32.mxu0 0.0
  %5413 = vmatmul.mubr.f32.gmra.mrb[0].mxu0 %v5172
  %v5414 = vpop.f32.mrb[0].mxu0
  %v5415 = vadd.f32 0.0, %v5414
  %v5416 = vpop.f32.mrb[0].mxu0
  %v5417 = vadd.f32 0.0, %v5416
  %5418 = vdwg.mxu0
  %5419 = vmatprep.subr.mxu0 %v5188
  %5420 = vmatpush1.msra.mxu0 %v5186
  %5421 = vmatprep.subr.mxu0 0.0
  %5422 = vmatpush1.msra.mxu0 0.0
  %5423 = vmatprep.subr.mxu0 0.0
  %5424 = vmatpush1.msra.mxu0 0.0
  %5425 = vmatprep.subr.mxu0 0.0
  %5426 = vmatpush1.msra.mxu0 0.0
  %5427 = vmatprep.subr.mxu0 0.0
  %5428 = vmatpush1.msra.mxu0 0.0
  %5429 = vmatprep.subr.mxu0 0.0
  %5430 = vmatpush1.msra.mxu0 0.0
  %5431 = vmatprep.subr.mxu0 0.0
  %5432 = vmatpush1.msra.mxu0 0.0
  %5433 = vmatprep.subr.mxu0 0.0
  %5434 = vmatpush1.msra.mxu0 0.0
  %5435 = vmatprep.subr.mxu0 0.0
  %5436 = vmatpush1.msra.mxu0 0.0
  %5437 = vmatprep.subr.mxu0 0.0
  %5438 = vmatpush1.msra.mxu0 0.0
  %5439 = vmatprep.subr.mxu0 0.0
  %5440 = vmatpush1.msra.mxu0 0.0
  %5441 = vmatprep.subr.mxu0 0.0
  %5442 = vmatpush1.msra.mxu0 0.0
  %5443 = vmatprep.subr.mxu0 0.0
  %5444 = vmatpush1.msra.mxu0 0.0
  %5445 = vmatprep.subr.mxu0 0.0
  %5446 = vmatpush1.msra.mxu0 0.0
  %5447 = vmatprep.subr.mxu0 0.0
  %5448 = vmatpush1.msra.mxu0 0.0
  %5449 = vmatprep.subr.mxu0 0.0
  %5450 = vmatpush1.msra.mxu0 0.0
  %5451 = vmatprep.subr.mxu0 0.0
  %5452 = vmatpush1.msra.mxu0 0.0
  %5453 = vmatprep.subr.mxu0 0.0
  %5454 = vmatpush1.msra.mxu0 0.0
  %5455 = vmatprep.subr.mxu0 0.0
  %5456 = vmatpush1.msra.mxu0 0.0
  %5457 = vmatprep.subr.mxu0 0.0
  %5458 = vmatpush1.msra.mxu0 0.0
  %5459 = vmatprep.subr.mxu0 0.0
  %5460 = vmatpush1.msra.mxu0 0.0
  %5461 = vmatprep.subr.mxu0 0.0
  %5462 = vmatpush1.msra.mxu0 0.0
  %5463 = vmatprep.subr.mxu0 0.0
  %5464 = vmatpush1.msra.mxu0 0.0
  %5465 = vmatprep.subr.mxu0 0.0
  %5466 = vmatpush1.msra.mxu0 0.0
  %5467 = vmatprep.subr.mxu0 0.0
  %5468 = vmatpush1.msra.mxu0 0.0
  %5469 = vmatprep.subr.mxu0 0.0
  %5470 = vmatpush1.msra.mxu0 0.0
  %5471 = vmatprep.subr.mxu0 0.0
  %5472 = vmatpush1.msra.mxu0 0.0
  %5473 = vmatprep.subr.mxu0 0.0
  %5474 = vmatpush1.msra.mxu0 0.0
  %5475 = vmatprep.subr.mxu0 0.0
  %5476 = vmatpush1.msra.mxu0 0.0
  %5477 = vmatprep.subr.mxu0 0.0
  %5478 = vmatpush1.msra.mxu0 0.0
  %5479 = vmatprep.subr.mxu0 0.0
  %5480 = vmatpush1.msra.mxu0 0.0
  %5481 = vmatprep.subr.mxu0 0.0
  %5482 = vmatpush1.msra.mxu0 0.0
  %5483 = vmatprep.mubr.f32.mxu0 0.0
  %5484 = vmatmul.mubr.f32.gmra.mrb[0].mxu0 %v5172
  %v5485 = vpop.f32.mrb[0].mxu0
  %v5486 = vadd.f32 0.0, %v5485
  %v5487 = vpop.f32.mrb[0].mxu0
  %v5488 = vadd.f32 0.0, %v5487
  %5489 = vdwg.mxu0
  %5490 = vmatprep.subr.mxu0 %v5192
  %5491 = vmatpush1.msra.mxu0 %v5190
  %5492 = vmatprep.subr.mxu0 0.0
  %5493 = vmatpush1.msra.mxu0 0.0
  %5494 = vmatprep.subr.mxu0 0.0
  %5495 = vmatpush1.msra.mxu0 0.0
  %5496 = vmatprep.subr.mxu0 0.0
  %5497 = vmatpush1.msra.mxu0 0.0
  %5498 = vmatprep.subr.mxu0 0.0
  %5499 = vmatpush1.msra.mxu0 0.0
  %5500 = vmatprep.subr.mxu0 0.0
  %5501 = vmatpush1.msra.mxu0 0.0
  %5502 = vmatprep.subr.mxu0 0.0
  %5503 = vmatpush1.msra.mxu0 0.0
  %5504 = vmatprep.subr.mxu0 0.0
  %5505 = vmatpush1.msra.mxu0 0.0
  %5506 = vmatprep.subr.mxu0 0.0
  %5507 = vmatpush1.msra.mxu0 0.0
  %5508 = vmatprep.subr.mxu0 0.0
  %5509 = vmatpush1.msra.mxu0 0.0
  %5510 = vmatprep.subr.mxu0 0.0
  %5511 = vmatpush1.msra.mxu0 0.0
  %5512 = vmatprep.subr.mxu0 0.0
  %5513 = vmatpush1.msra.mxu0 0.0
  %5514 = vmatprep.subr.mxu0 0.0
  %5515 = vmatpush1.msra.mxu0 0.0
  %5516 = vmatprep.subr.mxu0 0.0
  %5517 = vmatpush1.msra.mxu0 0.0
  %5518 = vmatprep.subr.mxu0 0.0
  %5519 = vmatpush1.msra.mxu0 0.0
  %5520 = vmatprep.subr.mxu0 0.0
  %5521 = vmatpush1.msra.mxu0 0.0
  %5522 = vmatprep.subr.mxu0 0.0
  %5523 = vmatpush1.msra.mxu0 0.0
  %5524 = vmatprep.subr.mxu0 0.0
  %5525 = vmatpush1.msra.mxu0 0.0
  %5526 = vmatprep.subr.mxu0 0.0
  %5527 = vmatpush1.msra.mxu0 0.0
  %5528 = vmatprep.subr.mxu0 0.0
  %5529 = vmatpush1.msra.mxu0 0.0
  %5530 = vmatprep.subr.mxu0 0.0
  %5531 = vmatpush1.msra.mxu0 0.0
  %5532 = vmatprep.subr.mxu0 0.0
  %5533 = vmatpush1.msra.mxu0 0.0
  %5534 = vmatprep.subr.mxu0 0.0
  %5535 = vmatpush1.msra.mxu0 0.0
  %5536 = vmatprep.subr.mxu0 0.0
  %5537 = vmatpush1.msra.mxu0 0.0
  %5538 = vmatprep.subr.mxu0 0.0
  %5539 = vmatpush1.msra.mxu0 0.0
  %5540 = vmatprep.subr.mxu0 0.0
  %5541 = vmatpush1.msra.mxu0 0.0
  %5542 = vmatprep.subr.mxu0 0.0
  %5543 = vmatpush1.msra.mxu0 0.0
  %5544 = vmatprep.subr.mxu0 0.0
  %5545 = vmatpush1.msra.mxu0 0.0
  %5546 = vmatprep.subr.mxu0 0.0
  %5547 = vmatpush1.msra.mxu0 0.0
  %5548 = vmatprep.subr.mxu0 0.0
  %5549 = vmatpush1.msra.mxu0 0.0
  %5550 = vmatprep.subr.mxu0 0.0
  %5551 = vmatpush1.msra.mxu0 0.0
  %5552 = vmatprep.subr.mxu0 0.0
  %5553 = vmatpush1.msra.mxu0 0.0
  %5554 = vmatprep.mubr.f32.mxu0 0.0
  %5555 = vmatmul.mubr.f32.gmra.mrb[0].mxu0 %v5172
  %v5556 = vpop.f32.mrb[0].mxu0
  %v5557 = vadd.f32 0.0, %v5556
  %v5558 = vpop.f32.mrb[0].mxu0
  %v5559 = vadd.f32 0.0, %v5558
  %5560 = vdwg.mxu0
  %5561 = vmatprep.subr.mxu0 %v5196
  %5562 = vmatpush1.msra.mxu0 %v5194
  %5563 = vmatprep.subr.mxu0 0.0
  %5564 = vmatpush1.msra.mxu0 0.0
  %5565 = vmatprep.subr.mxu0 0.0
  %5566 = vmatpush1.msra.mxu0 0.0
  %5567 = vmatprep.subr.mxu0 0.0
  %5568 = vmatpush1.msra.mxu0 0.0
  %5569 = vmatprep.subr.mxu0 0.0
  %5570 = vmatpush1.msra.mxu0 0.0
  %5571 = vmatprep.subr.mxu0 0.0
  %5572 = vmatpush1.msra.mxu0 0.0
  %5573 = vmatprep.subr.mxu0 0.0
  %5574 = vmatpush1.msra.mxu0 0.0
  %5575 = vmatprep.subr.mxu0 0.0
  %5576 = vmatpush1.msra.mxu0 0.0
  %5577 = vmatprep.subr.mxu0 0.0
  %5578 = vmatpush1.msra.mxu0 0.0
  %5579 = vmatprep.subr.mxu0 0.0
  %5580 = vmatpush1.msra.mxu0 0.0
  %5581 = vmatprep.subr.mxu0 0.0
  %5582 = vmatpush1.msra.mxu0 0.0
  %5583 = vmatprep.subr.mxu0 0.0
  %5584 = vmatpush1.msra.mxu0 0.0
  %5585 = vmatprep.subr.mxu0 0.0
  %5586 = vmatpush1.msra.mxu0 0.0
  %5587 = vmatprep.subr.mxu0 0.0
  %5588 = vmatpush1.msra.mxu0 0.0
  %5589 = vmatprep.subr.mxu0 0.0
  %5590 = vmatpush1.msra.mxu0 0.0
  %5591 = vmatprep.subr.mxu0 0.0
  %5592 = vmatpush1.msra.mxu0 0.0
  %5593 = vmatprep.subr.mxu0 0.0
  %5594 = vmatpush1.msra.mxu0 0.0
  %5595 = vmatprep.subr.mxu0 0.0
  %5596 = vmatpush1.msra.mxu0 0.0
  %5597 = vmatprep.subr.mxu0 0.0
  %5598 = vmatpush1.msra.mxu0 0.0
  %5599 = vmatprep.subr.mxu0 0.0
  %5600 = vmatpush1.msra.mxu0 0.0
  %5601 = vmatprep.subr.mxu0 0.0
  %5602 = vmatpush1.msra.mxu0 0.0
  %5603 = vmatprep.subr.mxu0 0.0
  %5604 = vmatpush1.msra.mxu0 0.0
  %5605 = vmatprep.subr.mxu0 0.0
  %5606 = vmatpush1.msra.mxu0 0.0
  %5607 = vmatprep.subr.mxu0 0.0
  %5608 = vmatpush1.msra.mxu0 0.0
  %5609 = vmatprep.subr.mxu0 0.0
  %5610 = vmatpush1.msra.mxu0 0.0
  %5611 = vmatprep.subr.mxu0 0.0
  %5612 = vmatpush1.msra.mxu0 0.0
  %5613 = vmatprep.subr.mxu0 0.0
  %5614 = vmatpush1.msra.mxu0 0.0
  %5615 = vmatprep.subr.mxu0 0.0
  %5616 = vmatpush1.msra.mxu0 0.0
  %5617 = vmatprep.subr.mxu0 0.0
  %5618 = vmatpush1.msra.mxu0 0.0
  %5619 = vmatprep.subr.mxu0 0.0
  %5620 = vmatpush1.msra.mxu0 0.0
  %5621 = vmatprep.subr.mxu0 0.0
  %5622 = vmatpush1.msra.mxu0 0.0
  %5623 = vmatprep.subr.mxu0 0.0
  %5624 = vmatpush1.msra.mxu0 0.0
  %5625 = vmatprep.mubr.f32.mxu0 0.0
  %5626 = vmatmul.mubr.f32.gmra.mrb[0].mxu0 %v5172
  %v5627 = vpop.f32.mrb[0].mxu0
  %v5628 = vadd.f32 0.0, %v5627
  %v5629 = vpop.f32.mrb[0].mxu0
  %v5630 = vadd.f32 0.0, %v5629
  %5631 = vdwg.mxu0
  %5632 = vmatprep.subr.mxu0 %v5200
  %5633 = vmatpush1.msra.mxu0 %v5198
  %5634 = vmatprep.subr.mxu0 0.0
  %5635 = vmatpush1.msra.mxu0 0.0
  %5636 = vmatprep.subr.mxu0 0.0
  %5637 = vmatpush1.msra.mxu0 0.0
  %5638 = vmatprep.subr.mxu0 0.0
  %5639 = vmatpush1.msra.mxu0 0.0
  %5640 = vmatprep.subr.mxu0 0.0
  %5641 = vmatpush1.msra.mxu0 0.0
  %5642 = vmatprep.subr.mxu0 0.0
  %5643 = vmatpush1.msra.mxu0 0.0
  %5644 = vmatprep.subr.mxu0 0.0
  %5645 = vmatpush1.msra.mxu0 0.0
  %5646 = vmatprep.subr.mxu0 0.0
  %5647 = vmatpush1.msra.mxu0 0.0
  %5648 = vmatprep.subr.mxu0 0.0
  %5649 = vmatpush1.msra.mxu0 0.0
  %5650 = vmatprep.subr.mxu0 0.0
  %5651 = vmatpush1.msra.mxu0 0.0
  %5652 = vmatprep.subr.mxu0 0.0
  %5653 = vmatpush1.msra.mxu0 0.0
  %5654 = vmatprep.subr.mxu0 0.0
  %5655 = vmatpush1.msra.mxu0 0.0
  %5656 = vmatprep.subr.mxu0 0.0
  %5657 = vmatpush1.msra.mxu0 0.0
  %5658 = vmatprep.subr.mxu0 0.0
  %5659 = vmatpush1.msra.mxu0 0.0
  %5660 = vmatprep.subr.mxu0 0.0
  %5661 = vmatpush1.msra.mxu0 0.0
  %5662 = vmatprep.subr.mxu0 0.0
  %5663 = vmatpush1.msra.mxu0 0.0
  %5664 = vmatprep.subr.mxu0 0.0
  %5665 = vmatpush1.msra.mxu0 0.0
  %5666 = vmatprep.subr.mxu0 0.0
  %5667 = vmatpush1.msra.mxu0 0.0
  %5668 = vmatprep.subr.mxu0 0.0
  %5669 = vmatpush1.msra.mxu0 0.0
  %5670 = vmatprep.subr.mxu0 0.0
  %5671 = vmatpush1.msra.mxu0 0.0
  %5672 = vmatprep.subr.mxu0 0.0
  %5673 = vmatpush1.msra.mxu0 0.0
  %5674 = vmatprep.subr.mxu0 0.0
  %5675 = vmatpush1.msra.mxu0 0.0
  %5676 = vmatprep.subr.mxu0 0.0
  %5677 = vmatpush1.msra.mxu0 0.0
  %5678 = vmatprep.subr.mxu0 0.0
  %5679 = vmatpush1.msra.mxu0 0.0
  %5680 = vmatprep.subr.mxu0 0.0
  %5681 = vmatpush1.msra.mxu0 0.0
  %5682 = vmatprep.subr.mxu0 0.0
  %5683 = vmatpush1.msra.mxu0 0.0
  %5684 = vmatprep.subr.mxu0 0.0
  %5685 = vmatpush1.msra.mxu0 0.0
  %5686 = vmatprep.subr.mxu0 0.0
  %5687 = vmatpush1.msra.mxu0 0.0
  %5688 = vmatprep.subr.mxu0 0.0
  %5689 = vmatpush1.msra.mxu0 0.0
  %5690 = vmatprep.subr.mxu0 0.0
  %5691 = vmatpush1.msra.mxu0 0.0
  %5692 = vmatprep.subr.mxu0 0.0
  %5693 = vmatpush1.msra.mxu0 0.0
  %5694 = vmatprep.subr.mxu0 0.0
  %5695 = vmatpush1.msra.mxu0 0.0
  %5696 = vmatprep.mubr.f32.mxu0 0.0
  %5697 = vmatmul.mubr.f32.gmra.mrb[0].mxu0 %v5172
  %v5698 = vpop.f32.mrb[0].mxu0
  %v5699 = vadd.f32 0.0, %v5698
  %v5700 = vpop.f32.mrb[0].mxu0
  %v5701 = vadd.f32 0.0, %v5700
  %5702 = vdwg.mxu0
  %5703 = vmatprep.subr.mxu0 %v5204
  %5704 = vmatpush1.msra.mxu0 %v5202
  %5705 = vmatprep.subr.mxu0 0.0
  %5706 = vmatpush1.msra.mxu0 0.0
  %5707 = vmatprep.subr.mxu0 0.0
  %5708 = vmatpush1.msra.mxu0 0.0
  %5709 = vmatprep.subr.mxu0 0.0
  %5710 = vmatpush1.msra.mxu0 0.0
  %5711 = vmatprep.subr.mxu0 0.0
  %5712 = vmatpush1.msra.mxu0 0.0
  %5713 = vmatprep.subr.mxu0 0.0
  %5714 = vmatpush1.msra.mxu0 0.0
  %5715 = vmatprep.subr.mxu0 0.0
  %5716 = vmatpush1.msra.mxu0 0.0
  %5717 = vmatprep.subr.mxu0 0.0
  %5718 = vmatpush1.msra.mxu0 0.0
  %5719 = vmatprep.subr.mxu0 0.0
  %5720 = vmatpush1.msra.mxu0 0.0
  %5721 = vmatprep.subr.mxu0 0.0
  %5722 = vmatpush1.msra.mxu0 0.0
  %5723 = vmatprep.subr.mxu0 0.0
  %5724 = vmatpush1.msra.mxu0 0.0
  %5725 = vmatprep.subr.mxu0 0.0
  %5726 = vmatpush1.msra.mxu0 0.0
  %5727 = vmatprep.subr.mxu0 0.0
  %5728 = vmatpush1.msra.mxu0 0.0
  %5729 = vmatprep.subr.mxu0 0.0
  %5730 = vmatpush1.msra.mxu0 0.0
  %5731 = vmatprep.subr.mxu0 0.0
  %5732 = vmatpush1.msra.mxu0 0.0
  %5733 = vmatprep.subr.mxu0 0.0
  %5734 = vmatpush1.msra.mxu0 0.0
  %5735 = vmatprep.subr.mxu0 0.0
  %5736 = vmatpush1.msra.mxu0 0.0
  %5737 = vmatprep.subr.mxu0 0.0
  %5738 = vmatpush1.msra.mxu0 0.0
  %5739 = vmatprep.subr.mxu0 0.0
  %5740 = vmatpush1.msra.mxu0 0.0
  %5741 = vmatprep.subr.mxu0 0.0
  %5742 = vmatpush1.msra.mxu0 0.0
  %5743 = vmatprep.subr.mxu0 0.0
  %5744 = vmatpush1.msra.mxu0 0.0
  %5745 = vmatprep.subr.mxu0 0.0
  %5746 = vmatpush1.msra.mxu0 0.0
  %5747 = vmatprep.subr.mxu0 0.0
  %5748 = vmatpush1.msra.mxu0 0.0
  %5749 = vmatprep.subr.mxu0 0.0
  %5750 = vmatpush1.msra.mxu0 0.0
  %5751 = vmatprep.subr.mxu0 0.0
  %5752 = vmatpush1.msra.mxu0 0.0
  %5753 = vmatprep.subr.mxu0 0.0
  %5754 = vmatpush1.msra.mxu0 0.0
  %5755 = vmatprep.subr.mxu0 0.0
  %5756 = vmatpush1.msra.mxu0 0.0
  %5757 = vmatprep.subr.mxu0 0.0
  %5758 = vmatpush1.msra.mxu0 0.0
  %5759 = vmatprep.subr.mxu0 0.0
  %5760 = vmatpush1.msra.mxu0 0.0
  %5761 = vmatprep.subr.mxu0 0.0
  %5762 = vmatpush1.msra.mxu0 0.0
  %5763 = vmatprep.subr.mxu0 0.0
  %5764 = vmatpush1.msra.mxu0 0.0
  %5765 = vmatprep.subr.mxu0 0.0
  %5766 = vmatpush1.msra.mxu0 0.0
  %5767 = vmatprep.mubr.f32.mxu0 0.0
  %5768 = vmatmul.mubr.f32.gmra.mrb[0].mxu0 %v5172
  %v5769 = vpop.f32.mrb[0].mxu0
  %v5770 = vadd.f32 0.0, %v5769
  %v5771 = vpop.f32.mrb[0].mxu0
  %v5772 = vadd.f32 0.0, %v5771
  %5773 = vdwg.mxu0
  %v5774 = vadd.f32 %v5129, %v5273
  %v5775 = vadd.f32 %v5130, %v5275
  %v5776 = vadd.f32 %v5131, %v5344
  %v5777 = vadd.f32 %v5132, %v5346
  %v5778 = vadd.f32 %v5133, %v5415
  %v5779 = vadd.f32 %v5134, %v5417
  %v5780 = vadd.f32 %v5135, %v5486
  %v5781 = vadd.f32 %v5136, %v5488
  %v5782 = vadd.f32 %v5137, %v5557
  %v5783 = vadd.f32 %v5138, %v5559
  %v5784 = vadd.f32 %v5139, %v5628
  %v5785 = vadd.f32 %v5140, %v5630
  %v5786 = vadd.f32 %v5141, %v5699
  %v5787 = vadd.f32 %v5142, %v5701
  %v5788 = vadd.f32 %v5143, %v5770
  %v5789 = vadd.f32 %v5144, %v5772
  %v5790 = vld [vmem:[%s2] sm:$0xff]
  %5792 = vset.pattern.permute.xlu0 0
  %5793 = vperm.xlu0 %5792, %v5790
  %v5794 = vpop.permute.xlu0 %5793
  %v5796 = vadd.f32 %v5774, %v5794
  %v5797 = vadd.f32 %v5775, %v5794
  %v5798 = vadd.f32 %v5776, %v5794
  %v5799 = vadd.f32 %v5777, %v5794
  %v5800 = vadd.f32 %v5778, %v5794
  %v5801 = vadd.f32 %v5779, %v5794
  %v5802 = vadd.f32 %v5780, %v5794
  %v5803 = vadd.f32 %v5781, %v5794
  %v5804 = vadd.f32 %v5782, %v5794
  %v5805 = vadd.f32 %v5783, %v5794
  %v5806 = vadd.f32 %v5784, %v5794
  %v5807 = vadd.f32 %v5785, %v5794
  %v5808 = vadd.f32 %v5786, %v5794
  %v5809 = vadd.f32 %v5787, %v5794
  %v5810 = vadd.f32 %v5788, %v5794
  %v5811 = vadd.f32 %v5789, %v5794
  %s5812 = smul.u32 0, 128
  %v5813 = vlaneseq
  %v5814 = vand.u32 %v5813, 127
  %v5815 = vadd.s32 %v5814, 128
  %v5816 = vadd.s32 %v5814, 256
  %v5817 = vadd.s32 %v5814, 384
  %v5818 = vadd.s32 %v5814, 512
  %v5819 = vadd.s32 %v5814, 640
  %v5820 = vadd.s32 %v5814, 768
  %v5821 = vadd.s32 %v5814, 896
  %v5822 = vadd.s32 %v5814, 1024
  %v5823 = vadd.s32 %v5814, 1152
  %v5824 = vadd.s32 %v5814, 1280
  %v5825 = vadd.s32 %v5814, 1408
  %v5826 = vadd.s32 %v5814, 1536
  %v5827 = vadd.s32 %v5814, 1664
  %v5828 = vadd.s32 %v5814, 1792
  %v5829 = vadd.s32 %v5814, 1920
  %vm5830 = vcmp.lt.s32.totalorder %v5814, 0
  %v5831 = vsub.s32 0, %v5814
  %v5832 = vsel %vm5830, %v5831, %v5814
  %v5833 = vshrl.u32 %v5832, 7
  %v5834 = vand.u32 %v5832, 127
  %v5835 = vsub.s32 0, %v5834
  %v5836 = vsel %vm5830, %v5835, %v5834
  %vm5837 = vcmp.lt.s32.totalorder %v5815, 0
  %v5838 = vsub.s32 0, %v5815
  %v5839 = vsel %vm5837, %v5838, %v5815
  %v5840 = vshrl.u32 %v5839, 7
  %v5841 = vand.u32 %v5839, 127
  %v5842 = vsub.s32 0, %v5841
  %v5843 = vsel %vm5837, %v5842, %v5841
  %vm5844 = vcmp.lt.s32.totalorder %v5816, 0
  %v5845 = vsub.s32 0, %v5816
  %v5846 = vsel %vm5844, %v5845, %v5816
  %v5847 = vshrl.u32 %v5846, 7
  %v5848 = vand.u32 %v5846, 127
  %v5849 = vsub.s32 0, %v5848
  %v5850 = vsel %vm5844, %v5849, %v5848
  %vm5851 = vcmp.lt.s32.totalorder %v5817, 0
  %v5852 = vsub.s32 0, %v5817
  %v5853 = vsel %vm5851, %v5852, %v5817
  %v5854 = vshrl.u32 %v5853, 7
  %v5855 = vand.u32 %v5853, 127
  %v5856 = vsub.s32 0, %v5855
  %v5857 = vsel %vm5851, %v5856, %v5855
  %vm5858 = vcmp.lt.s32.totalorder %v5818, 0
  %v5859 = vsub.s32 0, %v5818
  %v5860 = vsel %vm5858, %v5859, %v5818
  %v5861 = vshrl.u32 %v5860, 7
  %v5862 = vand.u32 %v5860, 127
  %v5863 = vsub.s32 0, %v5862
  %v5864 = vsel %vm5858, %v5863, %v5862
  %vm5865 = vcmp.lt.s32.totalorder %v5819, 0
  %v5866 = vsub.s32 0, %v5819
  %v5867 = vsel %vm5865, %v5866, %v5819
  %v5868 = vshrl.u32 %v5867, 7
  %v5869 = vand.u32 %v5867, 127
  %v5870 = vsub.s32 0, %v5869
  %v5871 = vsel %vm5865, %v5870, %v5869
  %vm5872 = vcmp.lt.s32.totalorder %v5820, 0
  %v5873 = vsub.s32 0, %v5820
  %v5874 = vsel %vm5872, %v5873, %v5820
  %v5875 = vshrl.u32 %v5874, 7
  %v5876 = vand.u32 %v5874, 127
  %v5877 = vsub.s32 0, %v5876
  %v5878 = vsel %vm5872, %v5877, %v5876
  %vm5879 = vcmp.lt.s32.totalorder %v5821, 0
  %v5880 = vsub.s32 0, %v5821
  %v5881 = vsel %vm5879, %v5880, %v5821
  %v5882 = vshrl.u32 %v5881, 7
  %v5883 = vand.u32 %v5881, 127
  %v5884 = vsub.s32 0, %v5883
  %v5885 = vsel %vm5879, %v5884, %v5883
  %vm5886 = vcmp.lt.s32.totalorder %v5822, 0
  %v5887 = vsub.s32 0, %v5822
  %v5888 = vsel %vm5886, %v5887, %v5822
  %v5889 = vshrl.u32 %v5888, 7
  %v5890 = vand.u32 %v5888, 127
  %v5891 = vsub.s32 0, %v5890
  %v5892 = vsel %vm5886, %v5891, %v5890
  %vm5893 = vcmp.lt.s32.totalorder %v5823, 0
  %v5894 = vsub.s32 0, %v5823
  %v5895 = vsel %vm5893, %v5894, %v5823
  %v5896 = vshrl.u32 %v5895, 7
  %v5897 = vand.u32 %v5895, 127
  %v5898 = vsub.s32 0, %v5897
  %v5899 = vsel %vm5893, %v5898, %v5897
  %vm5900 = vcmp.lt.s32.totalorder %v5824, 0
  %v5901 = vsub.s32 0, %v5824
  %v5902 = vsel %vm5900, %v5901, %v5824
  %v5903 = vshrl.u32 %v5902, 7
  %v5904 = vand.u32 %v5902, 127
  %v5905 = vsub.s32 0, %v5904
  %v5906 = vsel %vm5900, %v5905, %v5904
  %vm5907 = vcmp.lt.s32.totalorder %v5825, 0
  %v5908 = vsub.s32 0, %v5825
  %v5909 = vsel %vm5907, %v5908, %v5825
  %v5910 = vshrl.u32 %v5909, 7
  %v5911 = vand.u32 %v5909, 127
  %v5912 = vsub.s32 0, %v5911
  %v5913 = vsel %vm5907, %v5912, %v5911
  %vm5914 = vcmp.lt.s32.totalorder %v5826, 0
  %v5915 = vsub.s32 0, %v5826
  %v5916 = vsel %vm5914, %v5915, %v5826
  %v5917 = vshrl.u32 %v5916, 7
  %v5918 = vand.u32 %v5916, 127
  %v5919 = vsub.s32 0, %v5918
  %v5920 = vsel %vm5914, %v5919, %v5918
  %vm5921 = vcmp.lt.s32.totalorder %v5827, 0
  %v5922 = vsub.s32 0, %v5827
  %v5923 = vsel %vm5921, %v5922, %v5827
  %v5924 = vshrl.u32 %v5923, 7
  %v5925 = vand.u32 %v5923, 127
  %v5926 = vsub.s32 0, %v5925
  %v5927 = vsel %vm5921, %v5926, %v5925
  %vm5928 = vcmp.lt.s32.totalorder %v5828, 0
  %v5929 = vsub.s32 0, %v5828
  %v5930 = vsel %vm5928, %v5929, %v5828
  %v5931 = vshrl.u32 %v5930, 7
  %v5932 = vand.u32 %v5930, 127
  %v5933 = vsub.s32 0, %v5932
  %v5934 = vsel %vm5928, %v5933, %v5932
  %vm5935 = vcmp.lt.s32.totalorder %v5829, 0
  %v5936 = vsub.s32 0, %v5829
  %v5937 = vsel %vm5935, %v5936, %v5829
  %v5938 = vshrl.u32 %v5937, 7
  %v5939 = vand.u32 %v5937, 127
  %v5940 = vsub.s32 0, %v5939
  %v5941 = vsel %vm5935, %v5940, %v5939
  %vm5942 = vcmp.ne.s32.totalorder %v5836, 0
  %vm5943 = vcmp.ne.s32.totalorder %v5843, 0
  %vm5944 = vcmp.ne.s32.totalorder %v5850, 0
  %vm5945 = vcmp.ne.s32.totalorder %v5857, 0
  %vm5946 = vcmp.ne.s32.totalorder %v5864, 0
  %vm5947 = vcmp.ne.s32.totalorder %v5871, 0
  %vm5948 = vcmp.ne.s32.totalorder %v5878, 0
  %vm5949 = vcmp.ne.s32.totalorder %v5885, 0
  %vm5950 = vcmp.ne.s32.totalorder %v5892, 0
  %vm5951 = vcmp.ne.s32.totalorder %v5899, 0
  %vm5952 = vcmp.ne.s32.totalorder %v5906, 0
  %vm5953 = vcmp.ne.s32.totalorder %v5913, 0
  %vm5954 = vcmp.ne.s32.totalorder %v5920, 0
  %vm5955 = vcmp.ne.s32.totalorder %v5927, 0
  %vm5956 = vcmp.ne.s32.totalorder %v5934, 0
  %vm5957 = vcmp.ne.s32.totalorder %v5941, 0
  %vm5958 = vcmp.lt.s32.totalorder %v5836, 0
  %vm5959 = vcmp.lt.s32.totalorder %v5843, 0
  %vm5960 = vcmp.lt.s32.totalorder %v5850, 0
  %vm5961 = vcmp.lt.s32.totalorder %v5857, 0
  %vm5962 = vcmp.lt.s32.totalorder %v5864, 0
  %vm5963 = vcmp.lt.s32.totalorder %v5871, 0
  %vm5964 = vcmp.lt.s32.totalorder %v5878, 0
  %vm5965 = vcmp.lt.s32.totalorder %v5885, 0
  %vm5966 = vcmp.lt.s32.totalorder %v5892, 0
  %vm5967 = vcmp.lt.s32.totalorder %v5899, 0
  %vm5968 = vcmp.lt.s32.totalorder %v5906, 0
  %vm5969 = vcmp.lt.s32.totalorder %v5913, 0
  %vm5970 = vcmp.lt.s32.totalorder %v5920, 0
  %vm5971 = vcmp.lt.s32.totalorder %v5927, 0
  %vm5972 = vcmp.lt.s32.totalorder %v5934, 0
  %vm5973 = vcmp.lt.s32.totalorder %v5941, 0
  %vm5974 = vmand %vm5958, %vm5942
  %vm5975 = vmand %vm5959, %vm5943
  %vm5976 = vmand %vm5960, %vm5944
  %vm5977 = vmand %vm5961, %vm5945
  %vm5978 = vmand %vm5962, %vm5946
  %vm5979 = vmand %vm5963, %vm5947
  %vm5980 = vmand %vm5964, %vm5948
  %vm5981 = vmand %vm5965, %vm5949
  %vm5982 = vmand %vm5966, %vm5950
  %vm5983 = vmand %vm5967, %vm5951
  %vm5984 = vmand %vm5968, %vm5952
  %vm5985 = vmand %vm5969, %vm5953
  %vm5986 = vmand %vm5970, %vm5954
  %vm5987 = vmand %vm5971, %vm5955
  %vm5988 = vmand %vm5972, %vm5956
  %vm5989 = vmand %vm5973, %vm5957
  %v5990 = vadd.s32 %v5836, 128
  %v5991 = vadd.s32 %v5843, 128
  %v5992 = vadd.s32 %v5850, 128
  %v5993 = vadd.s32 %v5857, 128
  %v5994 = vadd.s32 %v5864, 128
  %v5995 = vadd.s32 %v5871, 128
  %v5996 = vadd.s32 %v5878, 128
  %v5997 = vadd.s32 %v5885, 128
  %v5998 = vadd.s32 %v5892, 128
  %v5999 = vadd.s32 %v5899, 128
  %v6000 = vadd.s32 %v5906, 128
  %v6001 = vadd.s32 %v5913, 128
  %v6002 = vadd.s32 %v5920, 128
  %v6003 = vadd.s32 %v5927, 128
  %v6004 = vadd.s32 %v5934, 128
  %v6005 = vadd.s32 %v5941, 128
  %v6006 = vsel %vm5974, %v5990, %v5836
  %v6007 = vsel %vm5975, %v5991, %v5843
  %v6008 = vsel %vm5976, %v5992, %v5850
  %v6009 = vsel %vm5977, %v5993, %v5857
  %v6010 = vsel %vm5978, %v5994, %v5864
  %v6011 = vsel %vm5979, %v5995, %v5871
  %v6012 = vsel %vm5980, %v5996, %v5878
  %v6013 = vsel %vm5981, %v5997, %v5885
  %v6014 = vsel %vm5982, %v5998, %v5892
  %v6015 = vsel %vm5983, %v5999, %v5899
  %v6016 = vsel %vm5984, %v6000, %v5906
  %v6017 = vsel %vm5985, %v6001, %v5913
  %v6018 = vsel %vm5986, %v6002, %v5920
  %v6019 = vsel %vm5987, %v6003, %v5927
  %v6020 = vsel %vm5988, %v6004, %v5934
  %v6021 = vsel %vm5989, %v6005, %v5941
  %v6022 = vstv %s5812
  %v6023 = vadd.s32 %v6006, %v6022
  %v6024 = vadd.s32 %v6007, %v6022
  %v6025 = vadd.s32 %v6008, %v6022
  %v6026 = vadd.s32 %v6009, %v6022
  %v6027 = vadd.s32 %v6010, %v6022
  %v6028 = vadd.s32 %v6011, %v6022
  %v6029 = vadd.s32 %v6012, %v6022
  %v6030 = vadd.s32 %v6013, %v6022
  %v6031 = vadd.s32 %v6014, %v6022
  %v6032 = vadd.s32 %v6015, %v6022
  %v6033 = vadd.s32 %v6016, %v6022
  %v6034 = vadd.s32 %v6017, %v6022
  %v6035 = vadd.s32 %v6018, %v6022
  %v6036 = vadd.s32 %v6019, %v6022
  %v6037 = vadd.s32 %v6020, %v6022
  %v6038 = vadd.s32 %v6021, %v6022
  %vm6039 = vcmp.lt.s32.totalorder %v6023, 32
  %vm6040 = vcmp.lt.s32.totalorder %v6024, 32
  %vm6041 = vcmp.lt.s32.totalorder %v6025, 32
  %vm6042 = vcmp.lt.s32.totalorder %v6026, 32
  %vm6043 = vcmp.lt.s32.totalorder %v6027, 32
  %vm6044 = vcmp.lt.s32.totalorder %v6028, 32
  %vm6045 = vcmp.lt.s32.totalorder %v6029, 32
  %vm6046 = vcmp.lt.s32.totalorder %v6030, 32
  %vm6047 = vcmp.lt.s32.totalorder %v6031, 32
  %vm6048 = vcmp.lt.s32.totalorder %v6032, 32
  %vm6049 = vcmp.lt.s32.totalorder %v6033, 32
  %vm6050 = vcmp.lt.s32.totalorder %v6034, 32
  %vm6051 = vcmp.lt.s32.totalorder %v6035, 32
  %vm6052 = vcmp.lt.s32.totalorder %v6036, 32
  %vm6053 = vcmp.lt.s32.totalorder %v6037, 32
  %vm6054 = vcmp.lt.s32.totalorder %v6038, 32
  %v6055 = vsel %vm6039, 1, 0
  %v6056 = vsel %vm6040, 1, 0
  %v6057 = vsel %vm6041, 1, 0
  %v6058 = vsel %vm6042, 1, 0
  %v6059 = vsel %vm6043, 1, 0
  %v6060 = vsel %vm6044, 1, 0
  %v6061 = vsel %vm6045, 1, 0
  %v6062 = vsel %vm6046, 1, 0
  %v6063 = vsel %vm6047, 1, 0
  %v6064 = vsel %vm6048, 1, 0
  %v6065 = vsel %vm6049, 1, 0
  %v6066 = vsel %vm6050, 1, 0
  %v6067 = vsel %vm6051, 1, 0
  %v6068 = vsel %vm6052, 1, 0
  %v6069 = vsel %vm6053, 1, 0
  %v6070 = vsel %vm6054, 1, 0
  %vm6071 = vcmp.eq.s32.totalorder %v6055, 1
  %vm6072 = vcmp.eq.s32.totalorder %v6056, 1
  %vm6073 = vcmp.eq.s32.totalorder %v6057, 1
  %vm6074 = vcmp.eq.s32.totalorder %v6058, 1
  %vm6075 = vcmp.eq.s32.totalorder %v6059, 1
  %vm6076 = vcmp.eq.s32.totalorder %v6060, 1
  %vm6077 = vcmp.eq.s32.totalorder %v6061, 1
  %vm6078 = vcmp.eq.s32.totalorder %v6062, 1
  %vm6079 = vcmp.eq.s32.totalorder %v6063, 1
  %vm6080 = vcmp.eq.s32.totalorder %v6064, 1
  %vm6081 = vcmp.eq.s32.totalorder %v6065, 1
  %vm6082 = vcmp.eq.s32.totalorder %v6066, 1
  %vm6083 = vcmp.eq.s32.totalorder %v6067, 1
  %vm6084 = vcmp.eq.s32.totalorder %v6068, 1
  %vm6085 = vcmp.eq.s32.totalorder %v6069, 1
  %vm6086 = vcmp.eq.s32.totalorder %v6070, 1
  %v6087 = vsel %vm6071, %v5796, 0.0
  %v6088 = vsel %vm6072, %v5797, 0.0
  %v6089 = vsel %vm6073, %v5798, 0.0
  %v6090 = vsel %vm6074, %v5799, 0.0
  %v6091 = vsel %vm6075, %v5800, 0.0
  %v6092 = vsel %vm6076, %v5801, 0.0
  %v6093 = vsel %vm6077, %v5802, 0.0
  %v6094 = vsel %vm6078, %v5803, 0.0
  %v6095 = vsel %vm6079, %v5804, 0.0
  %v6096 = vsel %vm6080, %v5805, 0.0
  %v6097 = vsel %vm6081, %v5806, 0.0
  %v6098 = vsel %vm6082, %v5807, 0.0
  %v6099 = vsel %vm6083, %v5808, 0.0
  %v6100 = vsel %vm6084, %v5809, 0.0
  %v6101 = vsel %vm6085, %v5810, 0.0
  %v6102 = vsel %vm6086, %v5811, 0.0
  %v6103 = vadd.f32 %v6087, %v6088
  %v6104 = vadd.f32 %v6103, %v6089
  %v6105 = vadd.f32 %v6104, %v6090
  %v6106 = vadd.f32 %v6105, %v6091
  %v6107 = vadd.f32 %v6106, %v6092
  %v6108 = vadd.f32 %v6107, %v6093
  %v6109 = vadd.f32 %v6108, %v6094
  %v6110 = vadd.f32 %v6109, %v6095
  %v6111 = vadd.f32 %v6110, %v6096
  %v6112 = vadd.f32 %v6111, %v6097
  %v6113 = vadd.f32 %v6112, %v6098
  %v6114 = vadd.f32 %v6113, %v6099
  %v6115 = vadd.f32 %v6114, %v6100
  %v6116 = vadd.f32 %v6115, %v6101
  %v6117 = vadd.f32 %v6116, %v6102
  %6118 = vadd.xlane.f32.xlu0 %v6117
  %v6119 = vpop.xlane.xlu0 %6118
  %v6120 = vmul.f32 %v6087, %v6087
  %v6121 = vmul.f32 %v6088, %v6088
  %v6122 = vmul.f32 %v6089, %v6089
  %v6123 = vmul.f32 %v6090, %v6090
  %v6124 = vmul.f32 %v6091, %v6091
  %v6125 = vmul.f32 %v6092, %v6092
  %v6126 = vmul.f32 %v6093, %v6093
  %v6127 = vmul.f32 %v6094, %v6094
  %v6128 = vmul.f32 %v6095, %v6095
  %v6129 = vmul.f32 %v6096, %v6096
  %v6130 = vmul.f32 %v6097, %v6097
  %v6131 = vmul.f32 %v6098, %v6098
  %v6132 = vmul.f32 %v6099, %v6099
  %v6133 = vmul.f32 %v6100, %v6100
  %v6134 = vmul.f32 %v6101, %v6101
  %v6135 = vmul.f32 %v6102, %v6102
  %v6136 = vadd.f32 %v6120, %v6121
  %v6137 = vadd.f32 %v6136, %v6122
  %v6138 = vadd.f32 %v6137, %v6123
  %v6139 = vadd.f32 %v6138, %v6124
  %v6140 = vadd.f32 %v6139, %v6125
  %v6141 = vadd.f32 %v6140, %v6126
  %v6142 = vadd.f32 %v6141, %v6127
  %v6143 = vadd.f32 %v6142, %v6128
  %v6144 = vadd.f32 %v6143, %v6129
  %v6145 = vadd.f32 %v6144, %v6130
  %v6146 = vadd.f32 %v6145, %v6131
  %v6147 = vadd.f32 %v6146, %v6132
  %v6148 = vadd.f32 %v6147, %v6133
  %v6149 = vadd.f32 %v6148, %v6134
  %v6150 = vadd.f32 %v6149, %v6135
  %6151 = vadd.xlane.f32.xlu0 %v6150
  %v6152 = vpop.xlane.xlu0 %6151
  %vm6153 = vcmask 7168
  %v6154 = vsel %vm6153, %v6119, %v6152
  %vm6155 = vcmask 15360
  %6156 = vst.msk [vmem:[%s4] sm:$0xff] %vm6155, %v6154
  %6157 = vst [vmem:[%s3] sm:$0xff] %v5796
  %6158 = vst [vmem:[%s3 + $0x8] sm:$0xff] %v5797
  %6159 = vst [vmem:[%s3 + $0x10] sm:$0xff] %v5798
  %6160 = vst [vmem:[%s3 + $0x18] sm:$0xff] %v5799
  %6161 = vst [vmem:[%s3 + $0x20] sm:$0xff] %v5800
  %6162 = vst [vmem:[%s3 + $0x28] sm:$0xff] %v5801
  %6163 = vst [vmem:[%s3 + $0x30] sm:$0xff] %v5802
  %6164 = vst [vmem:[%s3 + $0x38] sm:$0xff] %v5803
  %6165 = vst [vmem:[%s3 + $0x40] sm:$0xff] %v5804
  %6166 = vst [vmem:[%s3 + $0x48] sm:$0xff] %v5805
  %6167 = vst [vmem:[%s3 + $0x50] sm:$0xff] %v5806
  %6168 = vst [vmem:[%s3 + $0x58] sm:$0xff] %v5807
  %6169 = vst [vmem:[%s3 + $0x60] sm:$0xff] %v5808
  %6170 = vst [vmem:[%s3 + $0x68] sm:$0xff] %v5809
  %6171 = vst [vmem:[%s3 + $0x70] sm:$0xff] %v5810
  %6172 = vst [vmem:[%s3 + $0x78] sm:$0xff] %v5811
  // Predicated region
  $region14: #{unit_tcn_forward.2} parent=0 // pred_check
    _
  $region15: #{unit_tcn_forward.2} parent=0 // pred_check_branch
    %6174 = sbr.rel (0) target = $region17
  $region16: #{unit_tcn_forward.2} parent=0 // pred_region
    _
  $region17: #{unit_tcn_forward.2} parent=0 // pred_fallthru
    _
  // Predicated region
  $region18: #{unit_tcn_forward.2} parent=0 // pred_check
    _
  $region19: #{unit_tcn_forward.2} parent=0 // pred_check_branch
    %6176 = sbr.rel (0) target = $region21
  $region20: #{unit_tcn_forward.2} parent=0 // pred_region
    _
  $region21: #{unit_tcn_forward.2} parent=0 // pred_fallthru
    _
  // Predicated region
  $region22: #{unit_tcn_forward.2} parent=0 // pred_check
    _
  $region23: #{unit_tcn_forward.2} parent=0 // pred_check_branch
    %6178 = sbr.rel (0) target = $region25
  $region24: #{unit_tcn_forward.2} parent=0 // pred_region
    _
  $region25: #{unit_tcn_forward.2} parent=0 // pred_fallthru
    _
  // Predicated region
  $region26: #{unit_tcn_forward.2} parent=0 // pred_check
    _
  $region27: #{unit_tcn_forward.2} parent=0 // pred_check_branch
    %6180 = sbr.rel (0) target = $region29
  $region28: #{unit_tcn_forward.2} parent=0 // pred_region
    _
  $region29: #{unit_tcn_forward.2} parent=0 // pred_fallthru
    _

</llo_original>
